<compile_context>
chip_gen: v7x
topology: tpu7x:2x2x1
jax: 0.10.0
libtpu: 0.0.40
codegen_flags: <defaults>
</compile_context>

<pallas_src>
import numpy as np
from functools import partial

import jax
import jax.numpy as jnp
from jax.experimental import pallas as pl
from jax.experimental.pallas import tpu as pltpu

_BN_EPS = 1e-5
_SQRT_HALF = float(np.sqrt(0.5))


# ----------------------------------------------------------------------------
# Fused kernel: whole TabNetEncoder forward for one virtual batch tile
# ----------------------------------------------------------------------------
def _tabnet_fused_kernel(x_ref, bn_mu_ref, bn_rstd_ref,
                         wsh0_ref, wsh1_ref, init_sd_ref, step_sd_ref, attnw_ref,
                         dout_ref, ent_ref,
                         *, n_steps, n_glu_sd, step_dim, gamma, epsilon):
    vb = x_ref.shape[0]
    d2 = wsh0_ref.shape[1]
    d = d2 // 2

    # --- GhostBatchNorm (train mode, weight=1, bias=0): one-pass stats over tile
    def gbn(h):
        inv_n = 1.0 / h.shape[0]
        s = jnp.sum(h, axis=0, keepdims=True)
        ss = jnp.sum(h * h, axis=0, keepdims=True)
        mu = s * inv_n
        var = jnp.maximum(ss * inv_n - mu * mu, 0.0)
        return (h - mu) * jax.lax.rsqrt(var + _BN_EPS)

    # --- GLU_Layer: dropout(glu(GBN(fc(x)))), dropout = 0; sigmoid via EUP recip
    def glu_layer(h, w):
        z = gbn(jnp.dot(h, w, preferred_element_type=jnp.float32))
        a, g = z[:, :d], z[:, d:]
        return a * pl.reciprocal(1.0 + jnp.exp(-g), approx=True)

    wsh0 = wsh0_ref[...]
    wsh1 = wsh1_ref[...]

    # --- FeatTransformer: shared GLU block (first=True) + step-dependent block
    def feat_transformer(h, sd_ws):
        h = glu_layer(h, wsh0)
        h = (h + glu_layer(h, wsh1)) * _SQRT_HALF
        for w in sd_ws:
            h = (h + glu_layer(h, w)) * _SQRT_HALF
        return h

    # --- sparsemax, sort-free (exact, including tied values)
    def sparsemax(z):
        zi = z[:, :, None]                       # (vb, D, 1)
        zj = z[:, None, :]                       # (vb, 1, D)
        ge = zj >= zi                            # (vb, D, D) bool
        k = jnp.sum(ge.astype(jnp.float32), axis=-1)           # rank (ties included)
        s = jnp.sum(jnp.where(ge, zj, 0.0), axis=-1)           # masked sum, no f32 mul
        cond = (1.0 + k * z) > s
        k_star = jnp.sum(cond.astype(jnp.float32), axis=-1, keepdims=True)
        z_sum = jnp.sum(jnp.where(cond, z, 0.0), axis=-1, keepdims=True)
        tau = (z_sum - 1.0) * pl.reciprocal(k_star, approx=True)
        return jnp.maximum(z - tau, 0.0)

    # --- initial_bn: plain BatchNorm1d -> full-batch stats (precomputed outside)
    x = (x_ref[...] - bn_mu_ref[...]) * bn_rstd_ref[...]

    # --- initial splitter
    out = feat_transformer(x, [init_sd_ref[j] for j in range(n_glu_sd)])
    attn = out[:, step_dim:]

    prior = jnp.ones_like(x)
    ent = jnp.zeros((vb, 1), jnp.float32)
    d_outs = []
    for step in range(n_steps):                  # static unroll, all VMEM-resident
        # AttentiveTransformer: sparsemax(GBN(fc(attn)) * prior)
        z = gbn(jnp.dot(attn, attnw_ref[step], preferred_element_type=jnp.float32))
        M = sparsemax(z * prior)
        prior = (gamma - M) * prior
        ent = ent + jnp.sum(M * jnp.log(M + epsilon), axis=-1, keepdims=True)
        sd_ws = [step_sd_ref[step * n_glu_sd + j] for j in range(n_glu_sd)]
        out = feat_transformer(M * x, sd_ws)
        attn = out[:, step_dim:]
        d_outs.append(jnp.maximum(out[:, :step_dim], 0.0))      # ReLU decision out

    # --- single lane-dense (128-padded) output slab + per-row M_loss partials
    pad = dout_ref.shape[1] - n_steps * step_dim
    if pad > 0:
        d_outs.append(jnp.zeros((vb, pad), jnp.float32))
    dout_ref[...] = jnp.concatenate(d_outs, axis=-1)
    ent_ref[...] = ent


# ----------------------------------------------------------------------------
# Wrapper: one pallas_call for the whole forward
# ----------------------------------------------------------------------------
@partial(jax.jit, static_argnames=("n_steps", "step_dim", "n_glu_sd", "gamma",
                                   "epsilon", "virtual_batch_size"))
def tabnet_encoder_forward(X, params, *, n_steps, step_dim, gamma, epsilon,
                           n_glu_sd=2, virtual_batch_size=128):
    X = X.astype(jnp.float32)
    B, input_dim = X.shape

    # GhostBatchNorm chunking (torch.chunk semantics): equal chunks required.
    n_chunks = -(-B // virtual_batch_size)
    vb = -(-B // n_chunks)
    if B % vb != 0 or (n_chunks > 1 and vb % 8 != 0):
        # TODO(synk): ragged / non-8-aligned virtual batches need masked BN stats.
        raise NotImplementedError("batch must split into equal, 8-aligned virtual batches")

    # initial_bn is a plain BatchNorm1d -> full-batch stats (biased variance).
    mu = jnp.mean(X, axis=0, keepdims=True)
    var = jnp.mean(jnp.square(X), axis=0, keepdims=True) - jnp.square(mu)
    rstd = jax.lax.rsqrt(jnp.maximum(var, 0.0) + _BN_EPS)

    wsh0, wsh1 = params["shared"]
    init_sd = jnp.stack(params["init_sd"])                              # (n_glu_sd, d, 2d)
    step_sd = jnp.stack([w for ws in params["step_sd"] for w in ws])    # (n_steps*n_glu_sd, d, 2d)
    attn_w = jnp.stack(params["attn_w"])                                # (n_steps, attn_dim, input_dim)
    d2 = wsh0.shape[1]
    d = d2 // 2
    attn_dim = attn_w.shape[1]

    out_lanes = max(128, ((n_steps * step_dim + 127) // 128) * 128)     # lane-dense slab

    kernel = partial(_tabnet_fused_kernel, n_steps=n_steps, n_glu_sd=n_glu_sd,
                     step_dim=step_dim, gamma=float(gamma), epsilon=float(epsilon))

    dout_slab, ent_rows = pl.pallas_call(
        kernel,
        out_shape=(jax.ShapeDtypeStruct((B, out_lanes), jnp.float32),
                   jax.ShapeDtypeStruct((B, 1), jnp.float32)),
        grid=(n_chunks,),
        in_specs=[
            pl.BlockSpec((vb, input_dim), lambda i: (i, 0)),            # X virtual-batch tile
            pl.BlockSpec((1, input_dim), lambda i: (0, 0)),             # initial-BN mean
            pl.BlockSpec((1, input_dim), lambda i: (0, 0)),             # initial-BN rstd
            pl.BlockSpec((input_dim, d2), lambda i: (0, 0)),            # shared fc 0 (resident)
            pl.BlockSpec((d, d2), lambda i: (0, 0)),                    # shared fc 1 (resident)
            pl.BlockSpec((n_glu_sd, d, d2), lambda i: (0, 0, 0)),       # init splitter step-dep
            pl.BlockSpec((n_steps * n_glu_sd, d, d2), lambda i: (0, 0, 0)),
            pl.BlockSpec((n_steps, attn_dim, input_dim), lambda i: (0, 0, 0)),
        ],
        out_specs=(
            pl.BlockSpec((vb, out_lanes), lambda i: (i, 0)),            # packed d_out slab
            pl.BlockSpec((vb, 1), lambda i: (i, 0)),                    # per-row entropy partials
        ),
        compiler_params=pltpu.CompilerParams(dimension_semantics=("parallel",)),
    )(X, mu, rstd, wsh0, wsh1, init_sd, step_sd, attn_w)

    steps_output = tuple(dout_slab[:, s * step_dim:(s + 1) * step_dim]
                         for s in range(n_steps))
    M_loss = (jnp.sum(ent_rows) / (B * n_steps)).reshape(1)
    return steps_output, M_loss


# ----------------------------------------------------------------------------
# Deterministic synthetic parameter init (xavier_normal with TabNet gains)
# ----------------------------------------------------------------------------
def _xavier(key, fan_in, fan_out, gain):
    std = gain * np.sqrt(2.0 / (fan_in + fan_out))
    return (std * jax.random.normal(key, (fan_in, fan_out))).astype(jnp.float32)


def make_params(key, input_dim, step_dim, attn_dim, n_steps, n_glu_shared=2,
                n_glu_step_dependent=2):
    d = step_dim + attn_dim
    glu_gain = lambda i, o2: float(np.sqrt((i + o2) / np.sqrt(i)))
    nonglu_gain = lambda i, o: float(np.sqrt((i + o) / np.sqrt(4 * i)))

    n_keys = n_glu_shared + n_glu_step_dependent * (1 + n_steps) + n_steps
    keys = iter(jax.random.split(key, n_keys))

    shared = []
    for i in range(n_glu_shared):
        fin = input_dim if i == 0 else d
        shared.append(_xavier(next(keys), fin, 2 * d, glu_gain(fin, 2 * d)))

    init_sd = [_xavier(next(keys), d, 2 * d, glu_gain(d, 2 * d))
               for _ in range(n_glu_step_dependent)]

    step_sd = [[_xavier(next(keys), d, 2 * d, glu_gain(d, 2 * d))
                for _ in range(n_glu_step_dependent)]
               for _ in range(n_steps)]

    attn_w = [_xavier(next(keys), attn_dim, input_dim, nonglu_gain(attn_dim, input_dim))
              for _ in range(n_steps)]

    return {"shared": shared, "init_sd": init_sd, "step_sd": step_sd, "attn_w": attn_w}


# ----------------------------------------------------------------------------
if __name__ == "__main__":
    B, input_dim = 8, 16
    step_dim, attn_dim, n_steps = 8, 8, 3
    gamma, epsilon = 1.3, 1e-15

    root = jax.random.PRNGKey(0)
    kx, kp = jax.random.split(root)
    X = jax.random.normal(kx, (B, input_dim), dtype=jnp.float32)
    params = make_params(kp, input_dim, step_dim, attn_dim, n_steps)

    steps_out, m_loss = tabnet_encoder_forward(
        X, params, n_steps=n_steps, step_dim=step_dim, gamma=gamma, epsilon=epsilon
    )
    steps_out = jax.block_until_ready(steps_out)
    m_loss = jax.block_until_ready(m_loss)

    assert len(steps_out) == n_steps
    assert all(o.shape == (B, step_dim) for o in steps_out)
    assert m_loss.shape == (1,)
    assert all(bool(jnp.all(jnp.isfinite(o))) for o in steps_out)
    assert bool(jnp.all(jnp.isfinite(m_loss)))

    print("KERNEL_OK")
</pallas_src>

<mosaic_0001>
module attributes {stable_mosaic.version = 11 : i64} {
  func.func @_tabnet_fused_kernel(%arg0: i32, %arg1: memref<8x16xf32, #tpu.memory_space<vmem>>, %arg2: memref<1x16xf32, #tpu.memory_space<vmem>>, %arg3: memref<1x16xf32, #tpu.memory_space<vmem>>, %arg4: memref<16x32xf32, #tpu.memory_space<vmem>>, %arg5: memref<16x32xf32, #tpu.memory_space<vmem>>, %arg6: memref<2x16x32xf32, #tpu.memory_space<vmem>>, %arg7: memref<6x16x32xf32, #tpu.memory_space<vmem>>, %arg8: memref<3x8x16xf32, #tpu.memory_space<vmem>>, %arg9: memref<8x128xf32, #tpu.memory_space<vmem>>, %arg10: memref<8x1xf32, #tpu.memory_space<vmem>>) attributes {dimension_semantics = [#tpu.dimension_semantics<parallel>], iteration_bounds = array<i64: 1>, scalar_prefetch = 0 : i64, scratch_operands = 0 : i64, tpu.core_type = #tpu.core_type<tc>, window_params = [{transform_indices = @transform_0, window_bounds = array<i64: 8, 16>}, {pipeline_mode = #tpu.pipeline_mode<synchronous>, transform_indices = @transform_1, window_bounds = array<i64: 1, 16>}, {pipeline_mode = #tpu.pipeline_mode<synchronous>, transform_indices = @transform_2, window_bounds = array<i64: 1, 16>}, {pipeline_mode = #tpu.pipeline_mode<synchronous>, transform_indices = @transform_3, window_bounds = array<i64: 16, 32>}, {pipeline_mode = #tpu.pipeline_mode<synchronous>, transform_indices = @transform_4, window_bounds = array<i64: 16, 32>}, {pipeline_mode = #tpu.pipeline_mode<synchronous>, transform_indices = @transform_5, window_bounds = array<i64: 2, 16, 32>}, {pipeline_mode = #tpu.pipeline_mode<synchronous>, transform_indices = @transform_6, window_bounds = array<i64: 6, 16, 32>}, {pipeline_mode = #tpu.pipeline_mode<synchronous>, transform_indices = @transform_7, window_bounds = array<i64: 3, 8, 16>}, {transform_indices = @transform_8, window_bounds = array<i64: 8, 128>}, {transform_indices = @transform_9, window_bounds = array<i64: 8, 1>}]} {
    %c0 = arith.constant 0 : index
    %c0_0 = arith.constant 0 : index
    %0 = vector.load %arg4[%c0, %c0_0] : memref<16x32xf32, #tpu.memory_space<vmem>>, vector<16x32xf32>
    %c0_1 = arith.constant 0 : index
    %c0_2 = arith.constant 0 : index
    %1 = vector.load %arg5[%c0_1, %c0_2] : memref<16x32xf32, #tpu.memory_space<vmem>>, vector<16x32xf32>
    %c0_3 = arith.constant 0 : index
    %c0_4 = arith.constant 0 : index
    %2 = vector.load %arg1[%c0_3, %c0_4] : memref<8x16xf32, #tpu.memory_space<vmem>>, vector<8x16xf32>
    %c0_5 = arith.constant 0 : index
    %c0_6 = arith.constant 0 : index
    %3 = vector.load %arg2[%c0_5, %c0_6] : memref<1x16xf32, #tpu.memory_space<vmem>>, vector<1x16xf32>
    %4 = vector.broadcast %3 : vector<1x16xf32> to vector<8x16xf32>
    %5 = arith.subf %2, %4 : vector<8x16xf32>
    %c0_7 = arith.constant 0 : index
    %c0_8 = arith.constant 0 : index
    %6 = vector.load %arg3[%c0_7, %c0_8] : memref<1x16xf32, #tpu.memory_space<vmem>>, vector<1x16xf32>
    %7 = vector.broadcast %6 : vector<1x16xf32> to vector<8x16xf32>
    %8 = arith.mulf %5, %7 : vector<8x16xf32>
    %c0_9 = arith.constant 0 : index
    %c0_10 = arith.constant 0 : index
    %c0_11 = arith.constant 0 : index
    %9 = vector.load %arg6[%c0_9, %c0_10, %c0_11] : memref<2x16x32xf32, #tpu.memory_space<vmem>>, vector<1x16x32xf32>
    %10 = vector.shape_cast %9 : vector<1x16x32xf32> to vector<16x32xf32>
    %c1 = arith.constant 1 : index
    %c0_12 = arith.constant 0 : index
    %c0_13 = arith.constant 0 : index
    %11 = vector.load %arg6[%c1, %c0_12, %c0_13] : memref<2x16x32xf32, #tpu.memory_space<vmem>>, vector<1x16x32xf32>
    %12 = vector.shape_cast %11 : vector<1x16x32xf32> to vector<16x32xf32>
    %cst = arith.constant dense<0.000000e+00> : vector<8x32xf32>
    %13 = tpu.matmul %8, %0, %cst {dimension_numbers = #tpu.dot_dimension_numbers<[1], [0], [0], [1], [0, 0, 1, 1], [], []>} : vector<8x16xf32>, vector<16x32xf32>, vector<8x32xf32> -> vector<8x32xf32>
    %cst_14 = arith.constant dense<0.000000e+00> : vector<32xf32>
    %14 = vector.multi_reduction <add>, %13, %cst_14 [0] : vector<8x32xf32> to vector<32xf32>
    %15 = vector.shape_cast %14 : vector<32xf32> to vector<1x32xf32>
    %16 = arith.mulf %13, %13 : vector<8x32xf32>
    %cst_15 = arith.constant dense<0.000000e+00> : vector<32xf32>
    %17 = vector.multi_reduction <add>, %16, %cst_15 [0] : vector<8x32xf32> to vector<32xf32>
    %18 = vector.shape_cast %17 : vector<32xf32> to vector<1x32xf32>
    %cst_16 = arith.constant 1.250000e-01 : f32
    %19 = vector.broadcast %cst_16 : f32 to vector<1x32xf32>
    %20 = arith.mulf %15, %19 : vector<1x32xf32>
    %cst_17 = arith.constant 1.250000e-01 : f32
    %21 = vector.broadcast %cst_17 : f32 to vector<1x32xf32>
    %22 = arith.mulf %18, %21 : vector<1x32xf32>
    %23 = arith.mulf %20, %20 : vector<1x32xf32>
    %24 = arith.subf %22, %23 : vector<1x32xf32>
    %cst_18 = arith.constant 0.000000e+00 : f32
    %25 = vector.broadcast %cst_18 : f32 to vector<1x32xf32>
    %26 = arith.maximumf %24, %25 : vector<1x32xf32>
    %27 = vector.broadcast %20 : vector<1x32xf32> to vector<8x32xf32>
    %28 = arith.subf %13, %27 : vector<8x32xf32>
    %cst_19 = arith.constant 9.99999974E-6 : f32
    %29 = vector.broadcast %cst_19 : f32 to vector<1x32xf32>
    %30 = arith.addf %26, %29 : vector<1x32xf32>
    %31 = math.rsqrt %30 : vector<1x32xf32>
    %32 = vector.broadcast %31 : vector<1x32xf32> to vector<8x32xf32>
    %33 = arith.mulf %28, %32 : vector<8x32xf32>
    %34 = vector.extract_strided_slice %33 {offsets = [0, 0], sizes = [8, 16], strides = [1, 1]} : vector<8x32xf32> to vector<8x16xf32>
    %35 = vector.extract_strided_slice %33 {offsets = [0, 16], sizes = [8, 16], strides = [1, 1]} : vector<8x32xf32> to vector<8x16xf32>
    %cst_20 = arith.constant 0.000000e+00 : f32
    %36 = vector.broadcast %cst_20 : f32 to vector<8x16xf32>
    %37 = arith.subf %36, %35 : vector<8x16xf32>
    %38 = math.exp %37 : vector<8x16xf32>
    %cst_21 = arith.constant 1.000000e+00 : f32
    %39 = vector.broadcast %cst_21 : f32 to vector<8x16xf32>
    %40 = arith.addf %39, %38 : vector<8x16xf32>
    %41 = tpu.reciprocal %40 {approx = true} : vector<8x16xf32> -> vector<8x16xf32>
    %42 = arith.mulf %34, %41 : vector<8x16xf32>
    %cst_22 = arith.constant dense<0.000000e+00> : vector<8x32xf32>
    %43 = tpu.matmul %42, %1, %cst_22 {dimension_numbers = #tpu.dot_dimension_numbers<[1], [0], [0], [1], [0, 0, 1, 1], [], []>} : vector<8x16xf32>, vector<16x32xf32>, vector<8x32xf32> -> vector<8x32xf32>
    %cst_23 = arith.constant dense<0.000000e+00> : vector<32xf32>
    %44 = vector.multi_reduction <add>, %43, %cst_23 [0] : vector<8x32xf32> to vector<32xf32>
    %45 = vector.shape_cast %44 : vector<32xf32> to vector<1x32xf32>
    %46 = arith.mulf %43, %43 : vector<8x32xf32>
    %cst_24 = arith.constant dense<0.000000e+00> : vector<32xf32>
    %47 = vector.multi_reduction <add>, %46, %cst_24 [0] : vector<8x32xf32> to vector<32xf32>
    %48 = vector.shape_cast %47 : vector<32xf32> to vector<1x32xf32>
    %cst_25 = arith.constant 1.250000e-01 : f32
    %49 = vector.broadcast %cst_25 : f32 to vector<1x32xf32>
    %50 = arith.mulf %45, %49 : vector<1x32xf32>
    %cst_26 = arith.constant 1.250000e-01 : f32
    %51 = vector.broadcast %cst_26 : f32 to vector<1x32xf32>
    %52 = arith.mulf %48, %51 : vector<1x32xf32>
    %53 = arith.mulf %50, %50 : vector<1x32xf32>
    %54 = arith.subf %52, %53 : vector<1x32xf32>
    %cst_27 = arith.constant 0.000000e+00 : f32
    %55 = vector.broadcast %cst_27 : f32 to vector<1x32xf32>
    %56 = arith.maximumf %54, %55 : vector<1x32xf32>
    %57 = vector.broadcast %50 : vector<1x32xf32> to vector<8x32xf32>
    %58 = arith.subf %43, %57 : vector<8x32xf32>
    %cst_28 = arith.constant 9.99999974E-6 : f32
    %59 = vector.broadcast %cst_28 : f32 to vector<1x32xf32>
    %60 = arith.addf %56, %59 : vector<1x32xf32>
    %61 = math.rsqrt %60 : vector<1x32xf32>
    %62 = vector.broadcast %61 : vector<1x32xf32> to vector<8x32xf32>
    %63 = arith.mulf %58, %62 : vector<8x32xf32>
    %64 = vector.extract_strided_slice %63 {offsets = [0, 0], sizes = [8, 16], strides = [1, 1]} : vector<8x32xf32> to vector<8x16xf32>
    %65 = vector.extract_strided_slice %63 {offsets = [0, 16], sizes = [8, 16], strides = [1, 1]} : vector<8x32xf32> to vector<8x16xf32>
    %cst_29 = arith.constant 0.000000e+00 : f32
    %66 = vector.broadcast %cst_29 : f32 to vector<8x16xf32>
    %67 = arith.subf %66, %65 : vector<8x16xf32>
    %68 = math.exp %67 : vector<8x16xf32>
    %cst_30 = arith.constant 1.000000e+00 : f32
    %69 = vector.broadcast %cst_30 : f32 to vector<8x16xf32>
    %70 = arith.addf %69, %68 : vector<8x16xf32>
    %71 = tpu.reciprocal %70 {approx = true} : vector<8x16xf32> -> vector<8x16xf32>
    %72 = arith.mulf %64, %71 : vector<8x16xf32>
    %73 = arith.addf %42, %72 : vector<8x16xf32>
    %cst_31 = arith.constant 0.707106769 : f32
    %74 = vector.broadcast %cst_31 : f32 to vector<8x16xf32>
    %75 = arith.mulf %73, %74 : vector<8x16xf32>
    %cst_32 = arith.constant dense<0.000000e+00> : vector<8x32xf32>
    %76 = tpu.matmul %75, %10, %cst_32 {dimension_numbers = #tpu.dot_dimension_numbers<[1], [0], [0], [1], [0, 0, 1, 1], [], []>} : vector<8x16xf32>, vector<16x32xf32>, vector<8x32xf32> -> vector<8x32xf32>
    %cst_33 = arith.constant dense<0.000000e+00> : vector<32xf32>
    %77 = vector.multi_reduction <add>, %76, %cst_33 [0] : vector<8x32xf32> to vector<32xf32>
    %78 = vector.shape_cast %77 : vector<32xf32> to vector<1x32xf32>
    %79 = arith.mulf %76, %76 : vector<8x32xf32>
    %cst_34 = arith.constant dense<0.000000e+00> : vector<32xf32>
    %80 = vector.multi_reduction <add>, %79, %cst_34 [0] : vector<8x32xf32> to vector<32xf32>
    %81 = vector.shape_cast %80 : vector<32xf32> to vector<1x32xf32>
    %cst_35 = arith.constant 1.250000e-01 : f32
    %82 = vector.broadcast %cst_35 : f32 to vector<1x32xf32>
    %83 = arith.mulf %78, %82 : vector<1x32xf32>
    %cst_36 = arith.constant 1.250000e-01 : f32
    %84 = vector.broadcast %cst_36 : f32 to vector<1x32xf32>
    %85 = arith.mulf %81, %84 : vector<1x32xf32>
    %86 = arith.mulf %83, %83 : vector<1x32xf32>
    %87 = arith.subf %85, %86 : vector<1x32xf32>
    %cst_37 = arith.constant 0.000000e+00 : f32
    %88 = vector.broadcast %cst_37 : f32 to vector<1x32xf32>
    %89 = arith.maximumf %87, %88 : vector<1x32xf32>
    %90 = vector.broadcast %83 : vector<1x32xf32> to vector<8x32xf32>
    %91 = arith.subf %76, %90 : vector<8x32xf32>
    %cst_38 = arith.constant 9.99999974E-6 : f32
    %92 = vector.broadcast %cst_38 : f32 to vector<1x32xf32>
    %93 = arith.addf %89, %92 : vector<1x32xf32>
    %94 = math.rsqrt %93 : vector<1x32xf32>
    %95 = vector.broadcast %94 : vector<1x32xf32> to vector<8x32xf32>
    %96 = arith.mulf %91, %95 : vector<8x32xf32>
    %97 = vector.extract_strided_slice %96 {offsets = [0, 0], sizes = [8, 16], strides = [1, 1]} : vector<8x32xf32> to vector<8x16xf32>
    %98 = vector.extract_strided_slice %96 {offsets = [0, 16], sizes = [8, 16], strides = [1, 1]} : vector<8x32xf32> to vector<8x16xf32>
    %cst_39 = arith.constant 0.000000e+00 : f32
    %99 = vector.broadcast %cst_39 : f32 to vector<8x16xf32>
    %100 = arith.subf %99, %98 : vector<8x16xf32>
    %101 = math.exp %100 : vector<8x16xf32>
    %cst_40 = arith.constant 1.000000e+00 : f32
    %102 = vector.broadcast %cst_40 : f32 to vector<8x16xf32>
    %103 = arith.addf %102, %101 : vector<8x16xf32>
    %104 = tpu.reciprocal %103 {approx = true} : vector<8x16xf32> -> vector<8x16xf32>
    %105 = arith.mulf %97, %104 : vector<8x16xf32>
    %106 = arith.addf %75, %105 : vector<8x16xf32>
    %cst_41 = arith.constant 0.707106769 : f32
    %107 = vector.broadcast %cst_41 : f32 to vector<8x16xf32>
    %108 = arith.mulf %106, %107 : vector<8x16xf32>
    %cst_42 = arith.constant dense<0.000000e+00> : vector<8x32xf32>
    %109 = tpu.matmul %108, %12, %cst_42 {dimension_numbers = #tpu.dot_dimension_numbers<[1], [0], [0], [1], [0, 0, 1, 1], [], []>} : vector<8x16xf32>, vector<16x32xf32>, vector<8x32xf32> -> vector<8x32xf32>
    %cst_43 = arith.constant dense<0.000000e+00> : vector<32xf32>
    %110 = vector.multi_reduction <add>, %109, %cst_43 [0] : vector<8x32xf32> to vector<32xf32>
    %111 = vector.shape_cast %110 : vector<32xf32> to vector<1x32xf32>
    %112 = arith.mulf %109, %109 : vector<8x32xf32>
    %cst_44 = arith.constant dense<0.000000e+00> : vector<32xf32>
    %113 = vector.multi_reduction <add>, %112, %cst_44 [0] : vector<8x32xf32> to vector<32xf32>
    %114 = vector.shape_cast %113 : vector<32xf32> to vector<1x32xf32>
    %cst_45 = arith.constant 1.250000e-01 : f32
    %115 = vector.broadcast %cst_45 : f32 to vector<1x32xf32>
    %116 = arith.mulf %111, %115 : vector<1x32xf32>
    %cst_46 = arith.constant 1.250000e-01 : f32
    %117 = vector.broadcast %cst_46 : f32 to vector<1x32xf32>
    %118 = arith.mulf %114, %117 : vector<1x32xf32>
    %119 = arith.mulf %116, %116 : vector<1x32xf32>
    %120 = arith.subf %118, %119 : vector<1x32xf32>
    %cst_47 = arith.constant 0.000000e+00 : f32
    %121 = vector.broadcast %cst_47 : f32 to vector<1x32xf32>
    %122 = arith.maximumf %120, %121 : vector<1x32xf32>
    %123 = vector.broadcast %116 : vector<1x32xf32> to vector<8x32xf32>
    %124 = arith.subf %109, %123 : vector<8x32xf32>
    %cst_48 = arith.constant 9.99999974E-6 : f32
    %125 = vector.broadcast %cst_48 : f32 to vector<1x32xf32>
    %126 = arith.addf %122, %125 : vector<1x32xf32>
    %127 = math.rsqrt %126 : vector<1x32xf32>
    %128 = vector.broadcast %127 : vector<1x32xf32> to vector<8x32xf32>
    %129 = arith.mulf %124, %128 : vector<8x32xf32>
    %130 = vector.extract_strided_slice %129 {offsets = [0, 0], sizes = [8, 16], strides = [1, 1]} : vector<8x32xf32> to vector<8x16xf32>
    %131 = vector.extract_strided_slice %129 {offsets = [0, 16], sizes = [8, 16], strides = [1, 1]} : vector<8x32xf32> to vector<8x16xf32>
    %cst_49 = arith.constant 0.000000e+00 : f32
    %132 = vector.broadcast %cst_49 : f32 to vector<8x16xf32>
    %133 = arith.subf %132, %131 : vector<8x16xf32>
    %134 = math.exp %133 : vector<8x16xf32>
    %cst_50 = arith.constant 1.000000e+00 : f32
    %135 = vector.broadcast %cst_50 : f32 to vector<8x16xf32>
    %136 = arith.addf %135, %134 : vector<8x16xf32>
    %137 = tpu.reciprocal %136 {approx = true} : vector<8x16xf32> -> vector<8x16xf32>
    %138 = arith.mulf %130, %137 : vector<8x16xf32>
    %139 = arith.addf %108, %138 : vector<8x16xf32>
    %cst_51 = arith.constant 0.707106769 : f32
    %140 = vector.broadcast %cst_51 : f32 to vector<8x16xf32>
    %141 = arith.mulf %139, %140 : vector<8x16xf32>
    %142 = vector.extract_strided_slice %141 {offsets = [0, 8], sizes = [8, 8], strides = [1, 1]} : vector<8x16xf32> to vector<8x8xf32>
    %cst_52 = arith.constant 1.000000e+00 : f32
    %143 = vector.broadcast %cst_52 : f32 to vector<8x16xf32>
    %cst_53 = arith.constant 0.000000e+00 : f32
    %144 = vector.broadcast %cst_53 : f32 to vector<8x1xf32>
    %c0_54 = arith.constant 0 : index
    %c0_55 = arith.constant 0 : index
    %c0_56 = arith.constant 0 : index
    %145 = vector.load %arg8[%c0_54, %c0_55, %c0_56] : memref<3x8x16xf32, #tpu.memory_space<vmem>>, vector<1x8x16xf32>
    %146 = vector.shape_cast %145 : vector<1x8x16xf32> to vector<8x16xf32>
    %cst_57 = arith.constant dense<0.000000e+00> : vector<8x16xf32>
    %147 = tpu.matmul %142, %146, %cst_57 {dimension_numbers = #tpu.dot_dimension_numbers<[1], [0], [0], [1], [0, 0, 1, 1], [], []>} : vector<8x8xf32>, vector<8x16xf32>, vector<8x16xf32> -> vector<8x16xf32>
    %cst_58 = arith.constant dense<0.000000e+00> : vector<16xf32>
    %148 = vector.multi_reduction <add>, %147, %cst_58 [0] : vector<8x16xf32> to vector<16xf32>
    %149 = vector.shape_cast %148 : vector<16xf32> to vector<1x16xf32>
    %150 = arith.mulf %147, %147 : vector<8x16xf32>
    %cst_59 = arith.constant dense<0.000000e+00> : vector<16xf32>
    %151 = vector.multi_reduction <add>, %150, %cst_59 [0] : vector<8x16xf32> to vector<16xf32>
    %152 = vector.shape_cast %151 : vector<16xf32> to vector<1x16xf32>
    %cst_60 = arith.constant 1.250000e-01 : f32
    %153 = vector.broadcast %cst_60 : f32 to vector<1x16xf32>
    %154 = arith.mulf %149, %153 : vector<1x16xf32>
    %cst_61 = arith.constant 1.250000e-01 : f32
    %155 = vector.broadcast %cst_61 : f32 to vector<1x16xf32>
    %156 = arith.mulf %152, %155 : vector<1x16xf32>
    %157 = arith.mulf %154, %154 : vector<1x16xf32>
    %158 = arith.subf %156, %157 : vector<1x16xf32>
    %cst_62 = arith.constant 0.000000e+00 : f32
    %159 = vector.broadcast %cst_62 : f32 to vector<1x16xf32>
    %160 = arith.maximumf %158, %159 : vector<1x16xf32>
    %161 = vector.broadcast %154 : vector<1x16xf32> to vector<8x16xf32>
    %162 = arith.subf %147, %161 : vector<8x16xf32>
    %cst_63 = arith.constant 9.99999974E-6 : f32
    %163 = vector.broadcast %cst_63 : f32 to vector<1x16xf32>
    %164 = arith.addf %160, %163 : vector<1x16xf32>
    %165 = math.rsqrt %164 : vector<1x16xf32>
    %166 = vector.broadcast %165 : vector<1x16xf32> to vector<8x16xf32>
    %167 = arith.mulf %162, %166 : vector<8x16xf32>
    %168 = arith.mulf %167, %143 : vector<8x16xf32>
    %169 = vector.shape_cast %168 : vector<8x16xf32> to vector<8x16x1xf32>
    %170 = vector.shape_cast %168 : vector<8x16xf32> to vector<8x1x16xf32>
    %171 = vector.broadcast %170 : vector<8x1x16xf32> to vector<8x16x16xf32>
    %172 = vector.broadcast %169 : vector<8x16x1xf32> to vector<8x16x16xf32>
    %173 = arith.cmpf oge, %171, %172 : vector<8x16x16xf32>
    %174 = arith.extui %173 : vector<8x16x16xi1> to vector<8x16x16xi32>
    %175 = arith.sitofp %174 : vector<8x16x16xi32> to vector<8x16x16xf32>
    %cst_64 = arith.constant dense<0.000000e+00> : vector<8x16xf32>
    %176 = vector.multi_reduction <add>, %175, %cst_64 [2] : vector<8x16x16xf32> to vector<8x16xf32>
    %cst_65 = arith.constant 0.000000e+00 : f32
    %177 = vector.shape_cast %170 : vector<8x1x16xf32> to vector<8x1x16xf32>
    %178 = vector.broadcast %177 : vector<8x1x16xf32> to vector<8x16x16xf32>
    %179 = vector.broadcast %cst_65 : f32 to vector<8x16x16xf32>
    %180 = arith.select %173, %178, %179 : vector<8x16x16xi1>, vector<8x16x16xf32>
    %cst_66 = arith.constant dense<0.000000e+00> : vector<8x16xf32>
    %181 = vector.multi_reduction <add>, %180, %cst_66 [2] : vector<8x16x16xf32> to vector<8x16xf32>
    %182 = arith.mulf %176, %168 : vector<8x16xf32>
    %cst_67 = arith.constant 1.000000e+00 : f32
    %183 = vector.broadcast %cst_67 : f32 to vector<8x16xf32>
    %184 = arith.addf %183, %182 : vector<8x16xf32>
    %185 = arith.cmpf ogt, %184, %181 : vector<8x16xf32>
    %186 = arith.extui %185 : vector<8x16xi1> to vector<8x16xi32>
    %187 = arith.sitofp %186 : vector<8x16xi32> to vector<8x16xf32>
    %cst_68 = arith.constant dense<0.000000e+00> : vector<8xf32>
    %188 = vector.multi_reduction <add>, %187, %cst_68 [1] : vector<8x16xf32> to vector<8xf32>
    %189 = vector.shape_cast %188 : vector<8xf32> to vector<8x1xf32>
    %cst_69 = arith.constant 0.000000e+00 : f32
    %190 = vector.broadcast %cst_69 : f32 to vector<8x16xf32>
    %191 = arith.select %185, %168, %190 : vector<8x16xi1>, vector<8x16xf32>
    %cst_70 = arith.constant dense<0.000000e+00> : vector<8xf32>
    %192 = vector.multi_reduction <add>, %191, %cst_70 [1] : vector<8x16xf32> to vector<8xf32>
    %193 = vector.shape_cast %192 : vector<8xf32> to vector<8x1xf32>
    %cst_71 = arith.constant 1.000000e+00 : f32
    %194 = vector.broadcast %cst_71 : f32 to vector<8x1xf32>
    %195 = arith.subf %193, %194 : vector<8x1xf32>
    %196 = tpu.reciprocal %189 {approx = true} : vector<8x1xf32> -> vector<8x1xf32>
    %197 = arith.mulf %195, %196 : vector<8x1xf32>
    %198 = vector.broadcast %197 : vector<8x1xf32> to vector<8x16xf32>
    %199 = arith.subf %168, %198 : vector<8x16xf32>
    %cst_72 = arith.constant 0.000000e+00 : f32
    %200 = vector.broadcast %cst_72 : f32 to vector<8x16xf32>
    %201 = arith.maximumf %199, %200 : vector<8x16xf32>
    %cst_73 = arith.constant 1.300000e+00 : f32
    %202 = vector.broadcast %cst_73 : f32 to vector<8x16xf32>
    %203 = arith.subf %202, %201 : vector<8x16xf32>
    %204 = arith.mulf %203, %143 : vector<8x16xf32>
    %cst_74 = arith.constant 1.000000e-15 : f32
    %205 = vector.broadcast %cst_74 : f32 to vector<8x16xf32>
    %206 = arith.addf %201, %205 : vector<8x16xf32>
    %207 = math.log %206 : vector<8x16xf32>
    %208 = arith.mulf %201, %207 : vector<8x16xf32>
    %cst_75 = arith.constant dense<0.000000e+00> : vector<8xf32>
    %209 = vector.multi_reduction <add>, %208, %cst_75 [1] : vector<8x16xf32> to vector<8xf32>
    %210 = vector.shape_cast %209 : vector<8xf32> to vector<8x1xf32>
    %211 = arith.addf %144, %210 : vector<8x1xf32>
    %c0_76 = arith.constant 0 : index
    %c0_77 = arith.constant 0 : index
    %c0_78 = arith.constant 0 : index
    %212 = vector.load %arg7[%c0_76, %c0_77, %c0_78] : memref<6x16x32xf32, #tpu.memory_space<vmem>>, vector<1x16x32xf32>
    %213 = vector.shape_cast %212 : vector<1x16x32xf32> to vector<16x32xf32>
    %c1_79 = arith.constant 1 : index
    %c0_80 = arith.constant 0 : index
    %c0_81 = arith.constant 0 : index
    %214 = vector.load %arg7[%c1_79, %c0_80, %c0_81] : memref<6x16x32xf32, #tpu.memory_space<vmem>>, vector<1x16x32xf32>
    %215 = vector.shape_cast %214 : vector<1x16x32xf32> to vector<16x32xf32>
    %216 = arith.mulf %201, %8 : vector<8x16xf32>
    %cst_82 = arith.constant dense<0.000000e+00> : vector<8x32xf32>
    %217 = tpu.matmul %216, %0, %cst_82 {dimension_numbers = #tpu.dot_dimension_numbers<[1], [0], [0], [1], [0, 0, 1, 1], [], []>} : vector<8x16xf32>, vector<16x32xf32>, vector<8x32xf32> -> vector<8x32xf32>
    %cst_83 = arith.constant dense<0.000000e+00> : vector<32xf32>
    %218 = vector.multi_reduction <add>, %217, %cst_83 [0] : vector<8x32xf32> to vector<32xf32>
    %219 = vector.shape_cast %218 : vector<32xf32> to vector<1x32xf32>
    %220 = arith.mulf %217, %217 : vector<8x32xf32>
    %cst_84 = arith.constant dense<0.000000e+00> : vector<32xf32>
    %221 = vector.multi_reduction <add>, %220, %cst_84 [0] : vector<8x32xf32> to vector<32xf32>
    %222 = vector.shape_cast %221 : vector<32xf32> to vector<1x32xf32>
    %cst_85 = arith.constant 1.250000e-01 : f32
    %223 = vector.broadcast %cst_85 : f32 to vector<1x32xf32>
    %224 = arith.mulf %219, %223 : vector<1x32xf32>
    %cst_86 = arith.constant 1.250000e-01 : f32
    %225 = vector.broadcast %cst_86 : f32 to vector<1x32xf32>
    %226 = arith.mulf %222, %225 : vector<1x32xf32>
    %227 = arith.mulf %224, %224 : vector<1x32xf32>
    %228 = arith.subf %226, %227 : vector<1x32xf32>
    %cst_87 = arith.constant 0.000000e+00 : f32
    %229 = vector.broadcast %cst_87 : f32 to vector<1x32xf32>
    %230 = arith.maximumf %228, %229 : vector<1x32xf32>
    %231 = vector.broadcast %224 : vector<1x32xf32> to vector<8x32xf32>
    %232 = arith.subf %217, %231 : vector<8x32xf32>
    %cst_88 = arith.constant 9.99999974E-6 : f32
    %233 = vector.broadcast %cst_88 : f32 to vector<1x32xf32>
    %234 = arith.addf %230, %233 : vector<1x32xf32>
    %235 = math.rsqrt %234 : vector<1x32xf32>
    %236 = vector.broadcast %235 : vector<1x32xf32> to vector<8x32xf32>
    %237 = arith.mulf %232, %236 : vector<8x32xf32>
    %238 = vector.extract_strided_slice %237 {offsets = [0, 0], sizes = [8, 16], strides = [1, 1]} : vector<8x32xf32> to vector<8x16xf32>
    %239 = vector.extract_strided_slice %237 {offsets = [0, 16], sizes = [8, 16], strides = [1, 1]} : vector<8x32xf32> to vector<8x16xf32>
    %cst_89 = arith.constant 0.000000e+00 : f32
    %240 = vector.broadcast %cst_89 : f32 to vector<8x16xf32>
    %241 = arith.subf %240, %239 : vector<8x16xf32>
    %242 = math.exp %241 : vector<8x16xf32>
    %cst_90 = arith.constant 1.000000e+00 : f32
    %243 = vector.broadcast %cst_90 : f32 to vector<8x16xf32>
    %244 = arith.addf %243, %242 : vector<8x16xf32>
    %245 = tpu.reciprocal %244 {approx = true} : vector<8x16xf32> -> vector<8x16xf32>
    %246 = arith.mulf %238, %245 : vector<8x16xf32>
    %cst_91 = arith.constant dense<0.000000e+00> : vector<8x32xf32>
    %247 = tpu.matmul %246, %1, %cst_91 {dimension_numbers = #tpu.dot_dimension_numbers<[1], [0], [0], [1], [0, 0, 1, 1], [], []>} : vector<8x16xf32>, vector<16x32xf32>, vector<8x32xf32> -> vector<8x32xf32>
    %cst_92 = arith.constant dense<0.000000e+00> : vector<32xf32>
    %248 = vector.multi_reduction <add>, %247, %cst_92 [0] : vector<8x32xf32> to vector<32xf32>
    %249 = vector.shape_cast %248 : vector<32xf32> to vector<1x32xf32>
    %250 = arith.mulf %247, %247 : vector<8x32xf32>
    %cst_93 = arith.constant dense<0.000000e+00> : vector<32xf32>
    %251 = vector.multi_reduction <add>, %250, %cst_93 [0] : vector<8x32xf32> to vector<32xf32>
    %252 = vector.shape_cast %251 : vector<32xf32> to vector<1x32xf32>
    %cst_94 = arith.constant 1.250000e-01 : f32
    %253 = vector.broadcast %cst_94 : f32 to vector<1x32xf32>
    %254 = arith.mulf %249, %253 : vector<1x32xf32>
    %cst_95 = arith.constant 1.250000e-01 : f32
    %255 = vector.broadcast %cst_95 : f32 to vector<1x32xf32>
    %256 = arith.mulf %252, %255 : vector<1x32xf32>
    %257 = arith.mulf %254, %254 : vector<1x32xf32>
    %258 = arith.subf %256, %257 : vector<1x32xf32>
    %cst_96 = arith.constant 0.000000e+00 : f32
    %259 = vector.broadcast %cst_96 : f32 to vector<1x32xf32>
    %260 = arith.maximumf %258, %259 : vector<1x32xf32>
    %261 = vector.broadcast %254 : vector<1x32xf32> to vector<8x32xf32>
    %262 = arith.subf %247, %261 : vector<8x32xf32>
    %cst_97 = arith.constant 9.99999974E-6 : f32
    %263 = vector.broadcast %cst_97 : f32 to vector<1x32xf32>
    %264 = arith.addf %260, %263 : vector<1x32xf32>
    %265 = math.rsqrt %264 : vector<1x32xf32>
    %266 = vector.broadcast %265 : vector<1x32xf32> to vector<8x32xf32>
    %267 = arith.mulf %262, %266 : vector<8x32xf32>
    %268 = vector.extract_strided_slice %267 {offsets = [0, 0], sizes = [8, 16], strides = [1, 1]} : vector<8x32xf32> to vector<8x16xf32>
    %269 = vector.extract_strided_slice %267 {offsets = [0, 16], sizes = [8, 16], strides = [1, 1]} : vector<8x32xf32> to vector<8x16xf32>
    %cst_98 = arith.constant 0.000000e+00 : f32
    %270 = vector.broadcast %cst_98 : f32 to vector<8x16xf32>
    %271 = arith.subf %270, %269 : vector<8x16xf32>
    %272 = math.exp %271 : vector<8x16xf32>
    %cst_99 = arith.constant 1.000000e+00 : f32
    %273 = vector.broadcast %cst_99 : f32 to vector<8x16xf32>
    %274 = arith.addf %273, %272 : vector<8x16xf32>
    %275 = tpu.reciprocal %274 {approx = true} : vector<8x16xf32> -> vector<8x16xf32>
    %276 = arith.mulf %268, %275 : vector<8x16xf32>
    %277 = arith.addf %246, %276 : vector<8x16xf32>
    %cst_100 = arith.constant 0.707106769 : f32
    %278 = vector.broadcast %cst_100 : f32 to vector<8x16xf32>
    %279 = arith.mulf %277, %278 : vector<8x16xf32>
    %cst_101 = arith.constant dense<0.000000e+00> : vector<8x32xf32>
    %280 = tpu.matmul %279, %213, %cst_101 {dimension_numbers = #tpu.dot_dimension_numbers<[1], [0], [0], [1], [0, 0, 1, 1], [], []>} : vector<8x16xf32>, vector<16x32xf32>, vector<8x32xf32> -> vector<8x32xf32>
    %cst_102 = arith.constant dense<0.000000e+00> : vector<32xf32>
    %281 = vector.multi_reduction <add>, %280, %cst_102 [0] : vector<8x32xf32> to vector<32xf32>
    %282 = vector.shape_cast %281 : vector<32xf32> to vector<1x32xf32>
    %283 = arith.mulf %280, %280 : vector<8x32xf32>
    %cst_103 = arith.constant dense<0.000000e+00> : vector<32xf32>
    %284 = vector.multi_reduction <add>, %283, %cst_103 [0] : vector<8x32xf32> to vector<32xf32>
    %285 = vector.shape_cast %284 : vector<32xf32> to vector<1x32xf32>
    %cst_104 = arith.constant 1.250000e-01 : f32
    %286 = vector.broadcast %cst_104 : f32 to vector<1x32xf32>
    %287 = arith.mulf %282, %286 : vector<1x32xf32>
    %cst_105 = arith.constant 1.250000e-01 : f32
    %288 = vector.broadcast %cst_105 : f32 to vector<1x32xf32>
    %289 = arith.mulf %285, %288 : vector<1x32xf32>
    %290 = arith.mulf %287, %287 : vector<1x32xf32>
    %291 = arith.subf %289, %290 : vector<1x32xf32>
    %cst_106 = arith.constant 0.000000e+00 : f32
    %292 = vector.broadcast %cst_106 : f32 to vector<1x32xf32>
    %293 = arith.maximumf %291, %292 : vector<1x32xf32>
    %294 = vector.broadcast %287 : vector<1x32xf32> to vector<8x32xf32>
    %295 = arith.subf %280, %294 : vector<8x32xf32>
    %cst_107 = arith.constant 9.99999974E-6 : f32
    %296 = vector.broadcast %cst_107 : f32 to vector<1x32xf32>
    %297 = arith.addf %293, %296 : vector<1x32xf32>
    %298 = math.rsqrt %297 : vector<1x32xf32>
    %299 = vector.broadcast %298 : vector<1x32xf32> to vector<8x32xf32>
    %300 = arith.mulf %295, %299 : vector<8x32xf32>
    %301 = vector.extract_strided_slice %300 {offsets = [0, 0], sizes = [8, 16], strides = [1, 1]} : vector<8x32xf32> to vector<8x16xf32>
    %302 = vector.extract_strided_slice %300 {offsets = [0, 16], sizes = [8, 16], strides = [1, 1]} : vector<8x32xf32> to vector<8x16xf32>
    %cst_108 = arith.constant 0.000000e+00 : f32
    %303 = vector.broadcast %cst_108 : f32 to vector<8x16xf32>
    %304 = arith.subf %303, %302 : vector<8x16xf32>
    %305 = math.exp %304 : vector<8x16xf32>
    %cst_109 = arith.constant 1.000000e+00 : f32
    %306 = vector.broadcast %cst_109 : f32 to vector<8x16xf32>
    %307 = arith.addf %306, %305 : vector<8x16xf32>
    %308 = tpu.reciprocal %307 {approx = true} : vector<8x16xf32> -> vector<8x16xf32>
    %309 = arith.mulf %301, %308 : vector<8x16xf32>
    %310 = arith.addf %279, %309 : vector<8x16xf32>
    %cst_110 = arith.constant 0.707106769 : f32
    %311 = vector.broadcast %cst_110 : f32 to vector<8x16xf32>
    %312 = arith.mulf %310, %311 : vector<8x16xf32>
    %cst_111 = arith.constant dense<0.000000e+00> : vector<8x32xf32>
    %313 = tpu.matmul %312, %215, %cst_111 {dimension_numbers = #tpu.dot_dimension_numbers<[1], [0], [0], [1], [0, 0, 1, 1], [], []>} : vector<8x16xf32>, vector<16x32xf32>, vector<8x32xf32> -> vector<8x32xf32>
    %cst_112 = arith.constant dense<0.000000e+00> : vector<32xf32>
    %314 = vector.multi_reduction <add>, %313, %cst_112 [0] : vector<8x32xf32> to vector<32xf32>
    %315 = vector.shape_cast %314 : vector<32xf32> to vector<1x32xf32>
    %316 = arith.mulf %313, %313 : vector<8x32xf32>
    %cst_113 = arith.constant dense<0.000000e+00> : vector<32xf32>
    %317 = vector.multi_reduction <add>, %316, %cst_113 [0] : vector<8x32xf32> to vector<32xf32>
    %318 = vector.shape_cast %317 : vector<32xf32> to vector<1x32xf32>
    %cst_114 = arith.constant 1.250000e-01 : f32
    %319 = vector.broadcast %cst_114 : f32 to vector<1x32xf32>
    %320 = arith.mulf %315, %319 : vector<1x32xf32>
    %cst_115 = arith.constant 1.250000e-01 : f32
    %321 = vector.broadcast %cst_115 : f32 to vector<1x32xf32>
    %322 = arith.mulf %318, %321 : vector<1x32xf32>
    %323 = arith.mulf %320, %320 : vector<1x32xf32>
    %324 = arith.subf %322, %323 : vector<1x32xf32>
    %cst_116 = arith.constant 0.000000e+00 : f32
    %325 = vector.broadcast %cst_116 : f32 to vector<1x32xf32>
    %326 = arith.maximumf %324, %325 : vector<1x32xf32>
    %327 = vector.broadcast %320 : vector<1x32xf32> to vector<8x32xf32>
    %328 = arith.subf %313, %327 : vector<8x32xf32>
    %cst_117 = arith.constant 9.99999974E-6 : f32
    %329 = vector.broadcast %cst_117 : f32 to vector<1x32xf32>
    %330 = arith.addf %326, %329 : vector<1x32xf32>
    %331 = math.rsqrt %330 : vector<1x32xf32>
    %332 = vector.broadcast %331 : vector<1x32xf32> to vector<8x32xf32>
    %333 = arith.mulf %328, %332 : vector<8x32xf32>
    %334 = vector.extract_strided_slice %333 {offsets = [0, 0], sizes = [8, 16], strides = [1, 1]} : vector<8x32xf32> to vector<8x16xf32>
    %335 = vector.extract_strided_slice %333 {offsets = [0, 16], sizes = [8, 16], strides = [1, 1]} : vector<8x32xf32> to vector<8x16xf32>
    %cst_118 = arith.constant 0.000000e+00 : f32
    %336 = vector.broadcast %cst_118 : f32 to vector<8x16xf32>
    %337 = arith.subf %336, %335 : vector<8x16xf32>
    %338 = math.exp %337 : vector<8x16xf32>
    %cst_119 = arith.constant 1.000000e+00 : f32
    %339 = vector.broadcast %cst_119 : f32 to vector<8x16xf32>
    %340 = arith.addf %339, %338 : vector<8x16xf32>
    %341 = tpu.reciprocal %340 {approx = true} : vector<8x16xf32> -> vector<8x16xf32>
    %342 = arith.mulf %334, %341 : vector<8x16xf32>
    %343 = arith.addf %312, %342 : vector<8x16xf32>
    %cst_120 = arith.constant 0.707106769 : f32
    %344 = vector.broadcast %cst_120 : f32 to vector<8x16xf32>
    %345 = arith.mulf %343, %344 : vector<8x16xf32>
    %346 = vector.extract_strided_slice %345 {offsets = [0, 8], sizes = [8, 8], strides = [1, 1]} : vector<8x16xf32> to vector<8x8xf32>
    %347 = vector.extract_strided_slice %345 {offsets = [0, 0], sizes = [8, 8], strides = [1, 1]} : vector<8x16xf32> to vector<8x8xf32>
    %cst_121 = arith.constant 0.000000e+00 : f32
    %348 = vector.broadcast %cst_121 : f32 to vector<8x8xf32>
    %349 = arith.maximumf %347, %348 : vector<8x8xf32>
    %c1_122 = arith.constant 1 : index
    %c0_123 = arith.constant 0 : index
    %c0_124 = arith.constant 0 : index
    %350 = vector.load %arg8[%c1_122, %c0_123, %c0_124] : memref<3x8x16xf32, #tpu.memory_space<vmem>>, vector<1x8x16xf32>
    %351 = vector.shape_cast %350 : vector<1x8x16xf32> to vector<8x16xf32>
    %cst_125 = arith.constant dense<0.000000e+00> : vector<8x16xf32>
    %352 = tpu.matmul %346, %351, %cst_125 {dimension_numbers = #tpu.dot_dimension_numbers<[1], [0], [0], [1], [0, 0, 1, 1], [], []>} : vector<8x8xf32>, vector<8x16xf32>, vector<8x16xf32> -> vector<8x16xf32>
    %cst_126 = arith.constant dense<0.000000e+00> : vector<16xf32>
    %353 = vector.multi_reduction <add>, %352, %cst_126 [0] : vector<8x16xf32> to vector<16xf32>
    %354 = vector.shape_cast %353 : vector<16xf32> to vector<1x16xf32>
    %355 = arith.mulf %352, %352 : vector<8x16xf32>
    %cst_127 = arith.constant dense<0.000000e+00> : vector<16xf32>
    %356 = vector.multi_reduction <add>, %355, %cst_127 [0] : vector<8x16xf32> to vector<16xf32>
    %357 = vector.shape_cast %356 : vector<16xf32> to vector<1x16xf32>
    %cst_128 = arith.constant 1.250000e-01 : f32
    %358 = vector.broadcast %cst_128 : f32 to vector<1x16xf32>
    %359 = arith.mulf %354, %358 : vector<1x16xf32>
    %cst_129 = arith.constant 1.250000e-01 : f32
    %360 = vector.broadcast %cst_129 : f32 to vector<1x16xf32>
    %361 = arith.mulf %357, %360 : vector<1x16xf32>
    %362 = arith.mulf %359, %359 : vector<1x16xf32>
    %363 = arith.subf %361, %362 : vector<1x16xf32>
    %cst_130 = arith.constant 0.000000e+00 : f32
    %364 = vector.broadcast %cst_130 : f32 to vector<1x16xf32>
    %365 = arith.maximumf %363, %364 : vector<1x16xf32>
    %366 = vector.broadcast %359 : vector<1x16xf32> to vector<8x16xf32>
    %367 = arith.subf %352, %366 : vector<8x16xf32>
    %cst_131 = arith.constant 9.99999974E-6 : f32
    %368 = vector.broadcast %cst_131 : f32 to vector<1x16xf32>
    %369 = arith.addf %365, %368 : vector<1x16xf32>
    %370 = math.rsqrt %369 : vector<1x16xf32>
    %371 = vector.broadcast %370 : vector<1x16xf32> to vector<8x16xf32>
    %372 = arith.mulf %367, %371 : vector<8x16xf32>
    %373 = arith.mulf %372, %204 : vector<8x16xf32>
    %374 = vector.shape_cast %373 : vector<8x16xf32> to vector<8x16x1xf32>
    %375 = vector.shape_cast %373 : vector<8x16xf32> to vector<8x1x16xf32>
    %376 = vector.broadcast %375 : vector<8x1x16xf32> to vector<8x16x16xf32>
    %377 = vector.broadcast %374 : vector<8x16x1xf32> to vector<8x16x16xf32>
    %378 = arith.cmpf oge, %376, %377 : vector<8x16x16xf32>
    %379 = arith.extui %378 : vector<8x16x16xi1> to vector<8x16x16xi32>
    %380 = arith.sitofp %379 : vector<8x16x16xi32> to vector<8x16x16xf32>
    %cst_132 = arith.constant dense<0.000000e+00> : vector<8x16xf32>
    %381 = vector.multi_reduction <add>, %380, %cst_132 [2] : vector<8x16x16xf32> to vector<8x16xf32>
    %cst_133 = arith.constant 0.000000e+00 : f32
    %382 = vector.shape_cast %375 : vector<8x1x16xf32> to vector<8x1x16xf32>
    %383 = vector.broadcast %382 : vector<8x1x16xf32> to vector<8x16x16xf32>
    %384 = vector.broadcast %cst_133 : f32 to vector<8x16x16xf32>
    %385 = arith.select %378, %383, %384 : vector<8x16x16xi1>, vector<8x16x16xf32>
    %cst_134 = arith.constant dense<0.000000e+00> : vector<8x16xf32>
    %386 = vector.multi_reduction <add>, %385, %cst_134 [2] : vector<8x16x16xf32> to vector<8x16xf32>
    %387 = arith.mulf %381, %373 : vector<8x16xf32>
    %cst_135 = arith.constant 1.000000e+00 : f32
    %388 = vector.broadcast %cst_135 : f32 to vector<8x16xf32>
    %389 = arith.addf %388, %387 : vector<8x16xf32>
    %390 = arith.cmpf ogt, %389, %386 : vector<8x16xf32>
    %391 = arith.extui %390 : vector<8x16xi1> to vector<8x16xi32>
    %392 = arith.sitofp %391 : vector<8x16xi32> to vector<8x16xf32>
    %cst_136 = arith.constant dense<0.000000e+00> : vector<8xf32>
    %393 = vector.multi_reduction <add>, %392, %cst_136 [1] : vector<8x16xf32> to vector<8xf32>
    %394 = vector.shape_cast %393 : vector<8xf32> to vector<8x1xf32>
    %cst_137 = arith.constant 0.000000e+00 : f32
    %395 = vector.broadcast %cst_137 : f32 to vector<8x16xf32>
    %396 = arith.select %390, %373, %395 : vector<8x16xi1>, vector<8x16xf32>
    %cst_138 = arith.constant dense<0.000000e+00> : vector<8xf32>
    %397 = vector.multi_reduction <add>, %396, %cst_138 [1] : vector<8x16xf32> to vector<8xf32>
    %398 = vector.shape_cast %397 : vector<8xf32> to vector<8x1xf32>
    %cst_139 = arith.constant 1.000000e+00 : f32
    %399 = vector.broadcast %cst_139 : f32 to vector<8x1xf32>
    %400 = arith.subf %398, %399 : vector<8x1xf32>
    %401 = tpu.reciprocal %394 {approx = true} : vector<8x1xf32> -> vector<8x1xf32>
    %402 = arith.mulf %400, %401 : vector<8x1xf32>
    %403 = vector.broadcast %402 : vector<8x1xf32> to vector<8x16xf32>
    %404 = arith.subf %373, %403 : vector<8x16xf32>
    %cst_140 = arith.constant 0.000000e+00 : f32
    %405 = vector.broadcast %cst_140 : f32 to vector<8x16xf32>
    %406 = arith.maximumf %404, %405 : vector<8x16xf32>
    %cst_141 = arith.constant 1.300000e+00 : f32
    %407 = vector.broadcast %cst_141 : f32 to vector<8x16xf32>
    %408 = arith.subf %407, %406 : vector<8x16xf32>
    %409 = arith.mulf %408, %204 : vector<8x16xf32>
    %cst_142 = arith.constant 1.000000e-15 : f32
    %410 = vector.broadcast %cst_142 : f32 to vector<8x16xf32>
    %411 = arith.addf %406, %410 : vector<8x16xf32>
    %412 = math.log %411 : vector<8x16xf32>
    %413 = arith.mulf %406, %412 : vector<8x16xf32>
    %cst_143 = arith.constant dense<0.000000e+00> : vector<8xf32>
    %414 = vector.multi_reduction <add>, %413, %cst_143 [1] : vector<8x16xf32> to vector<8xf32>
    %415 = vector.shape_cast %414 : vector<8xf32> to vector<8x1xf32>
    %416 = arith.addf %211, %415 : vector<8x1xf32>
    %c2 = arith.constant 2 : index
    %c0_144 = arith.constant 0 : index
    %c0_145 = arith.constant 0 : index
    %417 = vector.load %arg7[%c2, %c0_144, %c0_145] : memref<6x16x32xf32, #tpu.memory_space<vmem>>, vector<1x16x32xf32>
    %418 = vector.shape_cast %417 : vector<1x16x32xf32> to vector<16x32xf32>
    %c3 = arith.constant 3 : index
    %c0_146 = arith.constant 0 : index
    %c0_147 = arith.constant 0 : index
    %419 = vector.load %arg7[%c3, %c0_146, %c0_147] : memref<6x16x32xf32, #tpu.memory_space<vmem>>, vector<1x16x32xf32>
    %420 = vector.shape_cast %419 : vector<1x16x32xf32> to vector<16x32xf32>
    %421 = arith.mulf %406, %8 : vector<8x16xf32>
    %cst_148 = arith.constant dense<0.000000e+00> : vector<8x32xf32>
    %422 = tpu.matmul %421, %0, %cst_148 {dimension_numbers = #tpu.dot_dimension_numbers<[1], [0], [0], [1], [0, 0, 1, 1], [], []>} : vector<8x16xf32>, vector<16x32xf32>, vector<8x32xf32> -> vector<8x32xf32>
    %cst_149 = arith.constant dense<0.000000e+00> : vector<32xf32>
    %423 = vector.multi_reduction <add>, %422, %cst_149 [0] : vector<8x32xf32> to vector<32xf32>
    %424 = vector.shape_cast %423 : vector<32xf32> to vector<1x32xf32>
    %425 = arith.mulf %422, %422 : vector<8x32xf32>
    %cst_150 = arith.constant dense<0.000000e+00> : vector<32xf32>
    %426 = vector.multi_reduction <add>, %425, %cst_150 [0] : vector<8x32xf32> to vector<32xf32>
    %427 = vector.shape_cast %426 : vector<32xf32> to vector<1x32xf32>
    %cst_151 = arith.constant 1.250000e-01 : f32
    %428 = vector.broadcast %cst_151 : f32 to vector<1x32xf32>
    %429 = arith.mulf %424, %428 : vector<1x32xf32>
    %cst_152 = arith.constant 1.250000e-01 : f32
    %430 = vector.broadcast %cst_152 : f32 to vector<1x32xf32>
    %431 = arith.mulf %427, %430 : vector<1x32xf32>
    %432 = arith.mulf %429, %429 : vector<1x32xf32>
    %433 = arith.subf %431, %432 : vector<1x32xf32>
    %cst_153 = arith.constant 0.000000e+00 : f32
    %434 = vector.broadcast %cst_153 : f32 to vector<1x32xf32>
    %435 = arith.maximumf %433, %434 : vector<1x32xf32>
    %436 = vector.broadcast %429 : vector<1x32xf32> to vector<8x32xf32>
    %437 = arith.subf %422, %436 : vector<8x32xf32>
    %cst_154 = arith.constant 9.99999974E-6 : f32
    %438 = vector.broadcast %cst_154 : f32 to vector<1x32xf32>
    %439 = arith.addf %435, %438 : vector<1x32xf32>
    %440 = math.rsqrt %439 : vector<1x32xf32>
    %441 = vector.broadcast %440 : vector<1x32xf32> to vector<8x32xf32>
    %442 = arith.mulf %437, %441 : vector<8x32xf32>
    %443 = vector.extract_strided_slice %442 {offsets = [0, 0], sizes = [8, 16], strides = [1, 1]} : vector<8x32xf32> to vector<8x16xf32>
    %444 = vector.extract_strided_slice %442 {offsets = [0, 16], sizes = [8, 16], strides = [1, 1]} : vector<8x32xf32> to vector<8x16xf32>
    %cst_155 = arith.constant 0.000000e+00 : f32
    %445 = vector.broadcast %cst_155 : f32 to vector<8x16xf32>
    %446 = arith.subf %445, %444 : vector<8x16xf32>
    %447 = math.exp %446 : vector<8x16xf32>
    %cst_156 = arith.constant 1.000000e+00 : f32
    %448 = vector.broadcast %cst_156 : f32 to vector<8x16xf32>
    %449 = arith.addf %448, %447 : vector<8x16xf32>
    %450 = tpu.reciprocal %449 {approx = true} : vector<8x16xf32> -> vector<8x16xf32>
    %451 = arith.mulf %443, %450 : vector<8x16xf32>
    %cst_157 = arith.constant dense<0.000000e+00> : vector<8x32xf32>
    %452 = tpu.matmul %451, %1, %cst_157 {dimension_numbers = #tpu.dot_dimension_numbers<[1], [0], [0], [1], [0, 0, 1, 1], [], []>} : vector<8x16xf32>, vector<16x32xf32>, vector<8x32xf32> -> vector<8x32xf32>
    %cst_158 = arith.constant dense<0.000000e+00> : vector<32xf32>
    %453 = vector.multi_reduction <add>, %452, %cst_158 [0] : vector<8x32xf32> to vector<32xf32>
    %454 = vector.shape_cast %453 : vector<32xf32> to vector<1x32xf32>
    %455 = arith.mulf %452, %452 : vector<8x32xf32>
    %cst_159 = arith.constant dense<0.000000e+00> : vector<32xf32>
    %456 = vector.multi_reduction <add>, %455, %cst_159 [0] : vector<8x32xf32> to vector<32xf32>
    %457 = vector.shape_cast %456 : vector<32xf32> to vector<1x32xf32>
    %cst_160 = arith.constant 1.250000e-01 : f32
    %458 = vector.broadcast %cst_160 : f32 to vector<1x32xf32>
    %459 = arith.mulf %454, %458 : vector<1x32xf32>
    %cst_161 = arith.constant 1.250000e-01 : f32
    %460 = vector.broadcast %cst_161 : f32 to vector<1x32xf32>
    %461 = arith.mulf %457, %460 : vector<1x32xf32>
    %462 = arith.mulf %459, %459 : vector<1x32xf32>
    %463 = arith.subf %461, %462 : vector<1x32xf32>
    %cst_162 = arith.constant 0.000000e+00 : f32
    %464 = vector.broadcast %cst_162 : f32 to vector<1x32xf32>
    %465 = arith.maximumf %463, %464 : vector<1x32xf32>
    %466 = vector.broadcast %459 : vector<1x32xf32> to vector<8x32xf32>
    %467 = arith.subf %452, %466 : vector<8x32xf32>
    %cst_163 = arith.constant 9.99999974E-6 : f32
    %468 = vector.broadcast %cst_163 : f32 to vector<1x32xf32>
    %469 = arith.addf %465, %468 : vector<1x32xf32>
    %470 = math.rsqrt %469 : vector<1x32xf32>
    %471 = vector.broadcast %470 : vector<1x32xf32> to vector<8x32xf32>
    %472 = arith.mulf %467, %471 : vector<8x32xf32>
    %473 = vector.extract_strided_slice %472 {offsets = [0, 0], sizes = [8, 16], strides = [1, 1]} : vector<8x32xf32> to vector<8x16xf32>
    %474 = vector.extract_strided_slice %472 {offsets = [0, 16], sizes = [8, 16], strides = [1, 1]} : vector<8x32xf32> to vector<8x16xf32>
    %cst_164 = arith.constant 0.000000e+00 : f32
    %475 = vector.broadcast %cst_164 : f32 to vector<8x16xf32>
    %476 = arith.subf %475, %474 : vector<8x16xf32>
    %477 = math.exp %476 : vector<8x16xf32>
    %cst_165 = arith.constant 1.000000e+00 : f32
    %478 = vector.broadcast %cst_165 : f32 to vector<8x16xf32>
    %479 = arith.addf %478, %477 : vector<8x16xf32>
    %480 = tpu.reciprocal %479 {approx = true} : vector<8x16xf32> -> vector<8x16xf32>
    %481 = arith.mulf %473, %480 : vector<8x16xf32>
    %482 = arith.addf %451, %481 : vector<8x16xf32>
    %cst_166 = arith.constant 0.707106769 : f32
    %483 = vector.broadcast %cst_166 : f32 to vector<8x16xf32>
    %484 = arith.mulf %482, %483 : vector<8x16xf32>
    %cst_167 = arith.constant dense<0.000000e+00> : vector<8x32xf32>
    %485 = tpu.matmul %484, %418, %cst_167 {dimension_numbers = #tpu.dot_dimension_numbers<[1], [0], [0], [1], [0, 0, 1, 1], [], []>} : vector<8x16xf32>, vector<16x32xf32>, vector<8x32xf32> -> vector<8x32xf32>
    %cst_168 = arith.constant dense<0.000000e+00> : vector<32xf32>
    %486 = vector.multi_reduction <add>, %485, %cst_168 [0] : vector<8x32xf32> to vector<32xf32>
    %487 = vector.shape_cast %486 : vector<32xf32> to vector<1x32xf32>
    %488 = arith.mulf %485, %485 : vector<8x32xf32>
    %cst_169 = arith.constant dense<0.000000e+00> : vector<32xf32>
    %489 = vector.multi_reduction <add>, %488, %cst_169 [0] : vector<8x32xf32> to vector<32xf32>
    %490 = vector.shape_cast %489 : vector<32xf32> to vector<1x32xf32>
    %cst_170 = arith.constant 1.250000e-01 : f32
    %491 = vector.broadcast %cst_170 : f32 to vector<1x32xf32>
    %492 = arith.mulf %487, %491 : vector<1x32xf32>
    %cst_171 = arith.constant 1.250000e-01 : f32
    %493 = vector.broadcast %cst_171 : f32 to vector<1x32xf32>
    %494 = arith.mulf %490, %493 : vector<1x32xf32>
    %495 = arith.mulf %492, %492 : vector<1x32xf32>
    %496 = arith.subf %494, %495 : vector<1x32xf32>
    %cst_172 = arith.constant 0.000000e+00 : f32
    %497 = vector.broadcast %cst_172 : f32 to vector<1x32xf32>
    %498 = arith.maximumf %496, %497 : vector<1x32xf32>
    %499 = vector.broadcast %492 : vector<1x32xf32> to vector<8x32xf32>
    %500 = arith.subf %485, %499 : vector<8x32xf32>
    %cst_173 = arith.constant 9.99999974E-6 : f32
    %501 = vector.broadcast %cst_173 : f32 to vector<1x32xf32>
    %502 = arith.addf %498, %501 : vector<1x32xf32>
    %503 = math.rsqrt %502 : vector<1x32xf32>
    %504 = vector.broadcast %503 : vector<1x32xf32> to vector<8x32xf32>
    %505 = arith.mulf %500, %504 : vector<8x32xf32>
    %506 = vector.extract_strided_slice %505 {offsets = [0, 0], sizes = [8, 16], strides = [1, 1]} : vector<8x32xf32> to vector<8x16xf32>
    %507 = vector.extract_strided_slice %505 {offsets = [0, 16], sizes = [8, 16], strides = [1, 1]} : vector<8x32xf32> to vector<8x16xf32>
    %cst_174 = arith.constant 0.000000e+00 : f32
    %508 = vector.broadcast %cst_174 : f32 to vector<8x16xf32>
    %509 = arith.subf %508, %507 : vector<8x16xf32>
    %510 = math.exp %509 : vector<8x16xf32>
    %cst_175 = arith.constant 1.000000e+00 : f32
    %511 = vector.broadcast %cst_175 : f32 to vector<8x16xf32>
    %512 = arith.addf %511, %510 : vector<8x16xf32>
    %513 = tpu.reciprocal %512 {approx = true} : vector<8x16xf32> -> vector<8x16xf32>
    %514 = arith.mulf %506, %513 : vector<8x16xf32>
    %515 = arith.addf %484, %514 : vector<8x16xf32>
    %cst_176 = arith.constant 0.707106769 : f32
    %516 = vector.broadcast %cst_176 : f32 to vector<8x16xf32>
    %517 = arith.mulf %515, %516 : vector<8x16xf32>
    %cst_177 = arith.constant dense<0.000000e+00> : vector<8x32xf32>
    %518 = tpu.matmul %517, %420, %cst_177 {dimension_numbers = #tpu.dot_dimension_numbers<[1], [0], [0], [1], [0, 0, 1, 1], [], []>} : vector<8x16xf32>, vector<16x32xf32>, vector<8x32xf32> -> vector<8x32xf32>
    %cst_178 = arith.constant dense<0.000000e+00> : vector<32xf32>
    %519 = vector.multi_reduction <add>, %518, %cst_178 [0] : vector<8x32xf32> to vector<32xf32>
    %520 = vector.shape_cast %519 : vector<32xf32> to vector<1x32xf32>
    %521 = arith.mulf %518, %518 : vector<8x32xf32>
    %cst_179 = arith.constant dense<0.000000e+00> : vector<32xf32>
    %522 = vector.multi_reduction <add>, %521, %cst_179 [0] : vector<8x32xf32> to vector<32xf32>
    %523 = vector.shape_cast %522 : vector<32xf32> to vector<1x32xf32>
    %cst_180 = arith.constant 1.250000e-01 : f32
    %524 = vector.broadcast %cst_180 : f32 to vector<1x32xf32>
    %525 = arith.mulf %520, %524 : vector<1x32xf32>
    %cst_181 = arith.constant 1.250000e-01 : f32
    %526 = vector.broadcast %cst_181 : f32 to vector<1x32xf32>
    %527 = arith.mulf %523, %526 : vector<1x32xf32>
    %528 = arith.mulf %525, %525 : vector<1x32xf32>
    %529 = arith.subf %527, %528 : vector<1x32xf32>
    %cst_182 = arith.constant 0.000000e+00 : f32
    %530 = vector.broadcast %cst_182 : f32 to vector<1x32xf32>
    %531 = arith.maximumf %529, %530 : vector<1x32xf32>
    %532 = vector.broadcast %525 : vector<1x32xf32> to vector<8x32xf32>
    %533 = arith.subf %518, %532 : vector<8x32xf32>
    %cst_183 = arith.constant 9.99999974E-6 : f32
    %534 = vector.broadcast %cst_183 : f32 to vector<1x32xf32>
    %535 = arith.addf %531, %534 : vector<1x32xf32>
    %536 = math.rsqrt %535 : vector<1x32xf32>
    %537 = vector.broadcast %536 : vector<1x32xf32> to vector<8x32xf32>
    %538 = arith.mulf %533, %537 : vector<8x32xf32>
    %539 = vector.extract_strided_slice %538 {offsets = [0, 0], sizes = [8, 16], strides = [1, 1]} : vector<8x32xf32> to vector<8x16xf32>
    %540 = vector.extract_strided_slice %538 {offsets = [0, 16], sizes = [8, 16], strides = [1, 1]} : vector<8x32xf32> to vector<8x16xf32>
    %cst_184 = arith.constant 0.000000e+00 : f32
    %541 = vector.broadcast %cst_184 : f32 to vector<8x16xf32>
    %542 = arith.subf %541, %540 : vector<8x16xf32>
    %543 = math.exp %542 : vector<8x16xf32>
    %cst_185 = arith.constant 1.000000e+00 : f32
    %544 = vector.broadcast %cst_185 : f32 to vector<8x16xf32>
    %545 = arith.addf %544, %543 : vector<8x16xf32>
    %546 = tpu.reciprocal %545 {approx = true} : vector<8x16xf32> -> vector<8x16xf32>
    %547 = arith.mulf %539, %546 : vector<8x16xf32>
    %548 = arith.addf %517, %547 : vector<8x16xf32>
    %cst_186 = arith.constant 0.707106769 : f32
    %549 = vector.broadcast %cst_186 : f32 to vector<8x16xf32>
    %550 = arith.mulf %548, %549 : vector<8x16xf32>
    %551 = vector.extract_strided_slice %550 {offsets = [0, 8], sizes = [8, 8], strides = [1, 1]} : vector<8x16xf32> to vector<8x8xf32>
    %552 = vector.extract_strided_slice %550 {offsets = [0, 0], sizes = [8, 8], strides = [1, 1]} : vector<8x16xf32> to vector<8x8xf32>
    %cst_187 = arith.constant 0.000000e+00 : f32
    %553 = vector.broadcast %cst_187 : f32 to vector<8x8xf32>
    %554 = arith.maximumf %552, %553 : vector<8x8xf32>
    %c2_188 = arith.constant 2 : index
    %c0_189 = arith.constant 0 : index
    %c0_190 = arith.constant 0 : index
    %555 = vector.load %arg8[%c2_188, %c0_189, %c0_190] : memref<3x8x16xf32, #tpu.memory_space<vmem>>, vector<1x8x16xf32>
    %556 = vector.shape_cast %555 : vector<1x8x16xf32> to vector<8x16xf32>
    %cst_191 = arith.constant dense<0.000000e+00> : vector<8x16xf32>
    %557 = tpu.matmul %551, %556, %cst_191 {dimension_numbers = #tpu.dot_dimension_numbers<[1], [0], [0], [1], [0, 0, 1, 1], [], []>} : vector<8x8xf32>, vector<8x16xf32>, vector<8x16xf32> -> vector<8x16xf32>
    %cst_192 = arith.constant dense<0.000000e+00> : vector<16xf32>
    %558 = vector.multi_reduction <add>, %557, %cst_192 [0] : vector<8x16xf32> to vector<16xf32>
    %559 = vector.shape_cast %558 : vector<16xf32> to vector<1x16xf32>
    %560 = arith.mulf %557, %557 : vector<8x16xf32>
    %cst_193 = arith.constant dense<0.000000e+00> : vector<16xf32>
    %561 = vector.multi_reduction <add>, %560, %cst_193 [0] : vector<8x16xf32> to vector<16xf32>
    %562 = vector.shape_cast %561 : vector<16xf32> to vector<1x16xf32>
    %cst_194 = arith.constant 1.250000e-01 : f32
    %563 = vector.broadcast %cst_194 : f32 to vector<1x16xf32>
    %564 = arith.mulf %559, %563 : vector<1x16xf32>
    %cst_195 = arith.constant 1.250000e-01 : f32
    %565 = vector.broadcast %cst_195 : f32 to vector<1x16xf32>
    %566 = arith.mulf %562, %565 : vector<1x16xf32>
    %567 = arith.mulf %564, %564 : vector<1x16xf32>
    %568 = arith.subf %566, %567 : vector<1x16xf32>
    %cst_196 = arith.constant 0.000000e+00 : f32
    %569 = vector.broadcast %cst_196 : f32 to vector<1x16xf32>
    %570 = arith.maximumf %568, %569 : vector<1x16xf32>
    %571 = vector.broadcast %564 : vector<1x16xf32> to vector<8x16xf32>
    %572 = arith.subf %557, %571 : vector<8x16xf32>
    %cst_197 = arith.constant 9.99999974E-6 : f32
    %573 = vector.broadcast %cst_197 : f32 to vector<1x16xf32>
    %574 = arith.addf %570, %573 : vector<1x16xf32>
    %575 = math.rsqrt %574 : vector<1x16xf32>
    %576 = vector.broadcast %575 : vector<1x16xf32> to vector<8x16xf32>
    %577 = arith.mulf %572, %576 : vector<8x16xf32>
    %578 = arith.mulf %577, %409 : vector<8x16xf32>
    %579 = vector.shape_cast %578 : vector<8x16xf32> to vector<8x16x1xf32>
    %580 = vector.shape_cast %578 : vector<8x16xf32> to vector<8x1x16xf32>
    %581 = vector.broadcast %580 : vector<8x1x16xf32> to vector<8x16x16xf32>
    %582 = vector.broadcast %579 : vector<8x16x1xf32> to vector<8x16x16xf32>
    %583 = arith.cmpf oge, %581, %582 : vector<8x16x16xf32>
    %584 = arith.extui %583 : vector<8x16x16xi1> to vector<8x16x16xi32>
    %585 = arith.sitofp %584 : vector<8x16x16xi32> to vector<8x16x16xf32>
    %cst_198 = arith.constant dense<0.000000e+00> : vector<8x16xf32>
    %586 = vector.multi_reduction <add>, %585, %cst_198 [2] : vector<8x16x16xf32> to vector<8x16xf32>
    %cst_199 = arith.constant 0.000000e+00 : f32
    %587 = vector.shape_cast %580 : vector<8x1x16xf32> to vector<8x1x16xf32>
    %588 = vector.broadcast %587 : vector<8x1x16xf32> to vector<8x16x16xf32>
    %589 = vector.broadcast %cst_199 : f32 to vector<8x16x16xf32>
    %590 = arith.select %583, %588, %589 : vector<8x16x16xi1>, vector<8x16x16xf32>
    %cst_200 = arith.constant dense<0.000000e+00> : vector<8x16xf32>
    %591 = vector.multi_reduction <add>, %590, %cst_200 [2] : vector<8x16x16xf32> to vector<8x16xf32>
    %592 = arith.mulf %586, %578 : vector<8x16xf32>
    %cst_201 = arith.constant 1.000000e+00 : f32
    %593 = vector.broadcast %cst_201 : f32 to vector<8x16xf32>
    %594 = arith.addf %593, %592 : vector<8x16xf32>
    %595 = arith.cmpf ogt, %594, %591 : vector<8x16xf32>
    %596 = arith.extui %595 : vector<8x16xi1> to vector<8x16xi32>
    %597 = arith.sitofp %596 : vector<8x16xi32> to vector<8x16xf32>
    %cst_202 = arith.constant dense<0.000000e+00> : vector<8xf32>
    %598 = vector.multi_reduction <add>, %597, %cst_202 [1] : vector<8x16xf32> to vector<8xf32>
    %599 = vector.shape_cast %598 : vector<8xf32> to vector<8x1xf32>
    %cst_203 = arith.constant 0.000000e+00 : f32
    %600 = vector.broadcast %cst_203 : f32 to vector<8x16xf32>
    %601 = arith.select %595, %578, %600 : vector<8x16xi1>, vector<8x16xf32>
    %cst_204 = arith.constant dense<0.000000e+00> : vector<8xf32>
    %602 = vector.multi_reduction <add>, %601, %cst_204 [1] : vector<8x16xf32> to vector<8xf32>
    %603 = vector.shape_cast %602 : vector<8xf32> to vector<8x1xf32>
    %cst_205 = arith.constant 1.000000e+00 : f32
    %604 = vector.broadcast %cst_205 : f32 to vector<8x1xf32>
    %605 = arith.subf %603, %604 : vector<8x1xf32>
    %606 = tpu.reciprocal %599 {approx = true} : vector<8x1xf32> -> vector<8x1xf32>
    %607 = arith.mulf %605, %606 : vector<8x1xf32>
    %608 = vector.broadcast %607 : vector<8x1xf32> to vector<8x16xf32>
    %609 = arith.subf %578, %608 : vector<8x16xf32>
    %cst_206 = arith.constant 0.000000e+00 : f32
    %610 = vector.broadcast %cst_206 : f32 to vector<8x16xf32>
    %611 = arith.maximumf %609, %610 : vector<8x16xf32>
    %cst_207 = arith.constant 1.000000e-15 : f32
    %612 = vector.broadcast %cst_207 : f32 to vector<8x16xf32>
    %613 = arith.addf %611, %612 : vector<8x16xf32>
    %614 = math.log %613 : vector<8x16xf32>
    %615 = arith.mulf %611, %614 : vector<8x16xf32>
    %cst_208 = arith.constant dense<0.000000e+00> : vector<8xf32>
    %616 = vector.multi_reduction <add>, %615, %cst_208 [1] : vector<8x16xf32> to vector<8xf32>
    %617 = vector.shape_cast %616 : vector<8xf32> to vector<8x1xf32>
    %618 = arith.addf %416, %617 : vector<8x1xf32>
    %c4 = arith.constant 4 : index
    %c0_209 = arith.constant 0 : index
    %c0_210 = arith.constant 0 : index
    %619 = vector.load %arg7[%c4, %c0_209, %c0_210] : memref<6x16x32xf32, #tpu.memory_space<vmem>>, vector<1x16x32xf32>
    %620 = vector.shape_cast %619 : vector<1x16x32xf32> to vector<16x32xf32>
    %c5 = arith.constant 5 : index
    %c0_211 = arith.constant 0 : index
    %c0_212 = arith.constant 0 : index
    %621 = vector.load %arg7[%c5, %c0_211, %c0_212] : memref<6x16x32xf32, #tpu.memory_space<vmem>>, vector<1x16x32xf32>
    %622 = vector.shape_cast %621 : vector<1x16x32xf32> to vector<16x32xf32>
    %623 = arith.mulf %611, %8 : vector<8x16xf32>
    %cst_213 = arith.constant dense<0.000000e+00> : vector<8x32xf32>
    %624 = tpu.matmul %623, %0, %cst_213 {dimension_numbers = #tpu.dot_dimension_numbers<[1], [0], [0], [1], [0, 0, 1, 1], [], []>} : vector<8x16xf32>, vector<16x32xf32>, vector<8x32xf32> -> vector<8x32xf32>
    %cst_214 = arith.constant dense<0.000000e+00> : vector<32xf32>
    %625 = vector.multi_reduction <add>, %624, %cst_214 [0] : vector<8x32xf32> to vector<32xf32>
    %626 = vector.shape_cast %625 : vector<32xf32> to vector<1x32xf32>
    %627 = arith.mulf %624, %624 : vector<8x32xf32>
    %cst_215 = arith.constant dense<0.000000e+00> : vector<32xf32>
    %628 = vector.multi_reduction <add>, %627, %cst_215 [0] : vector<8x32xf32> to vector<32xf32>
    %629 = vector.shape_cast %628 : vector<32xf32> to vector<1x32xf32>
    %cst_216 = arith.constant 1.250000e-01 : f32
    %630 = vector.broadcast %cst_216 : f32 to vector<1x32xf32>
    %631 = arith.mulf %626, %630 : vector<1x32xf32>
    %cst_217 = arith.constant 1.250000e-01 : f32
    %632 = vector.broadcast %cst_217 : f32 to vector<1x32xf32>
    %633 = arith.mulf %629, %632 : vector<1x32xf32>
    %634 = arith.mulf %631, %631 : vector<1x32xf32>
    %635 = arith.subf %633, %634 : vector<1x32xf32>
    %cst_218 = arith.constant 0.000000e+00 : f32
    %636 = vector.broadcast %cst_218 : f32 to vector<1x32xf32>
    %637 = arith.maximumf %635, %636 : vector<1x32xf32>
    %638 = vector.broadcast %631 : vector<1x32xf32> to vector<8x32xf32>
    %639 = arith.subf %624, %638 : vector<8x32xf32>
    %cst_219 = arith.constant 9.99999974E-6 : f32
    %640 = vector.broadcast %cst_219 : f32 to vector<1x32xf32>
    %641 = arith.addf %637, %640 : vector<1x32xf32>
    %642 = math.rsqrt %641 : vector<1x32xf32>
    %643 = vector.broadcast %642 : vector<1x32xf32> to vector<8x32xf32>
    %644 = arith.mulf %639, %643 : vector<8x32xf32>
    %645 = vector.extract_strided_slice %644 {offsets = [0, 0], sizes = [8, 16], strides = [1, 1]} : vector<8x32xf32> to vector<8x16xf32>
    %646 = vector.extract_strided_slice %644 {offsets = [0, 16], sizes = [8, 16], strides = [1, 1]} : vector<8x32xf32> to vector<8x16xf32>
    %cst_220 = arith.constant 0.000000e+00 : f32
    %647 = vector.broadcast %cst_220 : f32 to vector<8x16xf32>
    %648 = arith.subf %647, %646 : vector<8x16xf32>
    %649 = math.exp %648 : vector<8x16xf32>
    %cst_221 = arith.constant 1.000000e+00 : f32
    %650 = vector.broadcast %cst_221 : f32 to vector<8x16xf32>
    %651 = arith.addf %650, %649 : vector<8x16xf32>
    %652 = tpu.reciprocal %651 {approx = true} : vector<8x16xf32> -> vector<8x16xf32>
    %653 = arith.mulf %645, %652 : vector<8x16xf32>
    %cst_222 = arith.constant dense<0.000000e+00> : vector<8x32xf32>
    %654 = tpu.matmul %653, %1, %cst_222 {dimension_numbers = #tpu.dot_dimension_numbers<[1], [0], [0], [1], [0, 0, 1, 1], [], []>} : vector<8x16xf32>, vector<16x32xf32>, vector<8x32xf32> -> vector<8x32xf32>
    %cst_223 = arith.constant dense<0.000000e+00> : vector<32xf32>
    %655 = vector.multi_reduction <add>, %654, %cst_223 [0] : vector<8x32xf32> to vector<32xf32>
    %656 = vector.shape_cast %655 : vector<32xf32> to vector<1x32xf32>
    %657 = arith.mulf %654, %654 : vector<8x32xf32>
    %cst_224 = arith.constant dense<0.000000e+00> : vector<32xf32>
    %658 = vector.multi_reduction <add>, %657, %cst_224 [0] : vector<8x32xf32> to vector<32xf32>
    %659 = vector.shape_cast %658 : vector<32xf32> to vector<1x32xf32>
    %cst_225 = arith.constant 1.250000e-01 : f32
    %660 = vector.broadcast %cst_225 : f32 to vector<1x32xf32>
    %661 = arith.mulf %656, %660 : vector<1x32xf32>
    %cst_226 = arith.constant 1.250000e-01 : f32
    %662 = vector.broadcast %cst_226 : f32 to vector<1x32xf32>
    %663 = arith.mulf %659, %662 : vector<1x32xf32>
    %664 = arith.mulf %661, %661 : vector<1x32xf32>
    %665 = arith.subf %663, %664 : vector<1x32xf32>
    %cst_227 = arith.constant 0.000000e+00 : f32
    %666 = vector.broadcast %cst_227 : f32 to vector<1x32xf32>
    %667 = arith.maximumf %665, %666 : vector<1x32xf32>
    %668 = vector.broadcast %661 : vector<1x32xf32> to vector<8x32xf32>
    %669 = arith.subf %654, %668 : vector<8x32xf32>
    %cst_228 = arith.constant 9.99999974E-6 : f32
    %670 = vector.broadcast %cst_228 : f32 to vector<1x32xf32>
    %671 = arith.addf %667, %670 : vector<1x32xf32>
    %672 = math.rsqrt %671 : vector<1x32xf32>
    %673 = vector.broadcast %672 : vector<1x32xf32> to vector<8x32xf32>
    %674 = arith.mulf %669, %673 : vector<8x32xf32>
    %675 = vector.extract_strided_slice %674 {offsets = [0, 0], sizes = [8, 16], strides = [1, 1]} : vector<8x32xf32> to vector<8x16xf32>
    %676 = vector.extract_strided_slice %674 {offsets = [0, 16], sizes = [8, 16], strides = [1, 1]} : vector<8x32xf32> to vector<8x16xf32>
    %cst_229 = arith.constant 0.000000e+00 : f32
    %677 = vector.broadcast %cst_229 : f32 to vector<8x16xf32>
    %678 = arith.subf %677, %676 : vector<8x16xf32>
    %679 = math.exp %678 : vector<8x16xf32>
    %cst_230 = arith.constant 1.000000e+00 : f32
    %680 = vector.broadcast %cst_230 : f32 to vector<8x16xf32>
    %681 = arith.addf %680, %679 : vector<8x16xf32>
    %682 = tpu.reciprocal %681 {approx = true} : vector<8x16xf32> -> vector<8x16xf32>
    %683 = arith.mulf %675, %682 : vector<8x16xf32>
    %684 = arith.addf %653, %683 : vector<8x16xf32>
    %cst_231 = arith.constant 0.707106769 : f32
    %685 = vector.broadcast %cst_231 : f32 to vector<8x16xf32>
    %686 = arith.mulf %684, %685 : vector<8x16xf32>
    %cst_232 = arith.constant dense<0.000000e+00> : vector<8x32xf32>
    %687 = tpu.matmul %686, %620, %cst_232 {dimension_numbers = #tpu.dot_dimension_numbers<[1], [0], [0], [1], [0, 0, 1, 1], [], []>} : vector<8x16xf32>, vector<16x32xf32>, vector<8x32xf32> -> vector<8x32xf32>
    %cst_233 = arith.constant dense<0.000000e+00> : vector<32xf32>
    %688 = vector.multi_reduction <add>, %687, %cst_233 [0] : vector<8x32xf32> to vector<32xf32>
    %689 = vector.shape_cast %688 : vector<32xf32> to vector<1x32xf32>
    %690 = arith.mulf %687, %687 : vector<8x32xf32>
    %cst_234 = arith.constant dense<0.000000e+00> : vector<32xf32>
    %691 = vector.multi_reduction <add>, %690, %cst_234 [0] : vector<8x32xf32> to vector<32xf32>
    %692 = vector.shape_cast %691 : vector<32xf32> to vector<1x32xf32>
    %cst_235 = arith.constant 1.250000e-01 : f32
    %693 = vector.broadcast %cst_235 : f32 to vector<1x32xf32>
    %694 = arith.mulf %689, %693 : vector<1x32xf32>
    %cst_236 = arith.constant 1.250000e-01 : f32
    %695 = vector.broadcast %cst_236 : f32 to vector<1x32xf32>
    %696 = arith.mulf %692, %695 : vector<1x32xf32>
    %697 = arith.mulf %694, %694 : vector<1x32xf32>
    %698 = arith.subf %696, %697 : vector<1x32xf32>
    %cst_237 = arith.constant 0.000000e+00 : f32
    %699 = vector.broadcast %cst_237 : f32 to vector<1x32xf32>
    %700 = arith.maximumf %698, %699 : vector<1x32xf32>
    %701 = vector.broadcast %694 : vector<1x32xf32> to vector<8x32xf32>
    %702 = arith.subf %687, %701 : vector<8x32xf32>
    %cst_238 = arith.constant 9.99999974E-6 : f32
    %703 = vector.broadcast %cst_238 : f32 to vector<1x32xf32>
    %704 = arith.addf %700, %703 : vector<1x32xf32>
    %705 = math.rsqrt %704 : vector<1x32xf32>
    %706 = vector.broadcast %705 : vector<1x32xf32> to vector<8x32xf32>
    %707 = arith.mulf %702, %706 : vector<8x32xf32>
    %708 = vector.extract_strided_slice %707 {offsets = [0, 0], sizes = [8, 16], strides = [1, 1]} : vector<8x32xf32> to vector<8x16xf32>
    %709 = vector.extract_strided_slice %707 {offsets = [0, 16], sizes = [8, 16], strides = [1, 1]} : vector<8x32xf32> to vector<8x16xf32>
    %cst_239 = arith.constant 0.000000e+00 : f32
    %710 = vector.broadcast %cst_239 : f32 to vector<8x16xf32>
    %711 = arith.subf %710, %709 : vector<8x16xf32>
    %712 = math.exp %711 : vector<8x16xf32>
    %cst_240 = arith.constant 1.000000e+00 : f32
    %713 = vector.broadcast %cst_240 : f32 to vector<8x16xf32>
    %714 = arith.addf %713, %712 : vector<8x16xf32>
    %715 = tpu.reciprocal %714 {approx = true} : vector<8x16xf32> -> vector<8x16xf32>
    %716 = arith.mulf %708, %715 : vector<8x16xf32>
    %717 = arith.addf %686, %716 : vector<8x16xf32>
    %cst_241 = arith.constant 0.707106769 : f32
    %718 = vector.broadcast %cst_241 : f32 to vector<8x16xf32>
    %719 = arith.mulf %717, %718 : vector<8x16xf32>
    %cst_242 = arith.constant dense<0.000000e+00> : vector<8x32xf32>
    %720 = tpu.matmul %719, %622, %cst_242 {dimension_numbers = #tpu.dot_dimension_numbers<[1], [0], [0], [1], [0, 0, 1, 1], [], []>} : vector<8x16xf32>, vector<16x32xf32>, vector<8x32xf32> -> vector<8x32xf32>
    %cst_243 = arith.constant dense<0.000000e+00> : vector<32xf32>
    %721 = vector.multi_reduction <add>, %720, %cst_243 [0] : vector<8x32xf32> to vector<32xf32>
    %722 = vector.shape_cast %721 : vector<32xf32> to vector<1x32xf32>
    %723 = arith.mulf %720, %720 : vector<8x32xf32>
    %cst_244 = arith.constant dense<0.000000e+00> : vector<32xf32>
    %724 = vector.multi_reduction <add>, %723, %cst_244 [0] : vector<8x32xf32> to vector<32xf32>
    %725 = vector.shape_cast %724 : vector<32xf32> to vector<1x32xf32>
    %cst_245 = arith.constant 1.250000e-01 : f32
    %726 = vector.broadcast %cst_245 : f32 to vector<1x32xf32>
    %727 = arith.mulf %722, %726 : vector<1x32xf32>
    %cst_246 = arith.constant 1.250000e-01 : f32
    %728 = vector.broadcast %cst_246 : f32 to vector<1x32xf32>
    %729 = arith.mulf %725, %728 : vector<1x32xf32>
    %730 = arith.mulf %727, %727 : vector<1x32xf32>
    %731 = arith.subf %729, %730 : vector<1x32xf32>
    %cst_247 = arith.constant 0.000000e+00 : f32
    %732 = vector.broadcast %cst_247 : f32 to vector<1x32xf32>
    %733 = arith.maximumf %731, %732 : vector<1x32xf32>
    %734 = vector.broadcast %727 : vector<1x32xf32> to vector<8x32xf32>
    %735 = arith.subf %720, %734 : vector<8x32xf32>
    %cst_248 = arith.constant 9.99999974E-6 : f32
    %736 = vector.broadcast %cst_248 : f32 to vector<1x32xf32>
    %737 = arith.addf %733, %736 : vector<1x32xf32>
    %738 = math.rsqrt %737 : vector<1x32xf32>
    %739 = vector.broadcast %738 : vector<1x32xf32> to vector<8x32xf32>
    %740 = arith.mulf %735, %739 : vector<8x32xf32>
    %741 = vector.extract_strided_slice %740 {offsets = [0, 0], sizes = [8, 16], strides = [1, 1]} : vector<8x32xf32> to vector<8x16xf32>
    %742 = vector.extract_strided_slice %740 {offsets = [0, 16], sizes = [8, 16], strides = [1, 1]} : vector<8x32xf32> to vector<8x16xf32>
    %cst_249 = arith.constant 0.000000e+00 : f32
    %743 = vector.broadcast %cst_249 : f32 to vector<8x16xf32>
    %744 = arith.subf %743, %742 : vector<8x16xf32>
    %745 = math.exp %744 : vector<8x16xf32>
    %cst_250 = arith.constant 1.000000e+00 : f32
    %746 = vector.broadcast %cst_250 : f32 to vector<8x16xf32>
    %747 = arith.addf %746, %745 : vector<8x16xf32>
    %748 = tpu.reciprocal %747 {approx = true} : vector<8x16xf32> -> vector<8x16xf32>
    %749 = arith.mulf %741, %748 : vector<8x16xf32>
    %750 = arith.addf %719, %749 : vector<8x16xf32>
    %cst_251 = arith.constant 0.707106769 : f32
    %751 = vector.broadcast %cst_251 : f32 to vector<8x16xf32>
    %752 = arith.mulf %750, %751 : vector<8x16xf32>
    %753 = vector.extract_strided_slice %752 {offsets = [0, 0], sizes = [8, 8], strides = [1, 1]} : vector<8x16xf32> to vector<8x8xf32>
    %cst_252 = arith.constant 0.000000e+00 : f32
    %754 = vector.broadcast %cst_252 : f32 to vector<8x8xf32>
    %755 = arith.maximumf %753, %754 : vector<8x8xf32>
    %cst_253 = arith.constant 0.000000e+00 : f32
    %756 = vector.broadcast %cst_253 : f32 to vector<8x104xf32>
    %757 = tpu.concatenate %349, %554, %755, %756 in 1 : vector<8x8xf32>, vector<8x8xf32>, vector<8x8xf32>, vector<8x104xf32> -> vector<8x128xf32>
    %c0_254 = arith.constant 0 : index
    %c0_255 = arith.constant 0 : index
    %758 = vector.load %arg9[%c0_254, %c0_255] : memref<8x128xf32, #tpu.memory_space<vmem>>, vector<8x128xf32>
    tpu.vector_store %arg9[%c0_254, %c0_255], %757 {strides = array<i32>} : memref<8x128xf32, #tpu.memory_space<vmem>>, vector<8x128xf32>,
    %c0_256 = arith.constant 0 : index
    %c0_257 = arith.constant 0 : index
    %759 = vector.load %arg10[%c0_256, %c0_257] : memref<8x1xf32, #tpu.memory_space<vmem>>, vector<8x1xf32>
    tpu.vector_store %arg10[%c0_256, %c0_257], %618 {strides = array<i32>} : memref<8x1xf32, #tpu.memory_space<vmem>>, vector<8x1xf32>,
    return
  }
  func.func @transform_0(%arg0: i32) -> (i32, i32) {
    %c0_i32 = arith.constant 0 : i32
    %c0_i32_0 = arith.constant 0 : i32
    return %arg0, %c0_i32 : i32, i32
  }
  func.func @transform_1(%arg0: i32) -> (i32, i32) {
    %c0_i32 = arith.constant 0 : i32
    %c0_i32_0 = arith.constant 0 : i32
    %c0_i32_1 = arith.constant 0 : i32
    return %c0_i32, %c0_i32_0 : i32, i32
  }
  func.func @transform_2(%arg0: i32) -> (i32, i32) {
    %c0_i32 = arith.constant 0 : i32
    %c0_i32_0 = arith.constant 0 : i32
    %c0_i32_1 = arith.constant 0 : i32
    return %c0_i32, %c0_i32_0 : i32, i32
  }
  func.func @transform_3(%arg0: i32) -> (i32, i32) {
    %c0_i32 = arith.constant 0 : i32
    %c0_i32_0 = arith.constant 0 : i32
    %c0_i32_1 = arith.constant 0 : i32
    return %c0_i32, %c0_i32_0 : i32, i32
  }
  func.func @transform_4(%arg0: i32) -> (i32, i32) {
    %c0_i32 = arith.constant 0 : i32
    %c0_i32_0 = arith.constant 0 : i32
    %c0_i32_1 = arith.constant 0 : i32
    return %c0_i32, %c0_i32_0 : i32, i32
  }
  func.func @transform_5(%arg0: i32) -> (i32, i32, i32) {
    %c0_i32 = arith.constant 0 : i32
    %c0_i32_0 = arith.constant 0 : i32
    %c0_i32_1 = arith.constant 0 : i32
    %c0_i32_2 = arith.constant 0 : i32
    return %c0_i32, %c0_i32_0, %c0_i32_1 : i32, i32, i32
  }
  func.func @transform_6(%arg0: i32) -> (i32, i32, i32) {
    %c0_i32 = arith.constant 0 : i32
    %c0_i32_0 = arith.constant 0 : i32
    %c0_i32_1 = arith.constant 0 : i32
    %c0_i32_2 = arith.constant 0 : i32
    return %c0_i32, %c0_i32_0, %c0_i32_1 : i32, i32, i32
  }
  func.func @transform_7(%arg0: i32) -> (i32, i32, i32) {
    %c0_i32 = arith.constant 0 : i32
    %c0_i32_0 = arith.constant 0 : i32
    %c0_i32_1 = arith.constant 0 : i32
    %c0_i32_2 = arith.constant 0 : i32
    return %c0_i32, %c0_i32_0, %c0_i32_1 : i32, i32, i32
  }
  func.func @transform_8(%arg0: i32) -> (i32, i32) {
    %c0_i32 = arith.constant 0 : i32
    %c0_i32_0 = arith.constant 0 : i32
    return %arg0, %c0_i32 : i32, i32
  }
  func.func @transform_9(%arg0: i32) -> (i32, i32) {
    %c0_i32 = arith.constant 0 : i32
    %c0_i32_0 = arith.constant 0 : i32
    return %arg0, %c0_i32 : i32, i32
  }
}

</mosaic_0001>

<llo_original>
// kernel: tabnet_encoder_forward.1
$region0: #{tabnet_encoder_forward.1}
  #allocation0 [shape = 'u32[]', space=smem, size = 0x4, offset = 0x4, fixed_abs, tag = 'smem constant byte address 0x4 - core index']
  #allocation1 [shape = 'u32[144,128]{1,0:T(1,128)}', space=vmem, size = 0x12000, scoped, tag = 'internal scratch']
  %s0 = inlined_call_operand.vmem [shape: f32[8,16], index: 0, kind: input, shape index: {}]
  %s1 = inlined_call_operand.vmem [shape: f32[1,16], index: 1, kind: input, shape index: {}]
  %s2 = inlined_call_operand.vmem [shape: f32[1,16], index: 2, kind: input, shape index: {}]
  %s3 = inlined_call_operand.vmem [shape: f32[16,32], index: 3, kind: input, shape index: {}]
  %s4 = inlined_call_operand.vmem [shape: f32[16,32], index: 4, kind: input, shape index: {}]
  %s5 = inlined_call_operand.vmem [shape: f32[2,16,32], index: 5, kind: input, shape index: {}]
  %s6 = inlined_call_operand.vmem [shape: f32[6,16,32], index: 6, kind: input, shape index: {}]
  %s7 = inlined_call_operand.vmem [shape: f32[3,8,16], index: 7, kind: input, shape index: {}]
  %s8 = inlined_call_operand.vmem [shape: f32[8,128], index: 8, kind: output, shape index: {0}]
  %s9 = inlined_call_operand.vmem [shape: f32[8,1], index: 9, kind: output, shape index: {1}]
  %10 = xla_tuple %s8, %s9
  %s11 = sld [smem:[#allocation0]]
  $region50: #{tabnet_encoder_forward.1} parent=0
    _
  %s13 = ssub.s32 1, %s11
  %s14 = scalar_select 0, %s13, %s11
  // Predicated region
  $region2: #{tabnet_encoder_forward.1} parent=0 // pred_check
    _
  $region3: #{tabnet_encoder_forward.1} parent=0 // pred_check_branch
    %16 = sbr.rel (0) target = $region5
  $region4: #{tabnet_encoder_forward.1} parent=0 // pred_region
    _
  $region5: #{tabnet_encoder_forward.1} parent=0 // pred_fallthru
    _
  // Predicated region
  $region6: #{tabnet_encoder_forward.1} parent=0 // pred_check
    _
  $region7: #{tabnet_encoder_forward.1} parent=0 // pred_check_branch
    %18 = sbr.rel (0) target = $region9
  $region8: #{tabnet_encoder_forward.1} parent=0 // pred_region
    _
  $region9: #{tabnet_encoder_forward.1} parent=0 // pred_fallthru
    _
  // Predicated region
  $region10: #{tabnet_encoder_forward.1} parent=0 // pred_check
    _
  $region11: #{tabnet_encoder_forward.1} parent=0 // pred_check_branch
    %20 = sbr.rel (0) target = $region13
  $region12: #{tabnet_encoder_forward.1} parent=0 // pred_region
    _
  $region13: #{tabnet_encoder_forward.1} parent=0 // pred_fallthru
    _
  // Predicated region
  $region14: #{tabnet_encoder_forward.1} parent=0 // pred_check
    _
  $region15: #{tabnet_encoder_forward.1} parent=0 // pred_check_branch
    %22 = sbr.rel (0) target = $region17
  $region16: #{tabnet_encoder_forward.1} parent=0 // pred_region
    _
  $region17: #{tabnet_encoder_forward.1} parent=0 // pred_fallthru
    _
  // Predicated region
  $region18: #{tabnet_encoder_forward.1} parent=0 // pred_check
    _
  $region19: #{tabnet_encoder_forward.1} parent=0 // pred_check_branch
    %24 = sbr.rel (0) target = $region21
  $region20: #{tabnet_encoder_forward.1} parent=0 // pred_region
    _
  $region21: #{tabnet_encoder_forward.1} parent=0 // pred_fallthru
    _
  // Predicated region
  $region22: #{tabnet_encoder_forward.1} parent=0 // pred_check
    _
  $region23: #{tabnet_encoder_forward.1} parent=0 // pred_check_branch
    %26 = sbr.rel (0) target = $region25
  $region24: #{tabnet_encoder_forward.1} parent=0 // pred_region
    _
  $region25: #{tabnet_encoder_forward.1} parent=0 // pred_fallthru
    _
  // Predicated region
  $region26: #{tabnet_encoder_forward.1} parent=0 // pred_check
    _
  $region27: #{tabnet_encoder_forward.1} parent=0 // pred_check_branch
    %28 = sbr.rel (0) target = $region29
  $region28: #{tabnet_encoder_forward.1} parent=0 // pred_region
    _
  $region29: #{tabnet_encoder_forward.1} parent=0 // pred_fallthru
    _
  // Predicated region
  $region30: #{tabnet_encoder_forward.1} parent=0 // pred_check
    _
  $region31: #{tabnet_encoder_forward.1} parent=0 // pred_check_branch
    %30 = sbr.rel (0) target = $region33
  $region32: #{tabnet_encoder_forward.1} parent=0 // pred_region
    _
  $region33: #{tabnet_encoder_forward.1} parent=0 // pred_fallthru
    _
  %v31 = vld [vmem:[%s3] sm:$0xff]
  %v32 = vld [vmem:[%s3 + $0x8] sm:$0xff]
  %v33 = vld [vmem:[%s4] sm:$0xff]
  %v34 = vld [vmem:[%s4 + $0x8] sm:$0xff]
  %v35 = vld [vmem:[%s0] sm:$0xff]
  %v36 = vld [vmem:[%s1] sm:$0x1]
  %v38 = vlaneseq
  %v39 = vshrl.u32 %v38, 7
  %v40 = vsub.s32 0, %v39
  %v41 = vrot.slane %v36, %v40
  %v43 = vsub.f32 %v35, %v41
  %v44 = vld [vmem:[%s2] sm:$0x1]
  %v46 = vlaneseq
  %v47 = vshrl.u32 %v46, 7
  %v48 = vsub.s32 0, %v47
  %v49 = vrot.slane %v44, %v48
  %v51 = vmul.f32 %v43, %v49
  %v52 = vld [vmem:[%s5] sm:$0xff]
  %v53 = vld [vmem:[%s5 + $0x8] sm:$0xff]
  %s54 = scalar_lea.vmem %s5, 16
  %v55 = vld [vmem:[%s54] sm:$0xff]
  %v56 = vld [vmem:[%s54 + $0x8] sm:$0xff]
  %vm57 = vcmask 130048
  %v59 = vsel %vm57, %v51, 0
  %61 = vmatprep.subr.mxu0 0.0
  %62 = vmatpush1.msra.mxu0 %v31
  %63 = vmatprep.subr.mxu0 0.0
  %64 = vmatpush1.msra.mxu0 %v32
  %65 = vmatprep.subr.mxu0 0.0
  %66 = vmatpush1.msra.mxu0 0.0
  %67 = vmatprep.subr.mxu0 0.0
  %68 = vmatpush1.msra.mxu0 0.0
  %69 = vmatprep.subr.mxu0 0.0
  %70 = vmatpush1.msra.mxu0 0.0
  %71 = vmatprep.subr.mxu0 0.0
  %72 = vmatpush1.msra.mxu0 0.0
  %73 = vmatprep.subr.mxu0 0.0
  %74 = vmatpush1.msra.mxu0 0.0
  %75 = vmatprep.subr.mxu0 0.0
  %76 = vmatpush1.msra.mxu0 0.0
  %77 = vmatprep.subr.mxu0 0.0
  %78 = vmatpush1.msra.mxu0 0.0
  %79 = vmatprep.subr.mxu0 0.0
  %80 = vmatpush1.msra.mxu0 0.0
  %81 = vmatprep.subr.mxu0 0.0
  %82 = vmatpush1.msra.mxu0 0.0
  %83 = vmatprep.subr.mxu0 0.0
  %84 = vmatpush1.msra.mxu0 0.0
  %85 = vmatprep.subr.mxu0 0.0
  %86 = vmatpush1.msra.mxu0 0.0
  %87 = vmatprep.subr.mxu0 0.0
  %88 = vmatpush1.msra.mxu0 0.0
  %89 = vmatprep.subr.mxu0 0.0
  %90 = vmatpush1.msra.mxu0 0.0
  %91 = vmatprep.subr.mxu0 0.0
  %92 = vmatpush1.msra.mxu0 0.0
  %93 = vmatprep.subr.mxu0 0.0
  %94 = vmatpush1.msra.mxu0 0.0
  %95 = vmatprep.subr.mxu0 0.0
  %96 = vmatpush1.msra.mxu0 0.0
  %97 = vmatprep.subr.mxu0 0.0
  %98 = vmatpush1.msra.mxu0 0.0
  %99 = vmatprep.subr.mxu0 0.0
  %100 = vmatpush1.msra.mxu0 0.0
  %101 = vmatprep.subr.mxu0 0.0
  %102 = vmatpush1.msra.mxu0 0.0
  %103 = vmatprep.subr.mxu0 0.0
  %104 = vmatpush1.msra.mxu0 0.0
  %105 = vmatprep.subr.mxu0 0.0
  %106 = vmatpush1.msra.mxu0 0.0
  %107 = vmatprep.subr.mxu0 0.0
  %108 = vmatpush1.msra.mxu0 0.0
  %109 = vmatprep.subr.mxu0 0.0
  %110 = vmatpush1.msra.mxu0 0.0
  %111 = vmatprep.subr.mxu0 0.0
  %112 = vmatpush1.msra.mxu0 0.0
  %113 = vmatprep.subr.mxu0 0.0
  %114 = vmatpush1.msra.mxu0 0.0
  %115 = vmatprep.subr.mxu0 0.0
  %116 = vmatpush1.msra.mxu0 0.0
  %117 = vmatprep.subr.mxu0 0.0
  %118 = vmatpush1.msra.mxu0 0.0
  %119 = vmatprep.subr.mxu0 0.0
  %120 = vmatpush1.msra.mxu0 0.0
  %121 = vmatprep.subr.mxu0 0.0
  %122 = vmatpush1.msra.mxu0 0.0
  %123 = vmatprep.subr.mxu0 0.0
  %124 = vmatpush1.msra.mxu0 0.0
  %125 = vmatprep.mubr.f32.mxu0 0.0
  %126 = vmatmul.mubr.f32.gmra.mrb[0].mxu0 %v59
  %v127 = vpop.f32.mrb[0].mxu0
  %v128 = vadd.f32 0.0, %v127
  %v129 = vpop.f32.mrb[0].mxu0
  %130 = vdwg.mxu0
  %vm131 = vcmask 261120
  %v132 = vsel %vm131, %v128, 0.0
  %v133 = vrot.slane %v132, 4
  %v134 = vadd.f32 %v132, %v133
  %v135 = vrot.slane %v134, 2
  %v136 = vadd.f32 %v134, %v135
  %v137 = vrot.slane %v136, 1
  %v138 = vadd.f32 %v136, %v137
  %v139 = vmul.f32 %v128, %v128
  %v140 = vsel %vm131, %v139, 0.0
  %v141 = vrot.slane %v140, 4
  %v142 = vadd.f32 %v140, %v141
  %v143 = vrot.slane %v142, 2
  %v144 = vadd.f32 %v142, %v143
  %v145 = vrot.slane %v144, 1
  %v146 = vadd.f32 %v144, %v145
  %v147 = vmul.f32 %v138, 0.125
  %v148 = vmul.f32 %v146, 0.125
  %v149 = vmul.f32 %v147, %v147
  %v150 = vsub.f32 %v148, %v149
  %v151 = vmax.f32 %v150, 0.0
  %v152 = vsub.f32 %v128, %v147
  %v153 = vadd.f32 %v151, 1e-05
  %v154 = vrsqrt.pop %v153
  %v155 = vmul.f32 %v152, %v154
  %v156 = vsub.f32 0.0, %v155
  %v157 = vmul.f32 %v156, 1.442695
  %v158 = vpow.pop %v157
  %v159 = vadd.f32 %v158, 1.0
  %v160 = vrcp.pop %v159
  %162 = vrot.lane.b32.xlu0 %v160, 112
  %v163 = vpop.permute.xlu0 %162
  %v165 = vmul.f32 %v155, %v163
  %v167 = vsel %vm57, %v165, 0
  %169 = vmatprep.subr.mxu0 0.0
  %170 = vmatpush1.msra.mxu0 %v33
  %171 = vmatprep.subr.mxu0 0.0
  %172 = vmatpush1.msra.mxu0 %v34
  %173 = vmatprep.subr.mxu0 0.0
  %174 = vmatpush1.msra.mxu0 0.0
  %175 = vmatprep.subr.mxu0 0.0
  %176 = vmatpush1.msra.mxu0 0.0
  %177 = vmatprep.subr.mxu0 0.0
  %178 = vmatpush1.msra.mxu0 0.0
  %179 = vmatprep.subr.mxu0 0.0
  %180 = vmatpush1.msra.mxu0 0.0
  %181 = vmatprep.subr.mxu0 0.0
  %182 = vmatpush1.msra.mxu0 0.0
  %183 = vmatprep.subr.mxu0 0.0
  %184 = vmatpush1.msra.mxu0 0.0
  %185 = vmatprep.subr.mxu0 0.0
  %186 = vmatpush1.msra.mxu0 0.0
  %187 = vmatprep.subr.mxu0 0.0
  %188 = vmatpush1.msra.mxu0 0.0
  %189 = vmatprep.subr.mxu0 0.0
  %190 = vmatpush1.msra.mxu0 0.0
  %191 = vmatprep.subr.mxu0 0.0
  %192 = vmatpush1.msra.mxu0 0.0
  %193 = vmatprep.subr.mxu0 0.0
  %194 = vmatpush1.msra.mxu0 0.0
  %195 = vmatprep.subr.mxu0 0.0
  %196 = vmatpush1.msra.mxu0 0.0
  %197 = vmatprep.subr.mxu0 0.0
  %198 = vmatpush1.msra.mxu0 0.0
  %199 = vmatprep.subr.mxu0 0.0
  %200 = vmatpush1.msra.mxu0 0.0
  %201 = vmatprep.subr.mxu0 0.0
  %202 = vmatpush1.msra.mxu0 0.0
  %203 = vmatprep.subr.mxu0 0.0
  %204 = vmatpush1.msra.mxu0 0.0
  %205 = vmatprep.subr.mxu0 0.0
  %206 = vmatpush1.msra.mxu0 0.0
  %207 = vmatprep.subr.mxu0 0.0
  %208 = vmatpush1.msra.mxu0 0.0
  %209 = vmatprep.subr.mxu0 0.0
  %210 = vmatpush1.msra.mxu0 0.0
  %211 = vmatprep.subr.mxu0 0.0
  %212 = vmatpush1.msra.mxu0 0.0
  %213 = vmatprep.subr.mxu0 0.0
  %214 = vmatpush1.msra.mxu0 0.0
  %215 = vmatprep.subr.mxu0 0.0
  %216 = vmatpush1.msra.mxu0 0.0
  %217 = vmatprep.subr.mxu0 0.0
  %218 = vmatpush1.msra.mxu0 0.0
  %219 = vmatprep.subr.mxu0 0.0
  %220 = vmatpush1.msra.mxu0 0.0
  %221 = vmatprep.subr.mxu0 0.0
  %222 = vmatpush1.msra.mxu0 0.0
  %223 = vmatprep.subr.mxu0 0.0
  %224 = vmatpush1.msra.mxu0 0.0
  %225 = vmatprep.subr.mxu0 0.0
  %226 = vmatpush1.msra.mxu0 0.0
  %227 = vmatprep.subr.mxu0 0.0
  %228 = vmatpush1.msra.mxu0 0.0
  %229 = vmatprep.subr.mxu0 0.0
  %230 = vmatpush1.msra.mxu0 0.0
  %231 = vmatprep.subr.mxu0 0.0
  %232 = vmatpush1.msra.mxu0 0.0
  %233 = vmatprep.mubr.f32.mxu0 0.0
  %234 = vmatmul.mubr.f32.gmra.mrb[0].mxu0 %v167
  %v235 = vpop.f32.mrb[0].mxu0
  %v236 = vadd.f32 0.0, %v235
  %v237 = vpop.f32.mrb[0].mxu0
  %238 = vdwg.mxu0
  %v239 = vsel %vm131, %v236, 0.0
  %v240 = vrot.slane %v239, 4
  %v241 = vadd.f32 %v239, %v240
  %v242 = vrot.slane %v241, 2
  %v243 = vadd.f32 %v241, %v242
  %v244 = vrot.slane %v243, 1
  %v245 = vadd.f32 %v243, %v244
  %v246 = vmul.f32 %v236, %v236
  %v247 = vsel %vm131, %v246, 0.0
  %v248 = vrot.slane %v247, 4
  %v249 = vadd.f32 %v247, %v248
  %v250 = vrot.slane %v249, 2
  %v251 = vadd.f32 %v249, %v250
  %v252 = vrot.slane %v251, 1
  %v253 = vadd.f32 %v251, %v252
  %v254 = vmul.f32 %v245, 0.125
  %v255 = vmul.f32 %v253, 0.125
  %v256 = vmul.f32 %v254, %v254
  %v257 = vsub.f32 %v255, %v256
  %v258 = vmax.f32 %v257, 0.0
  %v259 = vsub.f32 %v236, %v254
  %v260 = vadd.f32 %v258, 1e-05
  %v261 = vrsqrt.pop %v260
  %v262 = vmul.f32 %v259, %v261
  %v263 = vsub.f32 0.0, %v262
  %v264 = vmul.f32 %v263, 1.442695
  %v265 = vpow.pop %v264
  %v266 = vadd.f32 %v265, 1.0
  %v267 = vrcp.pop %v266
  %269 = vrot.lane.b32.xlu0 %v267, 112
  %v270 = vpop.permute.xlu0 %269
  %v272 = vmul.f32 %v262, %v270
  %v273 = vadd.f32 %v165, %v272
  %v274 = vmul.f32 %v273, 0.70710677
  %v276 = vsel %vm57, %v274, 0
  %278 = vmatprep.subr.mxu0 0.0
  %279 = vmatpush1.msra.mxu0 %v52
  %280 = vmatprep.subr.mxu0 0.0
  %281 = vmatpush1.msra.mxu0 %v53
  %282 = vmatprep.subr.mxu0 0.0
  %283 = vmatpush1.msra.mxu0 0.0
  %284 = vmatprep.subr.mxu0 0.0
  %285 = vmatpush1.msra.mxu0 0.0
  %286 = vmatprep.subr.mxu0 0.0
  %287 = vmatpush1.msra.mxu0 0.0
  %288 = vmatprep.subr.mxu0 0.0
  %289 = vmatpush1.msra.mxu0 0.0
  %290 = vmatprep.subr.mxu0 0.0
  %291 = vmatpush1.msra.mxu0 0.0
  %292 = vmatprep.subr.mxu0 0.0
  %293 = vmatpush1.msra.mxu0 0.0
  %294 = vmatprep.subr.mxu0 0.0
  %295 = vmatpush1.msra.mxu0 0.0
  %296 = vmatprep.subr.mxu0 0.0
  %297 = vmatpush1.msra.mxu0 0.0
  %298 = vmatprep.subr.mxu0 0.0
  %299 = vmatpush1.msra.mxu0 0.0
  %300 = vmatprep.subr.mxu0 0.0
  %301 = vmatpush1.msra.mxu0 0.0
  %302 = vmatprep.subr.mxu0 0.0
  %303 = vmatpush1.msra.mxu0 0.0
  %304 = vmatprep.subr.mxu0 0.0
  %305 = vmatpush1.msra.mxu0 0.0
  %306 = vmatprep.subr.mxu0 0.0
  %307 = vmatpush1.msra.mxu0 0.0
  %308 = vmatprep.subr.mxu0 0.0
  %309 = vmatpush1.msra.mxu0 0.0
  %310 = vmatprep.subr.mxu0 0.0
  %311 = vmatpush1.msra.mxu0 0.0
  %312 = vmatprep.subr.mxu0 0.0
  %313 = vmatpush1.msra.mxu0 0.0
  %314 = vmatprep.subr.mxu0 0.0
  %315 = vmatpush1.msra.mxu0 0.0
  %316 = vmatprep.subr.mxu0 0.0
  %317 = vmatpush1.msra.mxu0 0.0
  %318 = vmatprep.subr.mxu0 0.0
  %319 = vmatpush1.msra.mxu0 0.0
  %320 = vmatprep.subr.mxu0 0.0
  %321 = vmatpush1.msra.mxu0 0.0
  %322 = vmatprep.subr.mxu0 0.0
  %323 = vmatpush1.msra.mxu0 0.0
  %324 = vmatprep.subr.mxu0 0.0
  %325 = vmatpush1.msra.mxu0 0.0
  %326 = vmatprep.subr.mxu0 0.0
  %327 = vmatpush1.msra.mxu0 0.0
  %328 = vmatprep.subr.mxu0 0.0
  %329 = vmatpush1.msra.mxu0 0.0
  %330 = vmatprep.subr.mxu0 0.0
  %331 = vmatpush1.msra.mxu0 0.0
  %332 = vmatprep.subr.mxu0 0.0
  %333 = vmatpush1.msra.mxu0 0.0
  %334 = vmatprep.subr.mxu0 0.0
  %335 = vmatpush1.msra.mxu0 0.0
  %336 = vmatprep.subr.mxu0 0.0
  %337 = vmatpush1.msra.mxu0 0.0
  %338 = vmatprep.subr.mxu0 0.0
  %339 = vmatpush1.msra.mxu0 0.0
  %340 = vmatprep.subr.mxu0 0.0
  %341 = vmatpush1.msra.mxu0 0.0
  %342 = vmatprep.mubr.f32.mxu0 0.0
  %343 = vmatmul.mubr.f32.gmra.mrb[0].mxu0 %v276
  %v344 = vpop.f32.mrb[0].mxu0
  %v345 = vadd.f32 0.0, %v344
  %v346 = vpop.f32.mrb[0].mxu0
  %347 = vdwg.mxu0
  %v348 = vsel %vm131, %v345, 0.0
  %v349 = vrot.slane %v348, 4
  %v350 = vadd.f32 %v348, %v349
  %v351 = vrot.slane %v350, 2
  %v352 = vadd.f32 %v350, %v351
  %v353 = vrot.slane %v352, 1
  %v354 = vadd.f32 %v352, %v353
  %v355 = vmul.f32 %v345, %v345
  %v356 = vsel %vm131, %v355, 0.0
  %v357 = vrot.slane %v356, 4
  %v358 = vadd.f32 %v356, %v357
  %v359 = vrot.slane %v358, 2
  %v360 = vadd.f32 %v358, %v359
  %v361 = vrot.slane %v360, 1
  %v362 = vadd.f32 %v360, %v361
  %v363 = vmul.f32 %v354, 0.125
  %v364 = vmul.f32 %v362, 0.125
  %v365 = vmul.f32 %v363, %v363
  %v366 = vsub.f32 %v364, %v365
  %v367 = vmax.f32 %v366, 0.0
  %v368 = vsub.f32 %v345, %v363
  %v369 = vadd.f32 %v367, 1e-05
  %v370 = vrsqrt.pop %v369
  %v371 = vmul.f32 %v368, %v370
  %v372 = vsub.f32 0.0, %v371
  %v373 = vmul.f32 %v372, 1.442695
  %v374 = vpow.pop %v373
  %v375 = vadd.f32 %v374, 1.0
  %v376 = vrcp.pop %v375
  %378 = vrot.lane.b32.xlu0 %v376, 112
  %v379 = vpop.permute.xlu0 %378
  %v381 = vmul.f32 %v371, %v379
  %v382 = vadd.f32 %v274, %v381
  %v383 = vmul.f32 %v382, 0.70710677
  %v385 = vsel %vm57, %v383, 0
  %387 = vmatprep.subr.mxu0 0.0
  %388 = vmatpush1.msra.mxu0 %v55
  %389 = vmatprep.subr.mxu0 0.0
  %390 = vmatpush1.msra.mxu0 %v56
  %391 = vmatprep.subr.mxu0 0.0
  %392 = vmatpush1.msra.mxu0 0.0
  %393 = vmatprep.subr.mxu0 0.0
  %394 = vmatpush1.msra.mxu0 0.0
  %395 = vmatprep.subr.mxu0 0.0
  %396 = vmatpush1.msra.mxu0 0.0
  %397 = vmatprep.subr.mxu0 0.0
  %398 = vmatpush1.msra.mxu0 0.0
  %399 = vmatprep.subr.mxu0 0.0
  %400 = vmatpush1.msra.mxu0 0.0
  %401 = vmatprep.subr.mxu0 0.0
  %402 = vmatpush1.msra.mxu0 0.0
  %403 = vmatprep.subr.mxu0 0.0
  %404 = vmatpush1.msra.mxu0 0.0
  %405 = vmatprep.subr.mxu0 0.0
  %406 = vmatpush1.msra.mxu0 0.0
  %407 = vmatprep.subr.mxu0 0.0
  %408 = vmatpush1.msra.mxu0 0.0
  %409 = vmatprep.subr.mxu0 0.0
  %410 = vmatpush1.msra.mxu0 0.0
  %411 = vmatprep.subr.mxu0 0.0
  %412 = vmatpush1.msra.mxu0 0.0
  %413 = vmatprep.subr.mxu0 0.0
  %414 = vmatpush1.msra.mxu0 0.0
  %415 = vmatprep.subr.mxu0 0.0
  %416 = vmatpush1.msra.mxu0 0.0
  %417 = vmatprep.subr.mxu0 0.0
  %418 = vmatpush1.msra.mxu0 0.0
  %419 = vmatprep.subr.mxu0 0.0
  %420 = vmatpush1.msra.mxu0 0.0
  %421 = vmatprep.subr.mxu0 0.0
  %422 = vmatpush1.msra.mxu0 0.0
  %423 = vmatprep.subr.mxu0 0.0
  %424 = vmatpush1.msra.mxu0 0.0
  %425 = vmatprep.subr.mxu0 0.0
  %426 = vmatpush1.msra.mxu0 0.0
  %427 = vmatprep.subr.mxu0 0.0
  %428 = vmatpush1.msra.mxu0 0.0
  %429 = vmatprep.subr.mxu0 0.0
  %430 = vmatpush1.msra.mxu0 0.0
  %431 = vmatprep.subr.mxu0 0.0
  %432 = vmatpush1.msra.mxu0 0.0
  %433 = vmatprep.subr.mxu0 0.0
  %434 = vmatpush1.msra.mxu0 0.0
  %435 = vmatprep.subr.mxu0 0.0
  %436 = vmatpush1.msra.mxu0 0.0
  %437 = vmatprep.subr.mxu0 0.0
  %438 = vmatpush1.msra.mxu0 0.0
  %439 = vmatprep.subr.mxu0 0.0
  %440 = vmatpush1.msra.mxu0 0.0
  %441 = vmatprep.subr.mxu0 0.0
  %442 = vmatpush1.msra.mxu0 0.0
  %443 = vmatprep.subr.mxu0 0.0
  %444 = vmatpush1.msra.mxu0 0.0
  %445 = vmatprep.subr.mxu0 0.0
  %446 = vmatpush1.msra.mxu0 0.0
  %447 = vmatprep.subr.mxu0 0.0
  %448 = vmatpush1.msra.mxu0 0.0
  %449 = vmatprep.subr.mxu0 0.0
  %450 = vmatpush1.msra.mxu0 0.0
  %451 = vmatprep.mubr.f32.mxu0 0.0
  %452 = vmatmul.mubr.f32.gmra.mrb[0].mxu0 %v385
  %v453 = vpop.f32.mrb[0].mxu0
  %v454 = vadd.f32 0.0, %v453
  %v455 = vpop.f32.mrb[0].mxu0
  %456 = vdwg.mxu0
  %v457 = vsel %vm131, %v454, 0.0
  %v458 = vrot.slane %v457, 4
  %v459 = vadd.f32 %v457, %v458
  %v460 = vrot.slane %v459, 2
  %v461 = vadd.f32 %v459, %v460
  %v462 = vrot.slane %v461, 1
  %v463 = vadd.f32 %v461, %v462
  %v464 = vmul.f32 %v454, %v454
  %v465 = vsel %vm131, %v464, 0.0
  %v466 = vrot.slane %v465, 4
  %v467 = vadd.f32 %v465, %v466
  %v468 = vrot.slane %v467, 2
  %v469 = vadd.f32 %v467, %v468
  %v470 = vrot.slane %v469, 1
  %v471 = vadd.f32 %v469, %v470
  %v472 = vmul.f32 %v463, 0.125
  %v473 = vmul.f32 %v471, 0.125
  %v474 = vmul.f32 %v472, %v472
  %v475 = vsub.f32 %v473, %v474
  %v476 = vmax.f32 %v475, 0.0
  %v477 = vsub.f32 %v454, %v472
  %v478 = vadd.f32 %v476, 1e-05
  %v479 = vrsqrt.pop %v478
  %v480 = vmul.f32 %v477, %v479
  %v481 = vsub.f32 0.0, %v480
  %v482 = vmul.f32 %v481, 1.442695
  %v483 = vpow.pop %v482
  %v484 = vadd.f32 %v483, 1.0
  %v485 = vrcp.pop %v484
  %487 = vrot.lane.b32.xlu0 %v485, 112
  %v488 = vpop.permute.xlu0 %487
  %v490 = vmul.f32 %v480, %v488
  %v491 = vadd.f32 %v383, %v490
  %v492 = vmul.f32 %v491, 0.70710677
  %v493 = vld [vmem:[%s7] sm:$0xff]
  %495 = vrot.lane.b32.xlu0 %v492, 120
  %v496 = vpop.permute.xlu0 %495
  %vm497 = vcmask 64512
  %v498 = vsel %vm497, %v496, 0
  %500 = vmatprep.subr.mxu0 0.0
  %501 = vmatpush1.msra.mxu0 %v493
  %502 = vmatprep.subr.mxu0 0.0
  %503 = vmatpush1.msra.mxu0 0.0
  %504 = vmatprep.subr.mxu0 0.0
  %505 = vmatpush1.msra.mxu0 0.0
  %506 = vmatprep.subr.mxu0 0.0
  %507 = vmatpush1.msra.mxu0 0.0
  %508 = vmatprep.subr.mxu0 0.0
  %509 = vmatpush1.msra.mxu0 0.0
  %510 = vmatprep.subr.mxu0 0.0
  %511 = vmatpush1.msra.mxu0 0.0
  %512 = vmatprep.subr.mxu0 0.0
  %513 = vmatpush1.msra.mxu0 0.0
  %514 = vmatprep.subr.mxu0 0.0
  %515 = vmatpush1.msra.mxu0 0.0
  %516 = vmatprep.subr.mxu0 0.0
  %517 = vmatpush1.msra.mxu0 0.0
  %518 = vmatprep.subr.mxu0 0.0
  %519 = vmatpush1.msra.mxu0 0.0
  %520 = vmatprep.subr.mxu0 0.0
  %521 = vmatpush1.msra.mxu0 0.0
  %522 = vmatprep.subr.mxu0 0.0
  %523 = vmatpush1.msra.mxu0 0.0
  %524 = vmatprep.subr.mxu0 0.0
  %525 = vmatpush1.msra.mxu0 0.0
  %526 = vmatprep.subr.mxu0 0.0
  %527 = vmatpush1.msra.mxu0 0.0
  %528 = vmatprep.subr.mxu0 0.0
  %529 = vmatpush1.msra.mxu0 0.0
  %530 = vmatprep.subr.mxu0 0.0
  %531 = vmatpush1.msra.mxu0 0.0
  %532 = vmatprep.subr.mxu0 0.0
  %533 = vmatpush1.msra.mxu0 0.0
  %534 = vmatprep.subr.mxu0 0.0
  %535 = vmatpush1.msra.mxu0 0.0
  %536 = vmatprep.subr.mxu0 0.0
  %537 = vmatpush1.msra.mxu0 0.0
  %538 = vmatprep.subr.mxu0 0.0
  %539 = vmatpush1.msra.mxu0 0.0
  %540 = vmatprep.subr.mxu0 0.0
  %541 = vmatpush1.msra.mxu0 0.0
  %542 = vmatprep.subr.mxu0 0.0
  %543 = vmatpush1.msra.mxu0 0.0
  %544 = vmatprep.subr.mxu0 0.0
  %545 = vmatpush1.msra.mxu0 0.0
  %546 = vmatprep.subr.mxu0 0.0
  %547 = vmatpush1.msra.mxu0 0.0
  %548 = vmatprep.subr.mxu0 0.0
  %549 = vmatpush1.msra.mxu0 0.0
  %550 = vmatprep.subr.mxu0 0.0
  %551 = vmatpush1.msra.mxu0 0.0
  %552 = vmatprep.subr.mxu0 0.0
  %553 = vmatpush1.msra.mxu0 0.0
  %554 = vmatprep.subr.mxu0 0.0
  %555 = vmatpush1.msra.mxu0 0.0
  %556 = vmatprep.subr.mxu0 0.0
  %557 = vmatpush1.msra.mxu0 0.0
  %558 = vmatprep.subr.mxu0 0.0
  %559 = vmatpush1.msra.mxu0 0.0
  %560 = vmatprep.subr.mxu0 0.0
  %561 = vmatpush1.msra.mxu0 0.0
  %562 = vmatprep.subr.mxu0 0.0
  %563 = vmatpush1.msra.mxu0 0.0
  %564 = vmatprep.mubr.f32.mxu0 0.0
  %565 = vmatmul.mubr.f32.gmra.mrb[0].mxu0 %v498
  %v566 = vpop.f32.mrb[0].mxu0
  %v567 = vadd.f32 0.0, %v566
  %v568 = vpop.f32.mrb[0].mxu0
  %569 = vdwg.mxu0
  %v570 = vsel %vm57, %v567, 0.0
  %v571 = vrot.slane %v570, 4
  %v572 = vadd.f32 %v570, %v571
  %v573 = vrot.slane %v572, 2
  %v574 = vadd.f32 %v572, %v573
  %v575 = vrot.slane %v574, 1
  %v576 = vadd.f32 %v574, %v575
  %v577 = vmul.f32 %v567, %v567
  %v578 = vsel %vm57, %v577, 0.0
  %v579 = vrot.slane %v578, 4
  %v580 = vadd.f32 %v578, %v579
  %v581 = vrot.slane %v580, 2
  %v582 = vadd.f32 %v580, %v581
  %v583 = vrot.slane %v582, 1
  %v584 = vadd.f32 %v582, %v583
  %v585 = vmul.f32 %v576, 0.125
  %v586 = vmul.f32 %v584, 0.125
  %v587 = vmul.f32 %v585, %v585
  %v588 = vsub.f32 %v586, %v587
  %v589 = vmax.f32 %v588, 0.0
  %v590 = vsub.f32 %v567, %v585
  %v591 = vadd.f32 %v589, 1e-05
  %v592 = vrsqrt.pop %v591
  %v593 = vmul.f32 %v590, %v592
  %v594 = vlaneseq
  %v595 = vshrl.u32 %v594, 7
  %v596 = vsub.s32 0, %v595
  %v597 = vrot.slane %v593, %v596
  %599 = vbcast.lane.b32.xlu0 %v597, 256
  %v600 = vpop.permute.xlu0 %599
  %s602 = sor.u32 256, 8
  %603 = vbcast.lane.b32.xlu0 %v597, %s602
  %v604 = vpop.permute.xlu0 %603
  %v605 = vlaneseq
  %v606 = vshrl.u32 %v605, 7
  %v607 = vsub.s32 1, %v606
  %v608 = vrot.slane %v593, %v607
  %610 = vbcast.lane.b32.xlu0 %v608, 256
  %v611 = vpop.permute.xlu0 %610
  %s613 = sor.u32 256, 8
  %614 = vbcast.lane.b32.xlu0 %v608, %s613
  %v615 = vpop.permute.xlu0 %614
  %v616 = vlaneseq
  %v617 = vshrl.u32 %v616, 7
  %v618 = vsub.s32 2, %v617
  %v619 = vrot.slane %v593, %v618
  %621 = vbcast.lane.b32.xlu0 %v619, 256
  %v622 = vpop.permute.xlu0 %621
  %s624 = sor.u32 256, 8
  %625 = vbcast.lane.b32.xlu0 %v619, %s624
  %v626 = vpop.permute.xlu0 %625
  %v627 = vlaneseq
  %v628 = vshrl.u32 %v627, 7
  %v629 = vsub.s32 3, %v628
  %v630 = vrot.slane %v593, %v629
  %632 = vbcast.lane.b32.xlu0 %v630, 256
  %v633 = vpop.permute.xlu0 %632
  %s635 = sor.u32 256, 8
  %636 = vbcast.lane.b32.xlu0 %v630, %s635
  %v637 = vpop.permute.xlu0 %636
  %v638 = vlaneseq
  %v639 = vshrl.u32 %v638, 7
  %v640 = vsub.s32 4, %v639
  %v641 = vrot.slane %v593, %v640
  %643 = vbcast.lane.b32.xlu0 %v641, 256
  %v644 = vpop.permute.xlu0 %643
  %s646 = sor.u32 256, 8
  %647 = vbcast.lane.b32.xlu0 %v641, %s646
  %v648 = vpop.permute.xlu0 %647
  %v649 = vlaneseq
  %v650 = vshrl.u32 %v649, 7
  %v651 = vsub.s32 5, %v650
  %v652 = vrot.slane %v593, %v651
  %654 = vbcast.lane.b32.xlu0 %v652, 256
  %v655 = vpop.permute.xlu0 %654
  %s657 = sor.u32 256, 8
  %658 = vbcast.lane.b32.xlu0 %v652, %s657
  %v659 = vpop.permute.xlu0 %658
  %v660 = vlaneseq
  %v661 = vshrl.u32 %v660, 7
  %v662 = vsub.s32 6, %v661
  %v663 = vrot.slane %v593, %v662
  %665 = vbcast.lane.b32.xlu0 %v663, 256
  %v666 = vpop.permute.xlu0 %665
  %s668 = sor.u32 256, 8
  %669 = vbcast.lane.b32.xlu0 %v663, %s668
  %v670 = vpop.permute.xlu0 %669
  %v671 = vlaneseq
  %v672 = vshrl.u32 %v671, 7
  %v673 = vsub.s32 7, %v672
  %v674 = vrot.slane %v593, %v673
  %676 = vbcast.lane.b32.xlu0 %v674, 256
  %v677 = vpop.permute.xlu0 %676
  %s679 = sor.u32 256, 8
  %680 = vbcast.lane.b32.xlu0 %v674, %s679
  %v681 = vpop.permute.xlu0 %680
  %v683 = vcombine.high %v593, %v593
  %v685 = vunpack.c.l.s4 1966171168
  %v686 = vunpack.c.0.s8 %v685
  %v687 = vlaneseq
  %v688 = vshrl.u32 %v687, 7
  %v689 = vsub.s32 %v686, %v688
  %v690 = vrot.slane %v593, %v689
  %v692 = vunpack.c.l.s4 1966171168
  %v693 = vunpack.c.0.s8 %v692
  %v694 = vlaneseq
  %v695 = vshrl.u32 %v694, 7
  %v696 = vsub.s32 %v693, %v695
  %v697 = vrot.slane %v683, %v696
  %v698 = vcombine.high %v690, %v690
  %v699 = vcombine.high %v697, %v697
  %v701 = vunpack.c.l.s4 1966171168
  %v702 = vunpack.c.0.s8 %v701
  %v703 = vlaneseq
  %v704 = vshrl.u32 %v703, 7
  %v705 = vsub.s32 %v702, %v704
  %v706 = vrot.slane %v690, %v705
  %v708 = vunpack.c.l.s4 1966171168
  %v709 = vunpack.c.0.s8 %v708
  %v710 = vlaneseq
  %v711 = vshrl.u32 %v710, 7
  %v712 = vsub.s32 %v709, %v711
  %v713 = vrot.slane %v697, %v712
  %v715 = vunpack.c.l.s4 1966171168
  %v716 = vunpack.c.0.s8 %v715
  %v717 = vlaneseq
  %v718 = vshrl.u32 %v717, 7
  %v719 = vsub.s32 %v716, %v718
  %v720 = vrot.slane %v698, %v719
  %v722 = vunpack.c.l.s4 1966171168
  %v723 = vunpack.c.0.s8 %v722
  %v724 = vlaneseq
  %v725 = vshrl.u32 %v724, 7
  %v726 = vsub.s32 %v723, %v725
  %v727 = vrot.slane %v699, %v726
  %v728 = vcombine.high %v706, %v706
  %v729 = vcombine.high %v713, %v713
  %v730 = vcombine.high %v720, %v720
  %v731 = vcombine.high %v727, %v727
  %v732 = vlaneseq
  %v733 = vshrl.u32 %v732, 7
  %v734 = vsub.s32 0, %v733
  %v735 = vrot.slane %v706, %v734
  %v736 = vlaneseq
  %v737 = vshrl.u32 %v736, 7
  %v738 = vsub.s32 0, %v737
  %v739 = vrot.slane %v720, %v738
  %v740 = vlaneseq
  %v741 = vshrl.u32 %v740, 7
  %v742 = vsub.s32 0, %v741
  %v743 = vrot.slane %v728, %v742
  %v744 = vlaneseq
  %v745 = vshrl.u32 %v744, 7
  %v746 = vsub.s32 0, %v745
  %v747 = vrot.slane %v730, %v746
  %v748 = vlaneseq
  %v749 = vshrl.u32 %v748, 7
  %v750 = vsub.s32 0, %v749
  %v751 = vrot.slane %v713, %v750
  %v752 = vlaneseq
  %v753 = vshrl.u32 %v752, 7
  %v754 = vsub.s32 0, %v753
  %v755 = vrot.slane %v727, %v754
  %v756 = vlaneseq
  %v757 = vshrl.u32 %v756, 7
  %v758 = vsub.s32 0, %v757
  %v759 = vrot.slane %v729, %v758
  %v760 = vlaneseq
  %v761 = vshrl.u32 %v760, 7
  %v762 = vsub.s32 0, %v761
  %v763 = vrot.slane %v731, %v762
  %vm772 = vcmp.ge.f32.partialorder %v735, %v600
  %vm773 = vcmp.ge.f32.partialorder %v735, %v604
  %vm774 = vcmp.ge.f32.partialorder %v739, %v611
  %vm775 = vcmp.ge.f32.partialorder %v739, %v615
  %vm776 = vcmp.ge.f32.partialorder %v743, %v622
  %vm777 = vcmp.ge.f32.partialorder %v743, %v626
  %vm778 = vcmp.ge.f32.partialorder %v747, %v633
  %vm779 = vcmp.ge.f32.partialorder %v747, %v637
  %vm780 = vcmp.ge.f32.partialorder %v751, %v644
  %vm781 = vcmp.ge.f32.partialorder %v751, %v648
  %vm782 = vcmp.ge.f32.partialorder %v755, %v655
  %vm783 = vcmp.ge.f32.partialorder %v755, %v659
  %vm784 = vcmp.ge.f32.partialorder %v759, %v666
  %vm785 = vcmp.ge.f32.partialorder %v759, %v670
  %vm786 = vcmp.ge.f32.partialorder %v763, %v677
  %vm787 = vcmp.ge.f32.partialorder %v763, %v681
  %v788 = vsel %vm772, 1, 0
  %v789 = vsel %vm773, 1, 0
  %v790 = vsel %vm774, 1, 0
  %v791 = vsel %vm775, 1, 0
  %v792 = vsel %vm776, 1, 0
  %v793 = vsel %vm777, 1, 0
  %v794 = vsel %vm778, 1, 0
  %v795 = vsel %vm779, 1, 0
  %v796 = vsel %vm780, 1, 0
  %v797 = vsel %vm781, 1, 0
  %v798 = vsel %vm782, 1, 0
  %v799 = vsel %vm783, 1, 0
  %v800 = vsel %vm784, 1, 0
  %v801 = vsel %vm785, 1, 0
  %v802 = vsel %vm786, 1, 0
  %v803 = vsel %vm787, 1, 0
  %v804 = vcvt.s32.f32 %v788
  %v805 = vcvt.s32.f32 %v789
  %v806 = vcvt.s32.f32 %v790
  %v807 = vcvt.s32.f32 %v791
  %v808 = vcvt.s32.f32 %v792
  %v809 = vcvt.s32.f32 %v793
  %v810 = vcvt.s32.f32 %v794
  %v811 = vcvt.s32.f32 %v795
  %v812 = vcvt.s32.f32 %v796
  %v813 = vcvt.s32.f32 %v797
  %v814 = vcvt.s32.f32 %v798
  %v815 = vcvt.s32.f32 %v799
  %v816 = vcvt.s32.f32 %v800
  %v817 = vcvt.s32.f32 %v801
  %v818 = vcvt.s32.f32 %v802
  %v819 = vcvt.s32.f32 %v803
  %v820 = vsel %vm57, %v804, 0.0
  %821 = vadd.xlane.f32.xlu0 %v820
  %v822 = vpop.xlane.xlu0 %821
  %v823 = vsel %vm57, %v805, 0.0
  %824 = vadd.xlane.f32.xlu0 %v823
  %v825 = vpop.xlane.xlu0 %824
  %v826 = vsel %vm57, %v806, 0.0
  %827 = vadd.xlane.f32.xlu0 %v826
  %v828 = vpop.xlane.xlu0 %827
  %v829 = vsel %vm57, %v807, 0.0
  %830 = vadd.xlane.f32.xlu0 %v829
  %v831 = vpop.xlane.xlu0 %830
  %v832 = vsel %vm57, %v808, 0.0
  %833 = vadd.xlane.f32.xlu0 %v832
  %v834 = vpop.xlane.xlu0 %833
  %v835 = vsel %vm57, %v809, 0.0
  %836 = vadd.xlane.f32.xlu0 %v835
  %v837 = vpop.xlane.xlu0 %836
  %v838 = vsel %vm57, %v810, 0.0
  %839 = vadd.xlane.f32.xlu0 %v838
  %v840 = vpop.xlane.xlu0 %839
  %v841 = vsel %vm57, %v811, 0.0
  %842 = vadd.xlane.f32.xlu0 %v841
  %v843 = vpop.xlane.xlu0 %842
  %v844 = vsel %vm57, %v812, 0.0
  %845 = vadd.xlane.f32.xlu0 %v844
  %v846 = vpop.xlane.xlu0 %845
  %v847 = vsel %vm57, %v813, 0.0
  %848 = vadd.xlane.f32.xlu0 %v847
  %v849 = vpop.xlane.xlu0 %848
  %v850 = vsel %vm57, %v814, 0.0
  %851 = vadd.xlane.f32.xlu0 %v850
  %v852 = vpop.xlane.xlu0 %851
  %v853 = vsel %vm57, %v815, 0.0
  %854 = vadd.xlane.f32.xlu0 %v853
  %v855 = vpop.xlane.xlu0 %854
  %v856 = vsel %vm57, %v816, 0.0
  %857 = vadd.xlane.f32.xlu0 %v856
  %v858 = vpop.xlane.xlu0 %857
  %v859 = vsel %vm57, %v817, 0.0
  %860 = vadd.xlane.f32.xlu0 %v859
  %v861 = vpop.xlane.xlu0 %860
  %v862 = vsel %vm57, %v818, 0.0
  %863 = vadd.xlane.f32.xlu0 %v862
  %v864 = vpop.xlane.xlu0 %863
  %v865 = vsel %vm57, %v819, 0.0
  %866 = vadd.xlane.f32.xlu0 %v865
  %v867 = vpop.xlane.xlu0 %866
  %v868 = vsel %vm772, %v735, 0.0
  %v869 = vsel %vm773, %v735, 0.0
  %v870 = vsel %vm774, %v739, 0.0
  %v871 = vsel %vm775, %v739, 0.0
  %v872 = vsel %vm776, %v743, 0.0
  %v873 = vsel %vm777, %v743, 0.0
  %v874 = vsel %vm778, %v747, 0.0
  %v875 = vsel %vm779, %v747, 0.0
  %v876 = vsel %vm780, %v751, 0.0
  %v877 = vsel %vm781, %v751, 0.0
  %v878 = vsel %vm782, %v755, 0.0
  %v879 = vsel %vm783, %v755, 0.0
  %v880 = vsel %vm784, %v759, 0.0
  %v881 = vsel %vm785, %v759, 0.0
  %v882 = vsel %vm786, %v763, 0.0
  %v883 = vsel %vm787, %v763, 0.0
  %v884 = vsel %vm57, %v868, 0.0
  %885 = vadd.xlane.f32.xlu0 %v884
  %v886 = vpop.xlane.xlu0 %885
  %v887 = vsel %vm57, %v869, 0.0
  %888 = vadd.xlane.f32.xlu0 %v887
  %v889 = vpop.xlane.xlu0 %888
  %v890 = vsel %vm57, %v870, 0.0
  %891 = vadd.xlane.f32.xlu0 %v890
  %v892 = vpop.xlane.xlu0 %891
  %v893 = vsel %vm57, %v871, 0.0
  %894 = vadd.xlane.f32.xlu0 %v893
  %v895 = vpop.xlane.xlu0 %894
  %v896 = vsel %vm57, %v872, 0.0
  %897 = vadd.xlane.f32.xlu0 %v896
  %v898 = vpop.xlane.xlu0 %897
  %v899 = vsel %vm57, %v873, 0.0
  %900 = vadd.xlane.f32.xlu0 %v899
  %v901 = vpop.xlane.xlu0 %900
  %v902 = vsel %vm57, %v874, 0.0
  %903 = vadd.xlane.f32.xlu0 %v902
  %v904 = vpop.xlane.xlu0 %903
  %v905 = vsel %vm57, %v875, 0.0
  %906 = vadd.xlane.f32.xlu0 %v905
  %v907 = vpop.xlane.xlu0 %906
  %v908 = vsel %vm57, %v876, 0.0
  %909 = vadd.xlane.f32.xlu0 %v908
  %v910 = vpop.xlane.xlu0 %909
  %v911 = vsel %vm57, %v877, 0.0
  %912 = vadd.xlane.f32.xlu0 %v911
  %v913 = vpop.xlane.xlu0 %912
  %v914 = vsel %vm57, %v878, 0.0
  %915 = vadd.xlane.f32.xlu0 %v914
  %v916 = vpop.xlane.xlu0 %915
  %v917 = vsel %vm57, %v879, 0.0
  %918 = vadd.xlane.f32.xlu0 %v917
  %v919 = vpop.xlane.xlu0 %918
  %v920 = vsel %vm57, %v880, 0.0
  %921 = vadd.xlane.f32.xlu0 %v920
  %v922 = vpop.xlane.xlu0 %921
  %v923 = vsel %vm57, %v881, 0.0
  %924 = vadd.xlane.f32.xlu0 %v923
  %v925 = vpop.xlane.xlu0 %924
  %v926 = vsel %vm57, %v882, 0.0
  %927 = vadd.xlane.f32.xlu0 %v926
  %v928 = vpop.xlane.xlu0 %927
  %v929 = vsel %vm57, %v883, 0.0
  %930 = vadd.xlane.f32.xlu0 %v929
  %v931 = vpop.xlane.xlu0 %930
  %v932 = vlaneseq
  %v933 = vshrl.u32 %v932, 7
  %v934 = vsub.s32 0, %v933
  %v935 = vrot.slane %v593, %v934
  %937 = vbcast.lane.b32.xlu0 %v935, 256
  %v938 = vpop.permute.xlu0 %937
  %s940 = sor.u32 256, 8
  %941 = vbcast.lane.b32.xlu0 %v935, %s940
  %v942 = vpop.permute.xlu0 %941
  %v943 = vlaneseq
  %v944 = vshrl.u32 %v943, 7
  %v945 = vsub.s32 1, %v944
  %v946 = vrot.slane %v593, %v945
  %948 = vbcast.lane.b32.xlu0 %v946, 256
  %v949 = vpop.permute.xlu0 %948
  %s951 = sor.u32 256, 8
  %952 = vbcast.lane.b32.xlu0 %v946, %s951
  %v953 = vpop.permute.xlu0 %952
  %v954 = vlaneseq
  %v955 = vshrl.u32 %v954, 7
  %v956 = vsub.s32 2, %v955
  %v957 = vrot.slane %v593, %v956
  %959 = vbcast.lane.b32.xlu0 %v957, 256
  %v960 = vpop.permute.xlu0 %959
  %s962 = sor.u32 256, 8
  %963 = vbcast.lane.b32.xlu0 %v957, %s962
  %v964 = vpop.permute.xlu0 %963
  %v965 = vlaneseq
  %v966 = vshrl.u32 %v965, 7
  %v967 = vsub.s32 3, %v966
  %v968 = vrot.slane %v593, %v967
  %970 = vbcast.lane.b32.xlu0 %v968, 256
  %v971 = vpop.permute.xlu0 %970
  %s973 = sor.u32 256, 8
  %974 = vbcast.lane.b32.xlu0 %v968, %s973
  %v975 = vpop.permute.xlu0 %974
  %v976 = vlaneseq
  %v977 = vshrl.u32 %v976, 7
  %v978 = vsub.s32 4, %v977
  %v979 = vrot.slane %v593, %v978
  %981 = vbcast.lane.b32.xlu0 %v979, 256
  %v982 = vpop.permute.xlu0 %981
  %s984 = sor.u32 256, 8
  %985 = vbcast.lane.b32.xlu0 %v979, %s984
  %v986 = vpop.permute.xlu0 %985
  %v987 = vlaneseq
  %v988 = vshrl.u32 %v987, 7
  %v989 = vsub.s32 5, %v988
  %v990 = vrot.slane %v593, %v989
  %992 = vbcast.lane.b32.xlu0 %v990, 256
  %v993 = vpop.permute.xlu0 %992
  %s995 = sor.u32 256, 8
  %996 = vbcast.lane.b32.xlu0 %v990, %s995
  %v997 = vpop.permute.xlu0 %996
  %v998 = vlaneseq
  %v999 = vshrl.u32 %v998, 7
  %v1000 = vsub.s32 6, %v999
  %v1001 = vrot.slane %v593, %v1000
  %1003 = vbcast.lane.b32.xlu0 %v1001, 256
  %v1004 = vpop.permute.xlu0 %1003
  %s1006 = sor.u32 256, 8
  %1007 = vbcast.lane.b32.xlu0 %v1001, %s1006
  %v1008 = vpop.permute.xlu0 %1007
  %v1009 = vlaneseq
  %v1010 = vshrl.u32 %v1009, 7
  %v1011 = vsub.s32 7, %v1010
  %v1012 = vrot.slane %v593, %v1011
  %1014 = vbcast.lane.b32.xlu0 %v1012, 256
  %v1015 = vpop.permute.xlu0 %1014
  %s1017 = sor.u32 256, 8
  %1018 = vbcast.lane.b32.xlu0 %v1012, %s1017
  %v1019 = vpop.permute.xlu0 %1018
  %v1036 = vmul.f32 %v822, %v938
  %v1037 = vmul.f32 %v825, %v942
  %v1038 = vmul.f32 %v828, %v949
  %v1039 = vmul.f32 %v831, %v953
  %v1040 = vmul.f32 %v834, %v960
  %v1041 = vmul.f32 %v837, %v964
  %v1042 = vmul.f32 %v840, %v971
  %v1043 = vmul.f32 %v843, %v975
  %v1044 = vmul.f32 %v846, %v982
  %v1045 = vmul.f32 %v849, %v986
  %v1046 = vmul.f32 %v852, %v993
  %v1047 = vmul.f32 %v855, %v997
  %v1048 = vmul.f32 %v858, %v1004
  %v1049 = vmul.f32 %v861, %v1008
  %v1050 = vmul.f32 %v864, %v1015
  %v1051 = vmul.f32 %v867, %v1019
  %v1052 = vadd.f32 %v1036, 1.0
  %v1053 = vadd.f32 %v1037, 1.0
  %v1054 = vadd.f32 %v1038, 1.0
  %v1055 = vadd.f32 %v1039, 1.0
  %v1056 = vadd.f32 %v1040, 1.0
  %v1057 = vadd.f32 %v1041, 1.0
  %v1058 = vadd.f32 %v1042, 1.0
  %v1059 = vadd.f32 %v1043, 1.0
  %v1060 = vadd.f32 %v1044, 1.0
  %v1061 = vadd.f32 %v1045, 1.0
  %v1062 = vadd.f32 %v1046, 1.0
  %v1063 = vadd.f32 %v1047, 1.0
  %v1064 = vadd.f32 %v1048, 1.0
  %v1065 = vadd.f32 %v1049, 1.0
  %v1066 = vadd.f32 %v1050, 1.0
  %v1067 = vadd.f32 %v1051, 1.0
  %vm1068 = vcmp.gt.f32.partialorder %v1052, %v886
  %vm1069 = vcmp.gt.f32.partialorder %v1053, %v889
  %vm1070 = vcmp.gt.f32.partialorder %v1054, %v892
  %vm1071 = vcmp.gt.f32.partialorder %v1055, %v895
  %vm1072 = vcmp.gt.f32.partialorder %v1056, %v898
  %vm1073 = vcmp.gt.f32.partialorder %v1057, %v901
  %vm1074 = vcmp.gt.f32.partialorder %v1058, %v904
  %vm1075 = vcmp.gt.f32.partialorder %v1059, %v907
  %vm1076 = vcmp.gt.f32.partialorder %v1060, %v910
  %vm1077 = vcmp.gt.f32.partialorder %v1061, %v913
  %vm1078 = vcmp.gt.f32.partialorder %v1062, %v916
  %vm1079 = vcmp.gt.f32.partialorder %v1063, %v919
  %vm1080 = vcmp.gt.f32.partialorder %v1064, %v922
  %vm1081 = vcmp.gt.f32.partialorder %v1065, %v925
  %vm1082 = vcmp.gt.f32.partialorder %v1066, %v928
  %vm1083 = vcmp.gt.f32.partialorder %v1067, %v931
  %v1084 = vsel %vm1068, 1, 0
  %v1085 = vsel %vm1069, 1, 0
  %v1086 = vsel %vm1070, 1, 0
  %v1087 = vsel %vm1071, 1, 0
  %v1088 = vsel %vm1072, 1, 0
  %v1089 = vsel %vm1073, 1, 0
  %v1090 = vsel %vm1074, 1, 0
  %v1091 = vsel %vm1075, 1, 0
  %v1092 = vsel %vm1076, 1, 0
  %v1093 = vsel %vm1077, 1, 0
  %v1094 = vsel %vm1078, 1, 0
  %v1095 = vsel %vm1079, 1, 0
  %v1096 = vsel %vm1080, 1, 0
  %v1097 = vsel %vm1081, 1, 0
  %v1098 = vsel %vm1082, 1, 0
  %v1099 = vsel %vm1083, 1, 0
  %v1100 = vcvt.s32.f32 %v1084
  %v1101 = vcvt.s32.f32 %v1085
  %v1102 = vcvt.s32.f32 %v1086
  %v1103 = vcvt.s32.f32 %v1087
  %v1104 = vcvt.s32.f32 %v1088
  %v1105 = vcvt.s32.f32 %v1089
  %v1106 = vcvt.s32.f32 %v1090
  %v1107 = vcvt.s32.f32 %v1091
  %v1108 = vcvt.s32.f32 %v1092
  %v1109 = vcvt.s32.f32 %v1093
  %v1110 = vcvt.s32.f32 %v1094
  %v1111 = vcvt.s32.f32 %v1095
  %v1112 = vcvt.s32.f32 %v1096
  %v1113 = vcvt.s32.f32 %v1097
  %v1114 = vcvt.s32.f32 %v1098
  %v1115 = vcvt.s32.f32 %v1099
  %1132 = vset.pattern.permute.xlu0 0
  %1133 = vperm.xlu0 %1132, %v1100
  %v1134 = vpop.permute.xlu0 %1133
  %1135 = vset.pattern.permute.xlu0 0
  %1136 = vperm.xlu0 %1135, %v1101
  %v1137 = vpop.permute.xlu0 %1136
  %1138 = vset.pattern.permute.xlu0 0
  %1139 = vperm.xlu0 %1138, %v1102
  %v1140 = vpop.permute.xlu0 %1139
  %1141 = vset.pattern.permute.xlu0 0
  %1142 = vperm.xlu0 %1141, %v1103
  %v1143 = vpop.permute.xlu0 %1142
  %1144 = vset.pattern.permute.xlu0 0
  %1145 = vperm.xlu0 %1144, %v1104
  %v1146 = vpop.permute.xlu0 %1145
  %1147 = vset.pattern.permute.xlu0 0
  %1148 = vperm.xlu0 %1147, %v1105
  %v1149 = vpop.permute.xlu0 %1148
  %1150 = vset.pattern.permute.xlu0 0
  %1151 = vperm.xlu0 %1150, %v1106
  %v1152 = vpop.permute.xlu0 %1151
  %1153 = vset.pattern.permute.xlu0 0
  %1154 = vperm.xlu0 %1153, %v1107
  %v1155 = vpop.permute.xlu0 %1154
  %1156 = vset.pattern.permute.xlu0 0
  %1157 = vperm.xlu0 %1156, %v1108
  %v1158 = vpop.permute.xlu0 %1157
  %1159 = vset.pattern.permute.xlu0 0
  %1160 = vperm.xlu0 %1159, %v1109
  %v1161 = vpop.permute.xlu0 %1160
  %1162 = vset.pattern.permute.xlu0 0
  %1163 = vperm.xlu0 %1162, %v1110
  %v1164 = vpop.permute.xlu0 %1163
  %1165 = vset.pattern.permute.xlu0 0
  %1166 = vperm.xlu0 %1165, %v1111
  %v1167 = vpop.permute.xlu0 %1166
  %1168 = vset.pattern.permute.xlu0 0
  %1169 = vperm.xlu0 %1168, %v1112
  %v1170 = vpop.permute.xlu0 %1169
  %1171 = vset.pattern.permute.xlu0 0
  %1172 = vperm.xlu0 %1171, %v1113
  %v1173 = vpop.permute.xlu0 %1172
  %1174 = vset.pattern.permute.xlu0 0
  %1175 = vperm.xlu0 %1174, %v1114
  %v1176 = vpop.permute.xlu0 %1175
  %1177 = vset.pattern.permute.xlu0 0
  %1178 = vperm.xlu0 %1177, %v1115
  %v1179 = vpop.permute.xlu0 %1178
  %v1180 = vlaneseq
  %v1181 = vand.u32 %v1180, 127
  %v1182 = vlaneseq
  %v1183 = vshrl.u32 %v1182, 7
  %v1184 = vsub.s32 %v1181, %v1183
  %v1185 = vrot.slane %v1134, %v1184
  %v1186 = vadd.s32 %v1181, 4294967288
  %v1187 = vlaneseq
  %v1188 = vshrl.u32 %v1187, 7
  %v1189 = vsub.s32 %v1186, %v1188
  %v1190 = vrot.slane %v1137, %v1189
  %vm1191 = vcmask 130112
  %v1192 = vsel %vm1191, %v1190, %v1185
  %v1193 = vlaneseq
  %v1194 = vshrl.u32 %v1193, 7
  %v1195 = vsub.s32 %v1181, %v1194
  %v1196 = vrot.slane %v1140, %v1195
  %v1197 = vlaneseq
  %v1198 = vshrl.u32 %v1197, 7
  %v1199 = vsub.s32 %v1186, %v1198
  %v1200 = vrot.slane %v1143, %v1199
  %v1201 = vsel %vm1191, %v1200, %v1196
  %v1202 = vlaneseq
  %v1203 = vshrl.u32 %v1202, 7
  %v1204 = vsub.s32 %v1181, %v1203
  %v1205 = vrot.slane %v1146, %v1204
  %v1206 = vlaneseq
  %v1207 = vshrl.u32 %v1206, 7
  %v1208 = vsub.s32 %v1186, %v1207
  %v1209 = vrot.slane %v1149, %v1208
  %v1210 = vsel %vm1191, %v1209, %v1205
  %v1211 = vlaneseq
  %v1212 = vshrl.u32 %v1211, 7
  %v1213 = vsub.s32 %v1181, %v1212
  %v1214 = vrot.slane %v1152, %v1213
  %v1215 = vlaneseq
  %v1216 = vshrl.u32 %v1215, 7
  %v1217 = vsub.s32 %v1186, %v1216
  %v1218 = vrot.slane %v1155, %v1217
  %v1219 = vsel %vm1191, %v1218, %v1214
  %v1220 = vlaneseq
  %v1221 = vshrl.u32 %v1220, 7
  %v1222 = vsub.s32 %v1181, %v1221
  %v1223 = vrot.slane %v1158, %v1222
  %v1224 = vlaneseq
  %v1225 = vshrl.u32 %v1224, 7
  %v1226 = vsub.s32 %v1186, %v1225
  %v1227 = vrot.slane %v1161, %v1226
  %v1228 = vsel %vm1191, %v1227, %v1223
  %v1229 = vlaneseq
  %v1230 = vshrl.u32 %v1229, 7
  %v1231 = vsub.s32 %v1181, %v1230
  %v1232 = vrot.slane %v1164, %v1231
  %v1233 = vlaneseq
  %v1234 = vshrl.u32 %v1233, 7
  %v1235 = vsub.s32 %v1186, %v1234
  %v1236 = vrot.slane %v1167, %v1235
  %v1237 = vsel %vm1191, %v1236, %v1232
  %v1238 = vlaneseq
  %v1239 = vshrl.u32 %v1238, 7
  %v1240 = vsub.s32 %v1181, %v1239
  %v1241 = vrot.slane %v1170, %v1240
  %v1242 = vlaneseq
  %v1243 = vshrl.u32 %v1242, 7
  %v1244 = vsub.s32 %v1186, %v1243
  %v1245 = vrot.slane %v1173, %v1244
  %v1246 = vsel %vm1191, %v1245, %v1241
  %v1247 = vlaneseq
  %v1248 = vshrl.u32 %v1247, 7
  %v1249 = vsub.s32 %v1181, %v1248
  %v1250 = vrot.slane %v1176, %v1249
  %v1251 = vlaneseq
  %v1252 = vshrl.u32 %v1251, 7
  %v1253 = vsub.s32 %v1186, %v1252
  %v1254 = vrot.slane %v1179, %v1253
  %v1255 = vsel %vm1191, %v1254, %v1250
  %vm1256 = vcmask 1041409
  %v1257 = vsel %vm1256, %v1201, %v1192
  %vm1258 = vcmask 1042434
  %v1259 = vsel %vm1258, %v1210, %v1257
  %vm1260 = vcmask 1043459
  %v1261 = vsel %vm1260, %v1219, %v1259
  %vm1262 = vcmask 1044484
  %v1263 = vsel %vm1262, %v1228, %v1261
  %vm1264 = vcmask 1045509
  %v1265 = vsel %vm1264, %v1237, %v1263
  %vm1266 = vcmask 1046534
  %v1267 = vsel %vm1266, %v1246, %v1265
  %vm1268 = vcmask 1047559
  %v1269 = vsel %vm1268, %v1255, %v1267
  %v1271 = vsel %vm57, %v1269, 0.0
  %1272 = vadd.xlane.f32.xlu0 %v1271
  %v1273 = vpop.xlane.xlu0 %1272
  %v1274 = vsel %vm1068, %v938, 0.0
  %v1275 = vsel %vm1069, %v942, 0.0
  %v1276 = vsel %vm1070, %v949, 0.0
  %v1277 = vsel %vm1071, %v953, 0.0
  %v1278 = vsel %vm1072, %v960, 0.0
  %v1279 = vsel %vm1073, %v964, 0.0
  %v1280 = vsel %vm1074, %v971, 0.0
  %v1281 = vsel %vm1075, %v975, 0.0
  %v1282 = vsel %vm1076, %v982, 0.0
  %v1283 = vsel %vm1077, %v986, 0.0
  %v1284 = vsel %vm1078, %v993, 0.0
  %v1285 = vsel %vm1079, %v997, 0.0
  %v1286 = vsel %vm1080, %v1004, 0.0
  %v1287 = vsel %vm1081, %v1008, 0.0
  %v1288 = vsel %vm1082, %v1015, 0.0
  %v1289 = vsel %vm1083, %v1019, 0.0
  %1306 = vset.pattern.permute.xlu0 0
  %1307 = vperm.xlu0 %1306, %v1274
  %v1308 = vpop.permute.xlu0 %1307
  %1309 = vset.pattern.permute.xlu0 0
  %1310 = vperm.xlu0 %1309, %v1275
  %v1311 = vpop.permute.xlu0 %1310
  %1312 = vset.pattern.permute.xlu0 0
  %1313 = vperm.xlu0 %1312, %v1276
  %v1314 = vpop.permute.xlu0 %1313
  %1315 = vset.pattern.permute.xlu0 0
  %1316 = vperm.xlu0 %1315, %v1277
  %v1317 = vpop.permute.xlu0 %1316
  %1318 = vset.pattern.permute.xlu0 0
  %1319 = vperm.xlu0 %1318, %v1278
  %v1320 = vpop.permute.xlu0 %1319
  %1321 = vset.pattern.permute.xlu0 0
  %1322 = vperm.xlu0 %1321, %v1279
  %v1323 = vpop.permute.xlu0 %1322
  %1324 = vset.pattern.permute.xlu0 0
  %1325 = vperm.xlu0 %1324, %v1280
  %v1326 = vpop.permute.xlu0 %1325
  %1327 = vset.pattern.permute.xlu0 0
  %1328 = vperm.xlu0 %1327, %v1281
  %v1329 = vpop.permute.xlu0 %1328
  %1330 = vset.pattern.permute.xlu0 0
  %1331 = vperm.xlu0 %1330, %v1282
  %v1332 = vpop.permute.xlu0 %1331
  %1333 = vset.pattern.permute.xlu0 0
  %1334 = vperm.xlu0 %1333, %v1283
  %v1335 = vpop.permute.xlu0 %1334
  %1336 = vset.pattern.permute.xlu0 0
  %1337 = vperm.xlu0 %1336, %v1284
  %v1338 = vpop.permute.xlu0 %1337
  %1339 = vset.pattern.permute.xlu0 0
  %1340 = vperm.xlu0 %1339, %v1285
  %v1341 = vpop.permute.xlu0 %1340
  %1342 = vset.pattern.permute.xlu0 0
  %1343 = vperm.xlu0 %1342, %v1286
  %v1344 = vpop.permute.xlu0 %1343
  %1345 = vset.pattern.permute.xlu0 0
  %1346 = vperm.xlu0 %1345, %v1287
  %v1347 = vpop.permute.xlu0 %1346
  %1348 = vset.pattern.permute.xlu0 0
  %1349 = vperm.xlu0 %1348, %v1288
  %v1350 = vpop.permute.xlu0 %1349
  %1351 = vset.pattern.permute.xlu0 0
  %1352 = vperm.xlu0 %1351, %v1289
  %v1353 = vpop.permute.xlu0 %1352
  %v1354 = vlaneseq
  %v1355 = vshrl.u32 %v1354, 7
  %v1356 = vsub.s32 %v1181, %v1355
  %v1357 = vrot.slane %v1308, %v1356
  %v1358 = vlaneseq
  %v1359 = vshrl.u32 %v1358, 7
  %v1360 = vsub.s32 %v1186, %v1359
  %v1361 = vrot.slane %v1311, %v1360
  %v1362 = vsel %vm1191, %v1361, %v1357
  %v1363 = vlaneseq
  %v1364 = vshrl.u32 %v1363, 7
  %v1365 = vsub.s32 %v1181, %v1364
  %v1366 = vrot.slane %v1314, %v1365
  %v1367 = vlaneseq
  %v1368 = vshrl.u32 %v1367, 7
  %v1369 = vsub.s32 %v1186, %v1368
  %v1370 = vrot.slane %v1317, %v1369
  %v1371 = vsel %vm1191, %v1370, %v1366
  %v1372 = vlaneseq
  %v1373 = vshrl.u32 %v1372, 7
  %v1374 = vsub.s32 %v1181, %v1373
  %v1375 = vrot.slane %v1320, %v1374
  %v1376 = vlaneseq
  %v1377 = vshrl.u32 %v1376, 7
  %v1378 = vsub.s32 %v1186, %v1377
  %v1379 = vrot.slane %v1323, %v1378
  %v1380 = vsel %vm1191, %v1379, %v1375
  %v1381 = vlaneseq
  %v1382 = vshrl.u32 %v1381, 7
  %v1383 = vsub.s32 %v1181, %v1382
  %v1384 = vrot.slane %v1326, %v1383
  %v1385 = vlaneseq
  %v1386 = vshrl.u32 %v1385, 7
  %v1387 = vsub.s32 %v1186, %v1386
  %v1388 = vrot.slane %v1329, %v1387
  %v1389 = vsel %vm1191, %v1388, %v1384
  %v1390 = vlaneseq
  %v1391 = vshrl.u32 %v1390, 7
  %v1392 = vsub.s32 %v1181, %v1391
  %v1393 = vrot.slane %v1332, %v1392
  %v1394 = vlaneseq
  %v1395 = vshrl.u32 %v1394, 7
  %v1396 = vsub.s32 %v1186, %v1395
  %v1397 = vrot.slane %v1335, %v1396
  %v1398 = vsel %vm1191, %v1397, %v1393
  %v1399 = vlaneseq
  %v1400 = vshrl.u32 %v1399, 7
  %v1401 = vsub.s32 %v1181, %v1400
  %v1402 = vrot.slane %v1338, %v1401
  %v1403 = vlaneseq
  %v1404 = vshrl.u32 %v1403, 7
  %v1405 = vsub.s32 %v1186, %v1404
  %v1406 = vrot.slane %v1341, %v1405
  %v1407 = vsel %vm1191, %v1406, %v1402
  %v1408 = vlaneseq
  %v1409 = vshrl.u32 %v1408, 7
  %v1410 = vsub.s32 %v1181, %v1409
  %v1411 = vrot.slane %v1344, %v1410
  %v1412 = vlaneseq
  %v1413 = vshrl.u32 %v1412, 7
  %v1414 = vsub.s32 %v1186, %v1413
  %v1415 = vrot.slane %v1347, %v1414
  %v1416 = vsel %vm1191, %v1415, %v1411
  %v1417 = vlaneseq
  %v1418 = vshrl.u32 %v1417, 7
  %v1419 = vsub.s32 %v1181, %v1418
  %v1420 = vrot.slane %v1350, %v1419
  %v1421 = vlaneseq
  %v1422 = vshrl.u32 %v1421, 7
  %v1423 = vsub.s32 %v1186, %v1422
  %v1424 = vrot.slane %v1353, %v1423
  %v1425 = vsel %vm1191, %v1424, %v1420
  %v1426 = vsel %vm1256, %v1371, %v1362
  %v1427 = vsel %vm1258, %v1380, %v1426
  %v1428 = vsel %vm1260, %v1389, %v1427
  %v1429 = vsel %vm1262, %v1398, %v1428
  %v1430 = vsel %vm1264, %v1407, %v1429
  %v1431 = vsel %vm1266, %v1416, %v1430
  %v1432 = vsel %vm1268, %v1425, %v1431
  %v1434 = vsel %vm57, %v1432, 0.0
  %1435 = vadd.xlane.f32.xlu0 %v1434
  %v1436 = vpop.xlane.xlu0 %1435
  %v1437 = vsub.f32 %v1436, 1.0
  %v1438 = vrcp.pop %v1273
  %v1439 = vmul.f32 %v1437, %v1438
  %v1440 = vsub.f32 %v593, %v1439
  %v1441 = vmax.f32 %v1440, 0.0
  %v1442 = vsub.f32 1.3, %v1441
  %v1443 = vadd.f32 %v1441, 1e-15
  %v1444 = vlog2.pop %v1443
  %v1445 = vmul.f32 %v1444, 0.6931472
  %v1446 = vmul.f32 %v1441, %v1445
  %v1447 = vsel %vm57, %v1446, 0.0
  %1448 = vadd.xlane.f32.xlu0 %v1447
  %v1449 = vpop.xlane.xlu0 %1448
  %v1450 = vadd.f32 %v1449, 0.0
  %v1451 = vld [vmem:[%s6] sm:$0xff]
  %v1452 = vld [vmem:[%s6 + $0x8] sm:$0xff]
  %s1453 = scalar_lea.vmem %s6, 16
  %v1454 = vld [vmem:[%s1453] sm:$0xff]
  %v1455 = vld [vmem:[%s1453 + $0x8] sm:$0xff]
  %v1456 = vmul.f32 %v1441, %v51
  %v1458 = vsel %vm57, %v1456, 0
  %1460 = vmatprep.subr.mxu0 0.0
  %1461 = vmatpush1.msra.mxu0 %v31
  %1462 = vmatprep.subr.mxu0 0.0
  %1463 = vmatpush1.msra.mxu0 %v32
  %1464 = vmatprep.subr.mxu0 0.0
  %1465 = vmatpush1.msra.mxu0 0.0
  %1466 = vmatprep.subr.mxu0 0.0
  %1467 = vmatpush1.msra.mxu0 0.0
  %1468 = vmatprep.subr.mxu0 0.0
  %1469 = vmatpush1.msra.mxu0 0.0
  %1470 = vmatprep.subr.mxu0 0.0
  %1471 = vmatpush1.msra.mxu0 0.0
  %1472 = vmatprep.subr.mxu0 0.0
  %1473 = vmatpush1.msra.mxu0 0.0
  %1474 = vmatprep.subr.mxu0 0.0
  %1475 = vmatpush1.msra.mxu0 0.0
  %1476 = vmatprep.subr.mxu0 0.0
  %1477 = vmatpush1.msra.mxu0 0.0
  %1478 = vmatprep.subr.mxu0 0.0
  %1479 = vmatpush1.msra.mxu0 0.0
  %1480 = vmatprep.subr.mxu0 0.0
  %1481 = vmatpush1.msra.mxu0 0.0
  %1482 = vmatprep.subr.mxu0 0.0
  %1483 = vmatpush1.msra.mxu0 0.0
  %1484 = vmatprep.subr.mxu0 0.0
  %1485 = vmatpush1.msra.mxu0 0.0
  %1486 = vmatprep.subr.mxu0 0.0
  %1487 = vmatpush1.msra.mxu0 0.0
  %1488 = vmatprep.subr.mxu0 0.0
  %1489 = vmatpush1.msra.mxu0 0.0
  %1490 = vmatprep.subr.mxu0 0.0
  %1491 = vmatpush1.msra.mxu0 0.0
  %1492 = vmatprep.subr.mxu0 0.0
  %1493 = vmatpush1.msra.mxu0 0.0
  %1494 = vmatprep.subr.mxu0 0.0
  %1495 = vmatpush1.msra.mxu0 0.0
  %1496 = vmatprep.subr.mxu0 0.0
  %1497 = vmatpush1.msra.mxu0 0.0
  %1498 = vmatprep.subr.mxu0 0.0
  %1499 = vmatpush1.msra.mxu0 0.0
  %1500 = vmatprep.subr.mxu0 0.0
  %1501 = vmatpush1.msra.mxu0 0.0
  %1502 = vmatprep.subr.mxu0 0.0
  %1503 = vmatpush1.msra.mxu0 0.0
  %1504 = vmatprep.subr.mxu0 0.0
  %1505 = vmatpush1.msra.mxu0 0.0
  %1506 = vmatprep.subr.mxu0 0.0
  %1507 = vmatpush1.msra.mxu0 0.0
  %1508 = vmatprep.subr.mxu0 0.0
  %1509 = vmatpush1.msra.mxu0 0.0
  %1510 = vmatprep.subr.mxu0 0.0
  %1511 = vmatpush1.msra.mxu0 0.0
  %1512 = vmatprep.subr.mxu0 0.0
  %1513 = vmatpush1.msra.mxu0 0.0
  %1514 = vmatprep.subr.mxu0 0.0
  %1515 = vmatpush1.msra.mxu0 0.0
  %1516 = vmatprep.subr.mxu0 0.0
  %1517 = vmatpush1.msra.mxu0 0.0
  %1518 = vmatprep.subr.mxu0 0.0
  %1519 = vmatpush1.msra.mxu0 0.0
  %1520 = vmatprep.subr.mxu0 0.0
  %1521 = vmatpush1.msra.mxu0 0.0
  %1522 = vmatprep.subr.mxu0 0.0
  %1523 = vmatpush1.msra.mxu0 0.0
  %1524 = vmatprep.mubr.f32.mxu0 0.0
  %1525 = vmatmul.mubr.f32.gmra.mrb[0].mxu0 %v1458
  %v1526 = vpop.f32.mrb[0].mxu0
  %v1527 = vadd.f32 0.0, %v1526
  %v1528 = vpop.f32.mrb[0].mxu0
  %1529 = vdwg.mxu0
  %v1530 = vsel %vm131, %v1527, 0.0
  %v1531 = vrot.slane %v1530, 4
  %v1532 = vadd.f32 %v1530, %v1531
  %v1533 = vrot.slane %v1532, 2
  %v1534 = vadd.f32 %v1532, %v1533
  %v1535 = vrot.slane %v1534, 1
  %v1536 = vadd.f32 %v1534, %v1535
  %v1537 = vmul.f32 %v1527, %v1527
  %v1538 = vsel %vm131, %v1537, 0.0
  %v1539 = vrot.slane %v1538, 4
  %v1540 = vadd.f32 %v1538, %v1539
  %v1541 = vrot.slane %v1540, 2
  %v1542 = vadd.f32 %v1540, %v1541
  %v1543 = vrot.slane %v1542, 1
  %v1544 = vadd.f32 %v1542, %v1543
  %v1545 = vmul.f32 %v1536, 0.125
  %v1546 = vmul.f32 %v1544, 0.125
  %v1547 = vmul.f32 %v1545, %v1545
  %v1548 = vsub.f32 %v1546, %v1547
  %v1549 = vmax.f32 %v1548, 0.0
  %v1550 = vsub.f32 %v1527, %v1545
  %v1551 = vadd.f32 %v1549, 1e-05
  %v1552 = vrsqrt.pop %v1551
  %v1553 = vmul.f32 %v1550, %v1552
  %v1554 = vsub.f32 0.0, %v1553
  %v1555 = vmul.f32 %v1554, 1.442695
  %v1556 = vpow.pop %v1555
  %v1557 = vadd.f32 %v1556, 1.0
  %v1558 = vrcp.pop %v1557
  %1560 = vrot.lane.b32.xlu0 %v1558, 112
  %v1561 = vpop.permute.xlu0 %1560
  %v1563 = vmul.f32 %v1553, %v1561
  %v1565 = vsel %vm57, %v1563, 0
  %1567 = vmatprep.subr.mxu0 0.0
  %1568 = vmatpush1.msra.mxu0 %v33
  %1569 = vmatprep.subr.mxu0 0.0
  %1570 = vmatpush1.msra.mxu0 %v34
  %1571 = vmatprep.subr.mxu0 0.0
  %1572 = vmatpush1.msra.mxu0 0.0
  %1573 = vmatprep.subr.mxu0 0.0
  %1574 = vmatpush1.msra.mxu0 0.0
  %1575 = vmatprep.subr.mxu0 0.0
  %1576 = vmatpush1.msra.mxu0 0.0
  %1577 = vmatprep.subr.mxu0 0.0
  %1578 = vmatpush1.msra.mxu0 0.0
  %1579 = vmatprep.subr.mxu0 0.0
  %1580 = vmatpush1.msra.mxu0 0.0
  %1581 = vmatprep.subr.mxu0 0.0
  %1582 = vmatpush1.msra.mxu0 0.0
  %1583 = vmatprep.subr.mxu0 0.0
  %1584 = vmatpush1.msra.mxu0 0.0
  %1585 = vmatprep.subr.mxu0 0.0
  %1586 = vmatpush1.msra.mxu0 0.0
  %1587 = vmatprep.subr.mxu0 0.0
  %1588 = vmatpush1.msra.mxu0 0.0
  %1589 = vmatprep.subr.mxu0 0.0
  %1590 = vmatpush1.msra.mxu0 0.0
  %1591 = vmatprep.subr.mxu0 0.0
  %1592 = vmatpush1.msra.mxu0 0.0
  %1593 = vmatprep.subr.mxu0 0.0
  %1594 = vmatpush1.msra.mxu0 0.0
  %1595 = vmatprep.subr.mxu0 0.0
  %1596 = vmatpush1.msra.mxu0 0.0
  %1597 = vmatprep.subr.mxu0 0.0
  %1598 = vmatpush1.msra.mxu0 0.0
  %1599 = vmatprep.subr.mxu0 0.0
  %1600 = vmatpush1.msra.mxu0 0.0
  %1601 = vmatprep.subr.mxu0 0.0
  %1602 = vmatpush1.msra.mxu0 0.0
  %1603 = vmatprep.subr.mxu0 0.0
  %1604 = vmatpush1.msra.mxu0 0.0
  %1605 = vmatprep.subr.mxu0 0.0
  %1606 = vmatpush1.msra.mxu0 0.0
  %1607 = vmatprep.subr.mxu0 0.0
  %1608 = vmatpush1.msra.mxu0 0.0
  %1609 = vmatprep.subr.mxu0 0.0
  %1610 = vmatpush1.msra.mxu0 0.0
  %1611 = vmatprep.subr.mxu0 0.0
  %1612 = vmatpush1.msra.mxu0 0.0
  %1613 = vmatprep.subr.mxu0 0.0
  %1614 = vmatpush1.msra.mxu0 0.0
  %1615 = vmatprep.subr.mxu0 0.0
  %1616 = vmatpush1.msra.mxu0 0.0
  %1617 = vmatprep.subr.mxu0 0.0
  %1618 = vmatpush1.msra.mxu0 0.0
  %1619 = vmatprep.subr.mxu0 0.0
  %1620 = vmatpush1.msra.mxu0 0.0
  %1621 = vmatprep.subr.mxu0 0.0
  %1622 = vmatpush1.msra.mxu0 0.0
  %1623 = vmatprep.subr.mxu0 0.0
  %1624 = vmatpush1.msra.mxu0 0.0
  %1625 = vmatprep.subr.mxu0 0.0
  %1626 = vmatpush1.msra.mxu0 0.0
  %1627 = vmatprep.subr.mxu0 0.0
  %1628 = vmatpush1.msra.mxu0 0.0
  %1629 = vmatprep.subr.mxu0 0.0
  %1630 = vmatpush1.msra.mxu0 0.0
  %1631 = vmatprep.mubr.f32.mxu0 0.0
  %1632 = vmatmul.mubr.f32.gmra.mrb[0].mxu0 %v1565
  %v1633 = vpop.f32.mrb[0].mxu0
  %v1634 = vadd.f32 0.0, %v1633
  %v1635 = vpop.f32.mrb[0].mxu0
  %1636 = vdwg.mxu0
  %v1637 = vsel %vm131, %v1634, 0.0
  %v1638 = vrot.slane %v1637, 4
  %v1639 = vadd.f32 %v1637, %v1638
  %v1640 = vrot.slane %v1639, 2
  %v1641 = vadd.f32 %v1639, %v1640
  %v1642 = vrot.slane %v1641, 1
  %v1643 = vadd.f32 %v1641, %v1642
  %v1644 = vmul.f32 %v1634, %v1634
  %v1645 = vsel %vm131, %v1644, 0.0
  %v1646 = vrot.slane %v1645, 4
  %v1647 = vadd.f32 %v1645, %v1646
  %v1648 = vrot.slane %v1647, 2
  %v1649 = vadd.f32 %v1647, %v1648
  %v1650 = vrot.slane %v1649, 1
  %v1651 = vadd.f32 %v1649, %v1650
  %v1652 = vmul.f32 %v1643, 0.125
  %v1653 = vmul.f32 %v1651, 0.125
  %v1654 = vmul.f32 %v1652, %v1652
  %v1655 = vsub.f32 %v1653, %v1654
  %v1656 = vmax.f32 %v1655, 0.0
  %v1657 = vsub.f32 %v1634, %v1652
  %v1658 = vadd.f32 %v1656, 1e-05
  %v1659 = vrsqrt.pop %v1658
  %v1660 = vmul.f32 %v1657, %v1659
  %v1661 = vsub.f32 0.0, %v1660
  %v1662 = vmul.f32 %v1661, 1.442695
  %v1663 = vpow.pop %v1662
  %v1664 = vadd.f32 %v1663, 1.0
  %v1665 = vrcp.pop %v1664
  %1667 = vrot.lane.b32.xlu0 %v1665, 112
  %v1668 = vpop.permute.xlu0 %1667
  %v1670 = vmul.f32 %v1660, %v1668
  %v1671 = vadd.f32 %v1563, %v1670
  %v1672 = vmul.f32 %v1671, 0.70710677
  %v1674 = vsel %vm57, %v1672, 0
  %1676 = vmatprep.subr.mxu0 0.0
  %1677 = vmatpush1.msra.mxu0 %v1451
  %1678 = vmatprep.subr.mxu0 0.0
  %1679 = vmatpush1.msra.mxu0 %v1452
  %1680 = vmatprep.subr.mxu0 0.0
  %1681 = vmatpush1.msra.mxu0 0.0
  %1682 = vmatprep.subr.mxu0 0.0
  %1683 = vmatpush1.msra.mxu0 0.0
  %1684 = vmatprep.subr.mxu0 0.0
  %1685 = vmatpush1.msra.mxu0 0.0
  %1686 = vmatprep.subr.mxu0 0.0
  %1687 = vmatpush1.msra.mxu0 0.0
  %1688 = vmatprep.subr.mxu0 0.0
  %1689 = vmatpush1.msra.mxu0 0.0
  %1690 = vmatprep.subr.mxu0 0.0
  %1691 = vmatpush1.msra.mxu0 0.0
  %1692 = vmatprep.subr.mxu0 0.0
  %1693 = vmatpush1.msra.mxu0 0.0
  %1694 = vmatprep.subr.mxu0 0.0
  %1695 = vmatpush1.msra.mxu0 0.0
  %1696 = vmatprep.subr.mxu0 0.0
  %1697 = vmatpush1.msra.mxu0 0.0
  %1698 = vmatprep.subr.mxu0 0.0
  %1699 = vmatpush1.msra.mxu0 0.0
  %1700 = vmatprep.subr.mxu0 0.0
  %1701 = vmatpush1.msra.mxu0 0.0
  %1702 = vmatprep.subr.mxu0 0.0
  %1703 = vmatpush1.msra.mxu0 0.0
  %1704 = vmatprep.subr.mxu0 0.0
  %1705 = vmatpush1.msra.mxu0 0.0
  %1706 = vmatprep.subr.mxu0 0.0
  %1707 = vmatpush1.msra.mxu0 0.0
  %1708 = vmatprep.subr.mxu0 0.0
  %1709 = vmatpush1.msra.mxu0 0.0
  %1710 = vmatprep.subr.mxu0 0.0
  %1711 = vmatpush1.msra.mxu0 0.0
  %1712 = vmatprep.subr.mxu0 0.0
  %1713 = vmatpush1.msra.mxu0 0.0
  %1714 = vmatprep.subr.mxu0 0.0
  %1715 = vmatpush1.msra.mxu0 0.0
  %1716 = vmatprep.subr.mxu0 0.0
  %1717 = vmatpush1.msra.mxu0 0.0
  %1718 = vmatprep.subr.mxu0 0.0
  %1719 = vmatpush1.msra.mxu0 0.0
  %1720 = vmatprep.subr.mxu0 0.0
  %1721 = vmatpush1.msra.mxu0 0.0
  %1722 = vmatprep.subr.mxu0 0.0
  %1723 = vmatpush1.msra.mxu0 0.0
  %1724 = vmatprep.subr.mxu0 0.0
  %1725 = vmatpush1.msra.mxu0 0.0
  %1726 = vmatprep.subr.mxu0 0.0
  %1727 = vmatpush1.msra.mxu0 0.0
  %1728 = vmatprep.subr.mxu0 0.0
  %1729 = vmatpush1.msra.mxu0 0.0
  %1730 = vmatprep.subr.mxu0 0.0
  %1731 = vmatpush1.msra.mxu0 0.0
  %1732 = vmatprep.subr.mxu0 0.0
  %1733 = vmatpush1.msra.mxu0 0.0
  %1734 = vmatprep.subr.mxu0 0.0
  %1735 = vmatpush1.msra.mxu0 0.0
  %1736 = vmatprep.subr.mxu0 0.0
  %1737 = vmatpush1.msra.mxu0 0.0
  %1738 = vmatprep.subr.mxu0 0.0
  %1739 = vmatpush1.msra.mxu0 0.0
  %1740 = vmatprep.mubr.f32.mxu0 0.0
  %1741 = vmatmul.mubr.f32.gmra.mrb[0].mxu0 %v1674
  %v1742 = vpop.f32.mrb[0].mxu0
  %v1743 = vadd.f32 0.0, %v1742
  %v1744 = vpop.f32.mrb[0].mxu0
  %1745 = vdwg.mxu0
  %v1746 = vsel %vm131, %v1743, 0.0
  %v1747 = vrot.slane %v1746, 4
  %v1748 = vadd.f32 %v1746, %v1747
  %v1749 = vrot.slane %v1748, 2
  %v1750 = vadd.f32 %v1748, %v1749
  %v1751 = vrot.slane %v1750, 1
  %v1752 = vadd.f32 %v1750, %v1751
  %v1753 = vmul.f32 %v1743, %v1743
  %v1754 = vsel %vm131, %v1753, 0.0
  %v1755 = vrot.slane %v1754, 4
  %v1756 = vadd.f32 %v1754, %v1755
  %v1757 = vrot.slane %v1756, 2
  %v1758 = vadd.f32 %v1756, %v1757
  %v1759 = vrot.slane %v1758, 1
  %v1760 = vadd.f32 %v1758, %v1759
  %v1761 = vmul.f32 %v1752, 0.125
  %v1762 = vmul.f32 %v1760, 0.125
  %v1763 = vmul.f32 %v1761, %v1761
  %v1764 = vsub.f32 %v1762, %v1763
  %v1765 = vmax.f32 %v1764, 0.0
  %v1766 = vsub.f32 %v1743, %v1761
  %v1767 = vadd.f32 %v1765, 1e-05
  %v1768 = vrsqrt.pop %v1767
  %v1769 = vmul.f32 %v1766, %v1768
  %v1770 = vsub.f32 0.0, %v1769
  %v1771 = vmul.f32 %v1770, 1.442695
  %v1772 = vpow.pop %v1771
  %v1773 = vadd.f32 %v1772, 1.0
  %v1774 = vrcp.pop %v1773
  %1776 = vrot.lane.b32.xlu0 %v1774, 112
  %v1777 = vpop.permute.xlu0 %1776
  %v1779 = vmul.f32 %v1769, %v1777
  %v1780 = vadd.f32 %v1672, %v1779
  %v1781 = vmul.f32 %v1780, 0.70710677
  %v1783 = vsel %vm57, %v1781, 0
  %1785 = vmatprep.subr.mxu0 0.0
  %1786 = vmatpush1.msra.mxu0 %v1454
  %1787 = vmatprep.subr.mxu0 0.0
  %1788 = vmatpush1.msra.mxu0 %v1455
  %1789 = vmatprep.subr.mxu0 0.0
  %1790 = vmatpush1.msra.mxu0 0.0
  %1791 = vmatprep.subr.mxu0 0.0
  %1792 = vmatpush1.msra.mxu0 0.0
  %1793 = vmatprep.subr.mxu0 0.0
  %1794 = vmatpush1.msra.mxu0 0.0
  %1795 = vmatprep.subr.mxu0 0.0
  %1796 = vmatpush1.msra.mxu0 0.0
  %1797 = vmatprep.subr.mxu0 0.0
  %1798 = vmatpush1.msra.mxu0 0.0
  %1799 = vmatprep.subr.mxu0 0.0
  %1800 = vmatpush1.msra.mxu0 0.0
  %1801 = vmatprep.subr.mxu0 0.0
  %1802 = vmatpush1.msra.mxu0 0.0
  %1803 = vmatprep.subr.mxu0 0.0
  %1804 = vmatpush1.msra.mxu0 0.0
  %1805 = vmatprep.subr.mxu0 0.0
  %1806 = vmatpush1.msra.mxu0 0.0
  %1807 = vmatprep.subr.mxu0 0.0
  %1808 = vmatpush1.msra.mxu0 0.0
  %1809 = vmatprep.subr.mxu0 0.0
  %1810 = vmatpush1.msra.mxu0 0.0
  %1811 = vmatprep.subr.mxu0 0.0
  %1812 = vmatpush1.msra.mxu0 0.0
  %1813 = vmatprep.subr.mxu0 0.0
  %1814 = vmatpush1.msra.mxu0 0.0
  %1815 = vmatprep.subr.mxu0 0.0
  %1816 = vmatpush1.msra.mxu0 0.0
  %1817 = vmatprep.subr.mxu0 0.0
  %1818 = vmatpush1.msra.mxu0 0.0
  %1819 = vmatprep.subr.mxu0 0.0
  %1820 = vmatpush1.msra.mxu0 0.0
  %1821 = vmatprep.subr.mxu0 0.0
  %1822 = vmatpush1.msra.mxu0 0.0
  %1823 = vmatprep.subr.mxu0 0.0
  %1824 = vmatpush1.msra.mxu0 0.0
  %1825 = vmatprep.subr.mxu0 0.0
  %1826 = vmatpush1.msra.mxu0 0.0
  %1827 = vmatprep.subr.mxu0 0.0
  %1828 = vmatpush1.msra.mxu0 0.0
  %1829 = vmatprep.subr.mxu0 0.0
  %1830 = vmatpush1.msra.mxu0 0.0
  %1831 = vmatprep.subr.mxu0 0.0
  %1832 = vmatpush1.msra.mxu0 0.0
  %1833 = vmatprep.subr.mxu0 0.0
  %1834 = vmatpush1.msra.mxu0 0.0
  %1835 = vmatprep.subr.mxu0 0.0
  %1836 = vmatpush1.msra.mxu0 0.0
  %1837 = vmatprep.subr.mxu0 0.0
  %1838 = vmatpush1.msra.mxu0 0.0
  %1839 = vmatprep.subr.mxu0 0.0
  %1840 = vmatpush1.msra.mxu0 0.0
  %1841 = vmatprep.subr.mxu0 0.0
  %1842 = vmatpush1.msra.mxu0 0.0
  %1843 = vmatprep.subr.mxu0 0.0
  %1844 = vmatpush1.msra.mxu0 0.0
  %1845 = vmatprep.subr.mxu0 0.0
  %1846 = vmatpush1.msra.mxu0 0.0
  %1847 = vmatprep.subr.mxu0 0.0
  %1848 = vmatpush1.msra.mxu0 0.0
  %1849 = vmatprep.mubr.f32.mxu0 0.0
  %1850 = vmatmul.mubr.f32.gmra.mrb[0].mxu0 %v1783
  %v1851 = vpop.f32.mrb[0].mxu0
  %v1852 = vadd.f32 0.0, %v1851
  %v1853 = vpop.f32.mrb[0].mxu0
  %1854 = vdwg.mxu0
  %v1855 = vsel %vm131, %v1852, 0.0
  %v1856 = vrot.slane %v1855, 4
  %v1857 = vadd.f32 %v1855, %v1856
  %v1858 = vrot.slane %v1857, 2
  %v1859 = vadd.f32 %v1857, %v1858
  %v1860 = vrot.slane %v1859, 1
  %v1861 = vadd.f32 %v1859, %v1860
  %v1862 = vmul.f32 %v1852, %v1852
  %v1863 = vsel %vm131, %v1862, 0.0
  %v1864 = vrot.slane %v1863, 4
  %v1865 = vadd.f32 %v1863, %v1864
  %v1866 = vrot.slane %v1865, 2
  %v1867 = vadd.f32 %v1865, %v1866
  %v1868 = vrot.slane %v1867, 1
  %v1869 = vadd.f32 %v1867, %v1868
  %v1870 = vmul.f32 %v1861, 0.125
  %v1871 = vmul.f32 %v1869, 0.125
  %v1872 = vmul.f32 %v1870, %v1870
  %v1873 = vsub.f32 %v1871, %v1872
  %v1874 = vmax.f32 %v1873, 0.0
  %v1875 = vsub.f32 %v1852, %v1870
  %v1876 = vadd.f32 %v1874, 1e-05
  %v1877 = vrsqrt.pop %v1876
  %v1878 = vmul.f32 %v1875, %v1877
  %v1879 = vsub.f32 0.0, %v1878
  %v1880 = vmul.f32 %v1879, 1.442695
  %v1881 = vpow.pop %v1880
  %v1882 = vadd.f32 %v1881, 1.0
  %v1883 = vrcp.pop %v1882
  %1885 = vrot.lane.b32.xlu0 %v1883, 112
  %v1886 = vpop.permute.xlu0 %1885
  %v1888 = vmul.f32 %v1878, %v1886
  %v1889 = vadd.f32 %v1781, %v1888
  %v1890 = vmul.f32 %v1889, 0.70710677
  %v1891 = vmax.f32 %v1890, 0.0
  %s1892 = scalar_lea.vmem %s7, 8
  %v1893 = vld [vmem:[%s1892] sm:$0xff]
  %1895 = vrot.lane.b32.xlu0 %v1890, 120
  %v1896 = vpop.permute.xlu0 %1895
  %v1897 = vsel %vm497, %v1896, 0
  %1899 = vmatprep.subr.mxu0 0.0
  %1900 = vmatpush1.msra.mxu0 %v1893
  %1901 = vmatprep.subr.mxu0 0.0
  %1902 = vmatpush1.msra.mxu0 0.0
  %1903 = vmatprep.subr.mxu0 0.0
  %1904 = vmatpush1.msra.mxu0 0.0
  %1905 = vmatprep.subr.mxu0 0.0
  %1906 = vmatpush1.msra.mxu0 0.0
  %1907 = vmatprep.subr.mxu0 0.0
  %1908 = vmatpush1.msra.mxu0 0.0
  %1909 = vmatprep.subr.mxu0 0.0
  %1910 = vmatpush1.msra.mxu0 0.0
  %1911 = vmatprep.subr.mxu0 0.0
  %1912 = vmatpush1.msra.mxu0 0.0
  %1913 = vmatprep.subr.mxu0 0.0
  %1914 = vmatpush1.msra.mxu0 0.0
  %1915 = vmatprep.subr.mxu0 0.0
  %1916 = vmatpush1.msra.mxu0 0.0
  %1917 = vmatprep.subr.mxu0 0.0
  %1918 = vmatpush1.msra.mxu0 0.0
  %1919 = vmatprep.subr.mxu0 0.0
  %1920 = vmatpush1.msra.mxu0 0.0
  %1921 = vmatprep.subr.mxu0 0.0
  %1922 = vmatpush1.msra.mxu0 0.0
  %1923 = vmatprep.subr.mxu0 0.0
  %1924 = vmatpush1.msra.mxu0 0.0
  %1925 = vmatprep.subr.mxu0 0.0
  %1926 = vmatpush1.msra.mxu0 0.0
  %1927 = vmatprep.subr.mxu0 0.0
  %1928 = vmatpush1.msra.mxu0 0.0
  %1929 = vmatprep.subr.mxu0 0.0
  %1930 = vmatpush1.msra.mxu0 0.0
  %1931 = vmatprep.subr.mxu0 0.0
  %1932 = vmatpush1.msra.mxu0 0.0
  %1933 = vmatprep.subr.mxu0 0.0
  %1934 = vmatpush1.msra.mxu0 0.0
  %1935 = vmatprep.subr.mxu0 0.0
  %1936 = vmatpush1.msra.mxu0 0.0
  %1937 = vmatprep.subr.mxu0 0.0
  %1938 = vmatpush1.msra.mxu0 0.0
  %1939 = vmatprep.subr.mxu0 0.0
  %1940 = vmatpush1.msra.mxu0 0.0
  %1941 = vmatprep.subr.mxu0 0.0
  %1942 = vmatpush1.msra.mxu0 0.0
  %1943 = vmatprep.subr.mxu0 0.0
  %1944 = vmatpush1.msra.mxu0 0.0
  %1945 = vmatprep.subr.mxu0 0.0
  %1946 = vmatpush1.msra.mxu0 0.0
  %1947 = vmatprep.subr.mxu0 0.0
  %1948 = vmatpush1.msra.mxu0 0.0
  %1949 = vmatprep.subr.mxu0 0.0
  %1950 = vmatpush1.msra.mxu0 0.0
  %1951 = vmatprep.subr.mxu0 0.0
  %1952 = vmatpush1.msra.mxu0 0.0
  %1953 = vmatprep.subr.mxu0 0.0
  %1954 = vmatpush1.msra.mxu0 0.0
  %1955 = vmatprep.subr.mxu0 0.0
  %1956 = vmatpush1.msra.mxu0 0.0
  %1957 = vmatprep.subr.mxu0 0.0
  %1958 = vmatpush1.msra.mxu0 0.0
  %1959 = vmatprep.subr.mxu0 0.0
  %1960 = vmatpush1.msra.mxu0 0.0
  %1961 = vmatprep.subr.mxu0 0.0
  %1962 = vmatpush1.msra.mxu0 0.0
  %1963 = vmatprep.mubr.f32.mxu0 0.0
  %1964 = vmatmul.mubr.f32.gmra.mrb[0].mxu0 %v1897
  %v1965 = vpop.f32.mrb[0].mxu0
  %v1966 = vadd.f32 0.0, %v1965
  %v1967 = vpop.f32.mrb[0].mxu0
  %1968 = vdwg.mxu0
  %v1969 = vsel %vm57, %v1966, 0.0
  %v1970 = vrot.slane %v1969, 4
  %v1971 = vadd.f32 %v1969, %v1970
  %v1972 = vrot.slane %v1971, 2
  %v1973 = vadd.f32 %v1971, %v1972
  %v1974 = vrot.slane %v1973, 1
  %v1975 = vadd.f32 %v1973, %v1974
  %v1976 = vmul.f32 %v1966, %v1966
  %v1977 = vsel %vm57, %v1976, 0.0
  %v1978 = vrot.slane %v1977, 4
  %v1979 = vadd.f32 %v1977, %v1978
  %v1980 = vrot.slane %v1979, 2
  %v1981 = vadd.f32 %v1979, %v1980
  %v1982 = vrot.slane %v1981, 1
  %v1983 = vadd.f32 %v1981, %v1982
  %v1984 = vmul.f32 %v1975, 0.125
  %v1985 = vmul.f32 %v1983, 0.125
  %v1986 = vmul.f32 %v1984, %v1984
  %v1987 = vsub.f32 %v1985, %v1986
  %v1988 = vmax.f32 %v1987, 0.0
  %v1989 = vsub.f32 %v1966, %v1984
  %v1990 = vadd.f32 %v1988, 1e-05
  %v1991 = vrsqrt.pop %v1990
  %v1992 = vmul.f32 %v1989, %v1991
  %v1993 = vmul.f32 %v1992, %v1442
  %v1994 = vlaneseq
  %v1995 = vshrl.u32 %v1994, 7
  %v1996 = vsub.s32 0, %v1995
  %v1997 = vrot.slane %v1993, %v1996
  %1999 = vbcast.lane.b32.xlu0 %v1997, 256
  %v2000 = vpop.permute.xlu0 %1999
  %s2002 = sor.u32 256, 8
  %2003 = vbcast.lane.b32.xlu0 %v1997, %s2002
  %v2004 = vpop.permute.xlu0 %2003
  %v2005 = vlaneseq
  %v2006 = vshrl.u32 %v2005, 7
  %v2007 = vsub.s32 1, %v2006
  %v2008 = vrot.slane %v1993, %v2007
  %2010 = vbcast.lane.b32.xlu0 %v2008, 256
  %v2011 = vpop.permute.xlu0 %2010
  %s2013 = sor.u32 256, 8
  %2014 = vbcast.lane.b32.xlu0 %v2008, %s2013
  %v2015 = vpop.permute.xlu0 %2014
  %v2016 = vlaneseq
  %v2017 = vshrl.u32 %v2016, 7
  %v2018 = vsub.s32 2, %v2017
  %v2019 = vrot.slane %v1993, %v2018
  %2021 = vbcast.lane.b32.xlu0 %v2019, 256
  %v2022 = vpop.permute.xlu0 %2021
  %s2024 = sor.u32 256, 8
  %2025 = vbcast.lane.b32.xlu0 %v2019, %s2024
  %v2026 = vpop.permute.xlu0 %2025
  %v2027 = vlaneseq
  %v2028 = vshrl.u32 %v2027, 7
  %v2029 = vsub.s32 3, %v2028
  %v2030 = vrot.slane %v1993, %v2029
  %2032 = vbcast.lane.b32.xlu0 %v2030, 256
  %v2033 = vpop.permute.xlu0 %2032
  %s2035 = sor.u32 256, 8
  %2036 = vbcast.lane.b32.xlu0 %v2030, %s2035
  %v2037 = vpop.permute.xlu0 %2036
  %v2038 = vlaneseq
  %v2039 = vshrl.u32 %v2038, 7
  %v2040 = vsub.s32 4, %v2039
  %v2041 = vrot.slane %v1993, %v2040
  %2043 = vbcast.lane.b32.xlu0 %v2041, 256
  %v2044 = vpop.permute.xlu0 %2043
  %s2046 = sor.u32 256, 8
  %2047 = vbcast.lane.b32.xlu0 %v2041, %s2046
  %v2048 = vpop.permute.xlu0 %2047
  %v2049 = vlaneseq
  %v2050 = vshrl.u32 %v2049, 7
  %v2051 = vsub.s32 5, %v2050
  %v2052 = vrot.slane %v1993, %v2051
  %2054 = vbcast.lane.b32.xlu0 %v2052, 256
  %v2055 = vpop.permute.xlu0 %2054
  %s2057 = sor.u32 256, 8
  %2058 = vbcast.lane.b32.xlu0 %v2052, %s2057
  %v2059 = vpop.permute.xlu0 %2058
  %v2060 = vlaneseq
  %v2061 = vshrl.u32 %v2060, 7
  %v2062 = vsub.s32 6, %v2061
  %v2063 = vrot.slane %v1993, %v2062
  %2065 = vbcast.lane.b32.xlu0 %v2063, 256
  %v2066 = vpop.permute.xlu0 %2065
  %s2068 = sor.u32 256, 8
  %2069 = vbcast.lane.b32.xlu0 %v2063, %s2068
  %v2070 = vpop.permute.xlu0 %2069
  %v2071 = vlaneseq
  %v2072 = vshrl.u32 %v2071, 7
  %v2073 = vsub.s32 7, %v2072
  %v2074 = vrot.slane %v1993, %v2073
  %2076 = vbcast.lane.b32.xlu0 %v2074, 256
  %v2077 = vpop.permute.xlu0 %2076
  %s2079 = sor.u32 256, 8
  %2080 = vbcast.lane.b32.xlu0 %v2074, %s2079
  %v2081 = vpop.permute.xlu0 %2080
  %v2083 = vcombine.high %v1993, %v1993
  %v2085 = vunpack.c.l.s4 1966171168
  %v2086 = vunpack.c.0.s8 %v2085
  %v2087 = vlaneseq
  %v2088 = vshrl.u32 %v2087, 7
  %v2089 = vsub.s32 %v2086, %v2088
  %v2090 = vrot.slane %v1993, %v2089
  %v2092 = vunpack.c.l.s4 1966171168
  %v2093 = vunpack.c.0.s8 %v2092
  %v2094 = vlaneseq
  %v2095 = vshrl.u32 %v2094, 7
  %v2096 = vsub.s32 %v2093, %v2095
  %v2097 = vrot.slane %v2083, %v2096
  %v2098 = vcombine.high %v2090, %v2090
  %v2099 = vcombine.high %v2097, %v2097
  %v2101 = vunpack.c.l.s4 1966171168
  %v2102 = vunpack.c.0.s8 %v2101
  %v2103 = vlaneseq
  %v2104 = vshrl.u32 %v2103, 7
  %v2105 = vsub.s32 %v2102, %v2104
  %v2106 = vrot.slane %v2090, %v2105
  %v2108 = vunpack.c.l.s4 1966171168
  %v2109 = vunpack.c.0.s8 %v2108
  %v2110 = vlaneseq
  %v2111 = vshrl.u32 %v2110, 7
  %v2112 = vsub.s32 %v2109, %v2111
  %v2113 = vrot.slane %v2097, %v2112
  %v2115 = vunpack.c.l.s4 1966171168
  %v2116 = vunpack.c.0.s8 %v2115
  %v2117 = vlaneseq
  %v2118 = vshrl.u32 %v2117, 7
  %v2119 = vsub.s32 %v2116, %v2118
  %v2120 = vrot.slane %v2098, %v2119
  %v2122 = vunpack.c.l.s4 1966171168
  %v2123 = vunpack.c.0.s8 %v2122
  %v2124 = vlaneseq
  %v2125 = vshrl.u32 %v2124, 7
  %v2126 = vsub.s32 %v2123, %v2125
  %v2127 = vrot.slane %v2099, %v2126
  %v2128 = vcombine.high %v2106, %v2106
  %v2129 = vcombine.high %v2113, %v2113
  %v2130 = vcombine.high %v2120, %v2120
  %v2131 = vcombine.high %v2127, %v2127
  %v2132 = vlaneseq
  %v2133 = vshrl.u32 %v2132, 7
  %v2134 = vsub.s32 0, %v2133
  %v2135 = vrot.slane %v2106, %v2134
  %v2136 = vlaneseq
  %v2137 = vshrl.u32 %v2136, 7
  %v2138 = vsub.s32 0, %v2137
  %v2139 = vrot.slane %v2120, %v2138
  %v2140 = vlaneseq
  %v2141 = vshrl.u32 %v2140, 7
  %v2142 = vsub.s32 0, %v2141
  %v2143 = vrot.slane %v2128, %v2142
  %v2144 = vlaneseq
  %v2145 = vshrl.u32 %v2144, 7
  %v2146 = vsub.s32 0, %v2145
  %v2147 = vrot.slane %v2130, %v2146
  %v2148 = vlaneseq
  %v2149 = vshrl.u32 %v2148, 7
  %v2150 = vsub.s32 0, %v2149
  %v2151 = vrot.slane %v2113, %v2150
  %v2152 = vlaneseq
  %v2153 = vshrl.u32 %v2152, 7
  %v2154 = vsub.s32 0, %v2153
  %v2155 = vrot.slane %v2127, %v2154
  %v2156 = vlaneseq
  %v2157 = vshrl.u32 %v2156, 7
  %v2158 = vsub.s32 0, %v2157
  %v2159 = vrot.slane %v2129, %v2158
  %v2160 = vlaneseq
  %v2161 = vshrl.u32 %v2160, 7
  %v2162 = vsub.s32 0, %v2161
  %v2163 = vrot.slane %v2131, %v2162
  %vm2172 = vcmp.ge.f32.partialorder %v2135, %v2000
  %vm2173 = vcmp.ge.f32.partialorder %v2135, %v2004
  %vm2174 = vcmp.ge.f32.partialorder %v2139, %v2011
  %vm2175 = vcmp.ge.f32.partialorder %v2139, %v2015
  %vm2176 = vcmp.ge.f32.partialorder %v2143, %v2022
  %vm2177 = vcmp.ge.f32.partialorder %v2143, %v2026
  %vm2178 = vcmp.ge.f32.partialorder %v2147, %v2033
  %vm2179 = vcmp.ge.f32.partialorder %v2147, %v2037
  %vm2180 = vcmp.ge.f32.partialorder %v2151, %v2044
  %vm2181 = vcmp.ge.f32.partialorder %v2151, %v2048
  %vm2182 = vcmp.ge.f32.partialorder %v2155, %v2055
  %vm2183 = vcmp.ge.f32.partialorder %v2155, %v2059
  %vm2184 = vcmp.ge.f32.partialorder %v2159, %v2066
  %vm2185 = vcmp.ge.f32.partialorder %v2159, %v2070
  %vm2186 = vcmp.ge.f32.partialorder %v2163, %v2077
  %vm2187 = vcmp.ge.f32.partialorder %v2163, %v2081
  %v2188 = vsel %vm2172, 1, 0
  %v2189 = vsel %vm2173, 1, 0
  %v2190 = vsel %vm2174, 1, 0
  %v2191 = vsel %vm2175, 1, 0
  %v2192 = vsel %vm2176, 1, 0
  %v2193 = vsel %vm2177, 1, 0
  %v2194 = vsel %vm2178, 1, 0
  %v2195 = vsel %vm2179, 1, 0
  %v2196 = vsel %vm2180, 1, 0
  %v2197 = vsel %vm2181, 1, 0
  %v2198 = vsel %vm2182, 1, 0
  %v2199 = vsel %vm2183, 1, 0
  %v2200 = vsel %vm2184, 1, 0
  %v2201 = vsel %vm2185, 1, 0
  %v2202 = vsel %vm2186, 1, 0
  %v2203 = vsel %vm2187, 1, 0
  %v2204 = vcvt.s32.f32 %v2188
  %v2205 = vcvt.s32.f32 %v2189
  %v2206 = vcvt.s32.f32 %v2190
  %v2207 = vcvt.s32.f32 %v2191
  %v2208 = vcvt.s32.f32 %v2192
  %v2209 = vcvt.s32.f32 %v2193
  %v2210 = vcvt.s32.f32 %v2194
  %v2211 = vcvt.s32.f32 %v2195
  %v2212 = vcvt.s32.f32 %v2196
  %v2213 = vcvt.s32.f32 %v2197
  %v2214 = vcvt.s32.f32 %v2198
  %v2215 = vcvt.s32.f32 %v2199
  %v2216 = vcvt.s32.f32 %v2200
  %v2217 = vcvt.s32.f32 %v2201
  %v2218 = vcvt.s32.f32 %v2202
  %v2219 = vcvt.s32.f32 %v2203
  %v2220 = vsel %vm57, %v2204, 0.0
  %2221 = vadd.xlane.f32.xlu0 %v2220
  %v2222 = vpop.xlane.xlu0 %2221
  %v2223 = vsel %vm57, %v2205, 0.0
  %2224 = vadd.xlane.f32.xlu0 %v2223
  %v2225 = vpop.xlane.xlu0 %2224
  %v2226 = vsel %vm57, %v2206, 0.0
  %2227 = vadd.xlane.f32.xlu0 %v2226
  %v2228 = vpop.xlane.xlu0 %2227
  %v2229 = vsel %vm57, %v2207, 0.0
  %2230 = vadd.xlane.f32.xlu0 %v2229
  %v2231 = vpop.xlane.xlu0 %2230
  %v2232 = vsel %vm57, %v2208, 0.0
  %2233 = vadd.xlane.f32.xlu0 %v2232
  %v2234 = vpop.xlane.xlu0 %2233
  %v2235 = vsel %vm57, %v2209, 0.0
  %2236 = vadd.xlane.f32.xlu0 %v2235
  %v2237 = vpop.xlane.xlu0 %2236
  %v2238 = vsel %vm57, %v2210, 0.0
  %2239 = vadd.xlane.f32.xlu0 %v2238
  %v2240 = vpop.xlane.xlu0 %2239
  %v2241 = vsel %vm57, %v2211, 0.0
  %2242 = vadd.xlane.f32.xlu0 %v2241
  %v2243 = vpop.xlane.xlu0 %2242
  %v2244 = vsel %vm57, %v2212, 0.0
  %2245 = vadd.xlane.f32.xlu0 %v2244
  %v2246 = vpop.xlane.xlu0 %2245
  %v2247 = vsel %vm57, %v2213, 0.0
  %2248 = vadd.xlane.f32.xlu0 %v2247
  %v2249 = vpop.xlane.xlu0 %2248
  %v2250 = vsel %vm57, %v2214, 0.0
  %2251 = vadd.xlane.f32.xlu0 %v2250
  %v2252 = vpop.xlane.xlu0 %2251
  %v2253 = vsel %vm57, %v2215, 0.0
  %2254 = vadd.xlane.f32.xlu0 %v2253
  %v2255 = vpop.xlane.xlu0 %2254
  %v2256 = vsel %vm57, %v2216, 0.0
  %2257 = vadd.xlane.f32.xlu0 %v2256
  %v2258 = vpop.xlane.xlu0 %2257
  %v2259 = vsel %vm57, %v2217, 0.0
  %2260 = vadd.xlane.f32.xlu0 %v2259
  %v2261 = vpop.xlane.xlu0 %2260
  %v2262 = vsel %vm57, %v2218, 0.0
  %2263 = vadd.xlane.f32.xlu0 %v2262
  %v2264 = vpop.xlane.xlu0 %2263
  %v2265 = vsel %vm57, %v2219, 0.0
  %2266 = vadd.xlane.f32.xlu0 %v2265
  %v2267 = vpop.xlane.xlu0 %2266
  %v2268 = vsel %vm2172, %v2135, 0.0
  %v2269 = vsel %vm2173, %v2135, 0.0
  %v2270 = vsel %vm2174, %v2139, 0.0
  %v2271 = vsel %vm2175, %v2139, 0.0
  %v2272 = vsel %vm2176, %v2143, 0.0
  %v2273 = vsel %vm2177, %v2143, 0.0
  %v2274 = vsel %vm2178, %v2147, 0.0
  %v2275 = vsel %vm2179, %v2147, 0.0
  %v2276 = vsel %vm2180, %v2151, 0.0
  %v2277 = vsel %vm2181, %v2151, 0.0
  %v2278 = vsel %vm2182, %v2155, 0.0
  %v2279 = vsel %vm2183, %v2155, 0.0
  %v2280 = vsel %vm2184, %v2159, 0.0
  %v2281 = vsel %vm2185, %v2159, 0.0
  %v2282 = vsel %vm2186, %v2163, 0.0
  %v2283 = vsel %vm2187, %v2163, 0.0
  %v2284 = vsel %vm57, %v2268, 0.0
  %2285 = vadd.xlane.f32.xlu0 %v2284
  %v2286 = vpop.xlane.xlu0 %2285
  %v2287 = vsel %vm57, %v2269, 0.0
  %2288 = vadd.xlane.f32.xlu0 %v2287
  %v2289 = vpop.xlane.xlu0 %2288
  %v2290 = vsel %vm57, %v2270, 0.0
  %2291 = vadd.xlane.f32.xlu0 %v2290
  %v2292 = vpop.xlane.xlu0 %2291
  %v2293 = vsel %vm57, %v2271, 0.0
  %2294 = vadd.xlane.f32.xlu0 %v2293
  %v2295 = vpop.xlane.xlu0 %2294
  %v2296 = vsel %vm57, %v2272, 0.0
  %2297 = vadd.xlane.f32.xlu0 %v2296
  %v2298 = vpop.xlane.xlu0 %2297
  %v2299 = vsel %vm57, %v2273, 0.0
  %2300 = vadd.xlane.f32.xlu0 %v2299
  %v2301 = vpop.xlane.xlu0 %2300
  %v2302 = vsel %vm57, %v2274, 0.0
  %2303 = vadd.xlane.f32.xlu0 %v2302
  %v2304 = vpop.xlane.xlu0 %2303
  %v2305 = vsel %vm57, %v2275, 0.0
  %2306 = vadd.xlane.f32.xlu0 %v2305
  %v2307 = vpop.xlane.xlu0 %2306
  %v2308 = vsel %vm57, %v2276, 0.0
  %2309 = vadd.xlane.f32.xlu0 %v2308
  %v2310 = vpop.xlane.xlu0 %2309
  %v2311 = vsel %vm57, %v2277, 0.0
  %2312 = vadd.xlane.f32.xlu0 %v2311
  %v2313 = vpop.xlane.xlu0 %2312
  %v2314 = vsel %vm57, %v2278, 0.0
  %2315 = vadd.xlane.f32.xlu0 %v2314
  %v2316 = vpop.xlane.xlu0 %2315
  %v2317 = vsel %vm57, %v2279, 0.0
  %2318 = vadd.xlane.f32.xlu0 %v2317
  %v2319 = vpop.xlane.xlu0 %2318
  %v2320 = vsel %vm57, %v2280, 0.0
  %2321 = vadd.xlane.f32.xlu0 %v2320
  %v2322 = vpop.xlane.xlu0 %2321
  %v2323 = vsel %vm57, %v2281, 0.0
  %2324 = vadd.xlane.f32.xlu0 %v2323
  %v2325 = vpop.xlane.xlu0 %2324
  %v2326 = vsel %vm57, %v2282, 0.0
  %2327 = vadd.xlane.f32.xlu0 %v2326
  %v2328 = vpop.xlane.xlu0 %2327
  %v2329 = vsel %vm57, %v2283, 0.0
  %2330 = vadd.xlane.f32.xlu0 %v2329
  %v2331 = vpop.xlane.xlu0 %2330
  %v2332 = vlaneseq
  %v2333 = vshrl.u32 %v2332, 7
  %v2334 = vsub.s32 0, %v2333
  %v2335 = vrot.slane %v1993, %v2334
  %2337 = vbcast.lane.b32.xlu0 %v2335, 256
  %v2338 = vpop.permute.xlu0 %2337
  %s2340 = sor.u32 256, 8
  %2341 = vbcast.lane.b32.xlu0 %v2335, %s2340
  %v2342 = vpop.permute.xlu0 %2341
  %v2343 = vlaneseq
  %v2344 = vshrl.u32 %v2343, 7
  %v2345 = vsub.s32 1, %v2344
  %v2346 = vrot.slane %v1993, %v2345
  %2348 = vbcast.lane.b32.xlu0 %v2346, 256
  %v2349 = vpop.permute.xlu0 %2348
  %s2351 = sor.u32 256, 8
  %2352 = vbcast.lane.b32.xlu0 %v2346, %s2351
  %v2353 = vpop.permute.xlu0 %2352
  %v2354 = vlaneseq
  %v2355 = vshrl.u32 %v2354, 7
  %v2356 = vsub.s32 2, %v2355
  %v2357 = vrot.slane %v1993, %v2356
  %2359 = vbcast.lane.b32.xlu0 %v2357, 256
  %v2360 = vpop.permute.xlu0 %2359
  %s2362 = sor.u32 256, 8
  %2363 = vbcast.lane.b32.xlu0 %v2357, %s2362
  %v2364 = vpop.permute.xlu0 %2363
  %v2365 = vlaneseq
  %v2366 = vshrl.u32 %v2365, 7
  %v2367 = vsub.s32 3, %v2366
  %v2368 = vrot.slane %v1993, %v2367
  %2370 = vbcast.lane.b32.xlu0 %v2368, 256
  %v2371 = vpop.permute.xlu0 %2370
  %s2373 = sor.u32 256, 8
  %2374 = vbcast.lane.b32.xlu0 %v2368, %s2373
  %v2375 = vpop.permute.xlu0 %2374
  %v2376 = vlaneseq
  %v2377 = vshrl.u32 %v2376, 7
  %v2378 = vsub.s32 4, %v2377
  %v2379 = vrot.slane %v1993, %v2378
  %2381 = vbcast.lane.b32.xlu0 %v2379, 256
  %v2382 = vpop.permute.xlu0 %2381
  %s2384 = sor.u32 256, 8
  %2385 = vbcast.lane.b32.xlu0 %v2379, %s2384
  %v2386 = vpop.permute.xlu0 %2385
  %v2387 = vlaneseq
  %v2388 = vshrl.u32 %v2387, 7
  %v2389 = vsub.s32 5, %v2388
  %v2390 = vrot.slane %v1993, %v2389
  %2392 = vbcast.lane.b32.xlu0 %v2390, 256
  %v2393 = vpop.permute.xlu0 %2392
  %s2395 = sor.u32 256, 8
  %2396 = vbcast.lane.b32.xlu0 %v2390, %s2395
  %v2397 = vpop.permute.xlu0 %2396
  %v2398 = vlaneseq
  %v2399 = vshrl.u32 %v2398, 7
  %v2400 = vsub.s32 6, %v2399
  %v2401 = vrot.slane %v1993, %v2400
  %2403 = vbcast.lane.b32.xlu0 %v2401, 256
  %v2404 = vpop.permute.xlu0 %2403
  %s2406 = sor.u32 256, 8
  %2407 = vbcast.lane.b32.xlu0 %v2401, %s2406
  %v2408 = vpop.permute.xlu0 %2407
  %v2409 = vlaneseq
  %v2410 = vshrl.u32 %v2409, 7
  %v2411 = vsub.s32 7, %v2410
  %v2412 = vrot.slane %v1993, %v2411
  %2414 = vbcast.lane.b32.xlu0 %v2412, 256
  %v2415 = vpop.permute.xlu0 %2414
  %s2417 = sor.u32 256, 8
  %2418 = vbcast.lane.b32.xlu0 %v2412, %s2417
  %v2419 = vpop.permute.xlu0 %2418
  %v2436 = vmul.f32 %v2222, %v2338
  %v2437 = vmul.f32 %v2225, %v2342
  %v2438 = vmul.f32 %v2228, %v2349
  %v2439 = vmul.f32 %v2231, %v2353
  %v2440 = vmul.f32 %v2234, %v2360
  %v2441 = vmul.f32 %v2237, %v2364
  %v2442 = vmul.f32 %v2240, %v2371
  %v2443 = vmul.f32 %v2243, %v2375
  %v2444 = vmul.f32 %v2246, %v2382
  %v2445 = vmul.f32 %v2249, %v2386
  %v2446 = vmul.f32 %v2252, %v2393
  %v2447 = vmul.f32 %v2255, %v2397
  %v2448 = vmul.f32 %v2258, %v2404
  %v2449 = vmul.f32 %v2261, %v2408
  %v2450 = vmul.f32 %v2264, %v2415
  %v2451 = vmul.f32 %v2267, %v2419
  %v2452 = vadd.f32 %v2436, 1.0
  %v2453 = vadd.f32 %v2437, 1.0
  %v2454 = vadd.f32 %v2438, 1.0
  %v2455 = vadd.f32 %v2439, 1.0
  %v2456 = vadd.f32 %v2440, 1.0
  %v2457 = vadd.f32 %v2441, 1.0
  %v2458 = vadd.f32 %v2442, 1.0
  %v2459 = vadd.f32 %v2443, 1.0
  %v2460 = vadd.f32 %v2444, 1.0
  %v2461 = vadd.f32 %v2445, 1.0
  %v2462 = vadd.f32 %v2446, 1.0
  %v2463 = vadd.f32 %v2447, 1.0
  %v2464 = vadd.f32 %v2448, 1.0
  %v2465 = vadd.f32 %v2449, 1.0
  %v2466 = vadd.f32 %v2450, 1.0
  %v2467 = vadd.f32 %v2451, 1.0
  %vm2468 = vcmp.gt.f32.partialorder %v2452, %v2286
  %vm2469 = vcmp.gt.f32.partialorder %v2453, %v2289
  %vm2470 = vcmp.gt.f32.partialorder %v2454, %v2292
  %vm2471 = vcmp.gt.f32.partialorder %v2455, %v2295
  %vm2472 = vcmp.gt.f32.partialorder %v2456, %v2298
  %vm2473 = vcmp.gt.f32.partialorder %v2457, %v2301
  %vm2474 = vcmp.gt.f32.partialorder %v2458, %v2304
  %vm2475 = vcmp.gt.f32.partialorder %v2459, %v2307
  %vm2476 = vcmp.gt.f32.partialorder %v2460, %v2310
  %vm2477 = vcmp.gt.f32.partialorder %v2461, %v2313
  %vm2478 = vcmp.gt.f32.partialorder %v2462, %v2316
  %vm2479 = vcmp.gt.f32.partialorder %v2463, %v2319
  %vm2480 = vcmp.gt.f32.partialorder %v2464, %v2322
  %vm2481 = vcmp.gt.f32.partialorder %v2465, %v2325
  %vm2482 = vcmp.gt.f32.partialorder %v2466, %v2328
  %vm2483 = vcmp.gt.f32.partialorder %v2467, %v2331
  %v2484 = vsel %vm2468, 1, 0
  %v2485 = vsel %vm2469, 1, 0
  %v2486 = vsel %vm2470, 1, 0
  %v2487 = vsel %vm2471, 1, 0
  %v2488 = vsel %vm2472, 1, 0
  %v2489 = vsel %vm2473, 1, 0
  %v2490 = vsel %vm2474, 1, 0
  %v2491 = vsel %vm2475, 1, 0
  %v2492 = vsel %vm2476, 1, 0
  %v2493 = vsel %vm2477, 1, 0
  %v2494 = vsel %vm2478, 1, 0
  %v2495 = vsel %vm2479, 1, 0
  %v2496 = vsel %vm2480, 1, 0
  %v2497 = vsel %vm2481, 1, 0
  %v2498 = vsel %vm2482, 1, 0
  %v2499 = vsel %vm2483, 1, 0
  %v2500 = vcvt.s32.f32 %v2484
  %v2501 = vcvt.s32.f32 %v2485
  %v2502 = vcvt.s32.f32 %v2486
  %v2503 = vcvt.s32.f32 %v2487
  %v2504 = vcvt.s32.f32 %v2488
  %v2505 = vcvt.s32.f32 %v2489
  %v2506 = vcvt.s32.f32 %v2490
  %v2507 = vcvt.s32.f32 %v2491
  %v2508 = vcvt.s32.f32 %v2492
  %v2509 = vcvt.s32.f32 %v2493
  %v2510 = vcvt.s32.f32 %v2494
  %v2511 = vcvt.s32.f32 %v2495
  %v2512 = vcvt.s32.f32 %v2496
  %v2513 = vcvt.s32.f32 %v2497
  %v2514 = vcvt.s32.f32 %v2498
  %v2515 = vcvt.s32.f32 %v2499
  %2532 = vset.pattern.permute.xlu0 0
  %2533 = vperm.xlu0 %2532, %v2500
  %v2534 = vpop.permute.xlu0 %2533
  %2535 = vset.pattern.permute.xlu0 0
  %2536 = vperm.xlu0 %2535, %v2501
  %v2537 = vpop.permute.xlu0 %2536
  %2538 = vset.pattern.permute.xlu0 0
  %2539 = vperm.xlu0 %2538, %v2502
  %v2540 = vpop.permute.xlu0 %2539
  %2541 = vset.pattern.permute.xlu0 0
  %2542 = vperm.xlu0 %2541, %v2503
  %v2543 = vpop.permute.xlu0 %2542
  %2544 = vset.pattern.permute.xlu0 0
  %2545 = vperm.xlu0 %2544, %v2504
  %v2546 = vpop.permute.xlu0 %2545
  %2547 = vset.pattern.permute.xlu0 0
  %2548 = vperm.xlu0 %2547, %v2505
  %v2549 = vpop.permute.xlu0 %2548
  %2550 = vset.pattern.permute.xlu0 0
  %2551 = vperm.xlu0 %2550, %v2506
  %v2552 = vpop.permute.xlu0 %2551
  %2553 = vset.pattern.permute.xlu0 0
  %2554 = vperm.xlu0 %2553, %v2507
  %v2555 = vpop.permute.xlu0 %2554
  %2556 = vset.pattern.permute.xlu0 0
  %2557 = vperm.xlu0 %2556, %v2508
  %v2558 = vpop.permute.xlu0 %2557
  %2559 = vset.pattern.permute.xlu0 0
  %2560 = vperm.xlu0 %2559, %v2509
  %v2561 = vpop.permute.xlu0 %2560
  %2562 = vset.pattern.permute.xlu0 0
  %2563 = vperm.xlu0 %2562, %v2510
  %v2564 = vpop.permute.xlu0 %2563
  %2565 = vset.pattern.permute.xlu0 0
  %2566 = vperm.xlu0 %2565, %v2511
  %v2567 = vpop.permute.xlu0 %2566
  %2568 = vset.pattern.permute.xlu0 0
  %2569 = vperm.xlu0 %2568, %v2512
  %v2570 = vpop.permute.xlu0 %2569
  %2571 = vset.pattern.permute.xlu0 0
  %2572 = vperm.xlu0 %2571, %v2513
  %v2573 = vpop.permute.xlu0 %2572
  %2574 = vset.pattern.permute.xlu0 0
  %2575 = vperm.xlu0 %2574, %v2514
  %v2576 = vpop.permute.xlu0 %2575
  %2577 = vset.pattern.permute.xlu0 0
  %2578 = vperm.xlu0 %2577, %v2515
  %v2579 = vpop.permute.xlu0 %2578
  %v2580 = vlaneseq
  %v2581 = vshrl.u32 %v2580, 7
  %v2582 = vsub.s32 %v1181, %v2581
  %v2583 = vrot.slane %v2534, %v2582
  %v2584 = vlaneseq
  %v2585 = vshrl.u32 %v2584, 7
  %v2586 = vsub.s32 %v1186, %v2585
  %v2587 = vrot.slane %v2537, %v2586
  %v2588 = vsel %vm1191, %v2587, %v2583
  %v2589 = vlaneseq
  %v2590 = vshrl.u32 %v2589, 7
  %v2591 = vsub.s32 %v1181, %v2590
  %v2592 = vrot.slane %v2540, %v2591
  %v2593 = vlaneseq
  %v2594 = vshrl.u32 %v2593, 7
  %v2595 = vsub.s32 %v1186, %v2594
  %v2596 = vrot.slane %v2543, %v2595
  %v2597 = vsel %vm1191, %v2596, %v2592
  %v2598 = vlaneseq
  %v2599 = vshrl.u32 %v2598, 7
  %v2600 = vsub.s32 %v1181, %v2599
  %v2601 = vrot.slane %v2546, %v2600
  %v2602 = vlaneseq
  %v2603 = vshrl.u32 %v2602, 7
  %v2604 = vsub.s32 %v1186, %v2603
  %v2605 = vrot.slane %v2549, %v2604
  %v2606 = vsel %vm1191, %v2605, %v2601
  %v2607 = vlaneseq
  %v2608 = vshrl.u32 %v2607, 7
  %v2609 = vsub.s32 %v1181, %v2608
  %v2610 = vrot.slane %v2552, %v2609
  %v2611 = vlaneseq
  %v2612 = vshrl.u32 %v2611, 7
  %v2613 = vsub.s32 %v1186, %v2612
  %v2614 = vrot.slane %v2555, %v2613
  %v2615 = vsel %vm1191, %v2614, %v2610
  %v2616 = vlaneseq
  %v2617 = vshrl.u32 %v2616, 7
  %v2618 = vsub.s32 %v1181, %v2617
  %v2619 = vrot.slane %v2558, %v2618
  %v2620 = vlaneseq
  %v2621 = vshrl.u32 %v2620, 7
  %v2622 = vsub.s32 %v1186, %v2621
  %v2623 = vrot.slane %v2561, %v2622
  %v2624 = vsel %vm1191, %v2623, %v2619
  %v2625 = vlaneseq
  %v2626 = vshrl.u32 %v2625, 7
  %v2627 = vsub.s32 %v1181, %v2626
  %v2628 = vrot.slane %v2564, %v2627
  %v2629 = vlaneseq
  %v2630 = vshrl.u32 %v2629, 7
  %v2631 = vsub.s32 %v1186, %v2630
  %v2632 = vrot.slane %v2567, %v2631
  %v2633 = vsel %vm1191, %v2632, %v2628
  %v2634 = vlaneseq
  %v2635 = vshrl.u32 %v2634, 7
  %v2636 = vsub.s32 %v1181, %v2635
  %v2637 = vrot.slane %v2570, %v2636
  %v2638 = vlaneseq
  %v2639 = vshrl.u32 %v2638, 7
  %v2640 = vsub.s32 %v1186, %v2639
  %v2641 = vrot.slane %v2573, %v2640
  %v2642 = vsel %vm1191, %v2641, %v2637
  %v2643 = vlaneseq
  %v2644 = vshrl.u32 %v2643, 7
  %v2645 = vsub.s32 %v1181, %v2644
  %v2646 = vrot.slane %v2576, %v2645
  %v2647 = vlaneseq
  %v2648 = vshrl.u32 %v2647, 7
  %v2649 = vsub.s32 %v1186, %v2648
  %v2650 = vrot.slane %v2579, %v2649
  %v2651 = vsel %vm1191, %v2650, %v2646
  %v2652 = vsel %vm1256, %v2597, %v2588
  %v2653 = vsel %vm1258, %v2606, %v2652
  %v2654 = vsel %vm1260, %v2615, %v2653
  %v2655 = vsel %vm1262, %v2624, %v2654
  %v2656 = vsel %vm1264, %v2633, %v2655
  %v2657 = vsel %vm1266, %v2642, %v2656
  %v2658 = vsel %vm1268, %v2651, %v2657
  %v2660 = vsel %vm57, %v2658, 0.0
  %2661 = vadd.xlane.f32.xlu0 %v2660
  %v2662 = vpop.xlane.xlu0 %2661
  %v2663 = vsel %vm2468, %v2338, 0.0
  %v2664 = vsel %vm2469, %v2342, 0.0
  %v2665 = vsel %vm2470, %v2349, 0.0
  %v2666 = vsel %vm2471, %v2353, 0.0
  %v2667 = vsel %vm2472, %v2360, 0.0
  %v2668 = vsel %vm2473, %v2364, 0.0
  %v2669 = vsel %vm2474, %v2371, 0.0
  %v2670 = vsel %vm2475, %v2375, 0.0
  %v2671 = vsel %vm2476, %v2382, 0.0
  %v2672 = vsel %vm2477, %v2386, 0.0
  %v2673 = vsel %vm2478, %v2393, 0.0
  %v2674 = vsel %vm2479, %v2397, 0.0
  %v2675 = vsel %vm2480, %v2404, 0.0
  %v2676 = vsel %vm2481, %v2408, 0.0
  %v2677 = vsel %vm2482, %v2415, 0.0
  %v2678 = vsel %vm2483, %v2419, 0.0
  %2695 = vset.pattern.permute.xlu0 0
  %2696 = vperm.xlu0 %2695, %v2663
  %v2697 = vpop.permute.xlu0 %2696
  %2698 = vset.pattern.permute.xlu0 0
  %2699 = vperm.xlu0 %2698, %v2664
  %v2700 = vpop.permute.xlu0 %2699
  %2701 = vset.pattern.permute.xlu0 0
  %2702 = vperm.xlu0 %2701, %v2665
  %v2703 = vpop.permute.xlu0 %2702
  %2704 = vset.pattern.permute.xlu0 0
  %2705 = vperm.xlu0 %2704, %v2666
  %v2706 = vpop.permute.xlu0 %2705
  %2707 = vset.pattern.permute.xlu0 0
  %2708 = vperm.xlu0 %2707, %v2667
  %v2709 = vpop.permute.xlu0 %2708
  %2710 = vset.pattern.permute.xlu0 0
  %2711 = vperm.xlu0 %2710, %v2668
  %v2712 = vpop.permute.xlu0 %2711
  %2713 = vset.pattern.permute.xlu0 0
  %2714 = vperm.xlu0 %2713, %v2669
  %v2715 = vpop.permute.xlu0 %2714
  %2716 = vset.pattern.permute.xlu0 0
  %2717 = vperm.xlu0 %2716, %v2670
  %v2718 = vpop.permute.xlu0 %2717
  %2719 = vset.pattern.permute.xlu0 0
  %2720 = vperm.xlu0 %2719, %v2671
  %v2721 = vpop.permute.xlu0 %2720
  %2722 = vset.pattern.permute.xlu0 0
  %2723 = vperm.xlu0 %2722, %v2672
  %v2724 = vpop.permute.xlu0 %2723
  %2725 = vset.pattern.permute.xlu0 0
  %2726 = vperm.xlu0 %2725, %v2673
  %v2727 = vpop.permute.xlu0 %2726
  %2728 = vset.pattern.permute.xlu0 0
  %2729 = vperm.xlu0 %2728, %v2674
  %v2730 = vpop.permute.xlu0 %2729
  %2731 = vset.pattern.permute.xlu0 0
  %2732 = vperm.xlu0 %2731, %v2675
  %v2733 = vpop.permute.xlu0 %2732
  %2734 = vset.pattern.permute.xlu0 0
  %2735 = vperm.xlu0 %2734, %v2676
  %v2736 = vpop.permute.xlu0 %2735
  %2737 = vset.pattern.permute.xlu0 0
  %2738 = vperm.xlu0 %2737, %v2677
  %v2739 = vpop.permute.xlu0 %2738
  %2740 = vset.pattern.permute.xlu0 0
  %2741 = vperm.xlu0 %2740, %v2678
  %v2742 = vpop.permute.xlu0 %2741
  %v2743 = vlaneseq
  %v2744 = vshrl.u32 %v2743, 7
  %v2745 = vsub.s32 %v1181, %v2744
  %v2746 = vrot.slane %v2697, %v2745
  %v2747 = vlaneseq
  %v2748 = vshrl.u32 %v2747, 7
  %v2749 = vsub.s32 %v1186, %v2748
  %v2750 = vrot.slane %v2700, %v2749
  %v2751 = vsel %vm1191, %v2750, %v2746
  %v2752 = vlaneseq
  %v2753 = vshrl.u32 %v2752, 7
  %v2754 = vsub.s32 %v1181, %v2753
  %v2755 = vrot.slane %v2703, %v2754
  %v2756 = vlaneseq
  %v2757 = vshrl.u32 %v2756, 7
  %v2758 = vsub.s32 %v1186, %v2757
  %v2759 = vrot.slane %v2706, %v2758
  %v2760 = vsel %vm1191, %v2759, %v2755
  %v2761 = vlaneseq
  %v2762 = vshrl.u32 %v2761, 7
  %v2763 = vsub.s32 %v1181, %v2762
  %v2764 = vrot.slane %v2709, %v2763
  %v2765 = vlaneseq
  %v2766 = vshrl.u32 %v2765, 7
  %v2767 = vsub.s32 %v1186, %v2766
  %v2768 = vrot.slane %v2712, %v2767
  %v2769 = vsel %vm1191, %v2768, %v2764
  %v2770 = vlaneseq
  %v2771 = vshrl.u32 %v2770, 7
  %v2772 = vsub.s32 %v1181, %v2771
  %v2773 = vrot.slane %v2715, %v2772
  %v2774 = vlaneseq
  %v2775 = vshrl.u32 %v2774, 7
  %v2776 = vsub.s32 %v1186, %v2775
  %v2777 = vrot.slane %v2718, %v2776
  %v2778 = vsel %vm1191, %v2777, %v2773
  %v2779 = vlaneseq
  %v2780 = vshrl.u32 %v2779, 7
  %v2781 = vsub.s32 %v1181, %v2780
  %v2782 = vrot.slane %v2721, %v2781
  %v2783 = vlaneseq
  %v2784 = vshrl.u32 %v2783, 7
  %v2785 = vsub.s32 %v1186, %v2784
  %v2786 = vrot.slane %v2724, %v2785
  %v2787 = vsel %vm1191, %v2786, %v2782
  %v2788 = vlaneseq
  %v2789 = vshrl.u32 %v2788, 7
  %v2790 = vsub.s32 %v1181, %v2789
  %v2791 = vrot.slane %v2727, %v2790
  %v2792 = vlaneseq
  %v2793 = vshrl.u32 %v2792, 7
  %v2794 = vsub.s32 %v1186, %v2793
  %v2795 = vrot.slane %v2730, %v2794
  %v2796 = vsel %vm1191, %v2795, %v2791
  %v2797 = vlaneseq
  %v2798 = vshrl.u32 %v2797, 7
  %v2799 = vsub.s32 %v1181, %v2798
  %v2800 = vrot.slane %v2733, %v2799
  %v2801 = vlaneseq
  %v2802 = vshrl.u32 %v2801, 7
  %v2803 = vsub.s32 %v1186, %v2802
  %v2804 = vrot.slane %v2736, %v2803
  %v2805 = vsel %vm1191, %v2804, %v2800
  %v2806 = vlaneseq
  %v2807 = vshrl.u32 %v2806, 7
  %v2808 = vsub.s32 %v1181, %v2807
  %v2809 = vrot.slane %v2739, %v2808
  %v2810 = vlaneseq
  %v2811 = vshrl.u32 %v2810, 7
  %v2812 = vsub.s32 %v1186, %v2811
  %v2813 = vrot.slane %v2742, %v2812
  %v2814 = vsel %vm1191, %v2813, %v2809
  %v2815 = vsel %vm1256, %v2760, %v2751
  %v2816 = vsel %vm1258, %v2769, %v2815
  %v2817 = vsel %vm1260, %v2778, %v2816
  %v2818 = vsel %vm1262, %v2787, %v2817
  %v2819 = vsel %vm1264, %v2796, %v2818
  %v2820 = vsel %vm1266, %v2805, %v2819
  %v2821 = vsel %vm1268, %v2814, %v2820
  %v2823 = vsel %vm57, %v2821, 0.0
  %2824 = vadd.xlane.f32.xlu0 %v2823
  %v2825 = vpop.xlane.xlu0 %2824
  %v2826 = vsub.f32 %v2825, 1.0
  %v2827 = vrcp.pop %v2662
  %v2828 = vmul.f32 %v2826, %v2827
  %v2829 = vsub.f32 %v1993, %v2828
  %v2830 = vmax.f32 %v2829, 0.0
  %v2831 = vsub.f32 1.3, %v2830
  %v2832 = vmul.f32 %v2831, %v1442
  %v2833 = vadd.f32 %v2830, 1e-15
  %v2834 = vlog2.pop %v2833
  %v2835 = vmul.f32 %v2834, 0.6931472
  %v2836 = vmul.f32 %v2830, %v2835
  %v2837 = vsel %vm57, %v2836, 0.0
  %2838 = vadd.xlane.f32.xlu0 %v2837
  %v2839 = vpop.xlane.xlu0 %2838
  %v2840 = vadd.f32 %v1450, %v2839
  %s2841 = scalar_lea.vmem %s6, 32
  %v2842 = vld [vmem:[%s2841] sm:$0xff]
  %v2843 = vld [vmem:[%s2841 + $0x8] sm:$0xff]
  %s2844 = scalar_lea.vmem %s6, 48
  %v2845 = vld [vmem:[%s2844] sm:$0xff]
  %v2846 = vld [vmem:[%s2844 + $0x8] sm:$0xff]
  %v2847 = vmul.f32 %v2830, %v51
  %v2849 = vsel %vm57, %v2847, 0
  %2851 = vmatprep.subr.mxu0 0.0
  %2852 = vmatpush1.msra.mxu0 %v31
  %2853 = vmatprep.subr.mxu0 0.0
  %2854 = vmatpush1.msra.mxu0 %v32
  %2855 = vmatprep.subr.mxu0 0.0
  %2856 = vmatpush1.msra.mxu0 0.0
  %2857 = vmatprep.subr.mxu0 0.0
  %2858 = vmatpush1.msra.mxu0 0.0
  %2859 = vmatprep.subr.mxu0 0.0
  %2860 = vmatpush1.msra.mxu0 0.0
  %2861 = vmatprep.subr.mxu0 0.0
  %2862 = vmatpush1.msra.mxu0 0.0
  %2863 = vmatprep.subr.mxu0 0.0
  %2864 = vmatpush1.msra.mxu0 0.0
  %2865 = vmatprep.subr.mxu0 0.0
  %2866 = vmatpush1.msra.mxu0 0.0
  %2867 = vmatprep.subr.mxu0 0.0
  %2868 = vmatpush1.msra.mxu0 0.0
  %2869 = vmatprep.subr.mxu0 0.0
  %2870 = vmatpush1.msra.mxu0 0.0
  %2871 = vmatprep.subr.mxu0 0.0
  %2872 = vmatpush1.msra.mxu0 0.0
  %2873 = vmatprep.subr.mxu0 0.0
  %2874 = vmatpush1.msra.mxu0 0.0
  %2875 = vmatprep.subr.mxu0 0.0
  %2876 = vmatpush1.msra.mxu0 0.0
  %2877 = vmatprep.subr.mxu0 0.0
  %2878 = vmatpush1.msra.mxu0 0.0
  %2879 = vmatprep.subr.mxu0 0.0
  %2880 = vmatpush1.msra.mxu0 0.0
  %2881 = vmatprep.subr.mxu0 0.0
  %2882 = vmatpush1.msra.mxu0 0.0
  %2883 = vmatprep.subr.mxu0 0.0
  %2884 = vmatpush1.msra.mxu0 0.0
  %2885 = vmatprep.subr.mxu0 0.0
  %2886 = vmatpush1.msra.mxu0 0.0
  %2887 = vmatprep.subr.mxu0 0.0
  %2888 = vmatpush1.msra.mxu0 0.0
  %2889 = vmatprep.subr.mxu0 0.0
  %2890 = vmatpush1.msra.mxu0 0.0
  %2891 = vmatprep.subr.mxu0 0.0
  %2892 = vmatpush1.msra.mxu0 0.0
  %2893 = vmatprep.subr.mxu0 0.0
  %2894 = vmatpush1.msra.mxu0 0.0
  %2895 = vmatprep.subr.mxu0 0.0
  %2896 = vmatpush1.msra.mxu0 0.0
  %2897 = vmatprep.subr.mxu0 0.0
  %2898 = vmatpush1.msra.mxu0 0.0
  %2899 = vmatprep.subr.mxu0 0.0
  %2900 = vmatpush1.msra.mxu0 0.0
  %2901 = vmatprep.subr.mxu0 0.0
  %2902 = vmatpush1.msra.mxu0 0.0
  %2903 = vmatprep.subr.mxu0 0.0
  %2904 = vmatpush1.msra.mxu0 0.0
  %2905 = vmatprep.subr.mxu0 0.0
  %2906 = vmatpush1.msra.mxu0 0.0
  %2907 = vmatprep.subr.mxu0 0.0
  %2908 = vmatpush1.msra.mxu0 0.0
  %2909 = vmatprep.subr.mxu0 0.0
  %2910 = vmatpush1.msra.mxu0 0.0
  %2911 = vmatprep.subr.mxu0 0.0
  %2912 = vmatpush1.msra.mxu0 0.0
  %2913 = vmatprep.subr.mxu0 0.0
  %2914 = vmatpush1.msra.mxu0 0.0
  %2915 = vmatprep.mubr.f32.mxu0 0.0
  %2916 = vmatmul.mubr.f32.gmra.mrb[0].mxu0 %v2849
  %v2917 = vpop.f32.mrb[0].mxu0
  %v2918 = vadd.f32 0.0, %v2917
  %v2919 = vpop.f32.mrb[0].mxu0
  %2920 = vdwg.mxu0
  %v2921 = vsel %vm131, %v2918, 0.0
  %v2922 = vrot.slane %v2921, 4
  %v2923 = vadd.f32 %v2921, %v2922
  %v2924 = vrot.slane %v2923, 2
  %v2925 = vadd.f32 %v2923, %v2924
  %v2926 = vrot.slane %v2925, 1
  %v2927 = vadd.f32 %v2925, %v2926
  %v2928 = vmul.f32 %v2918, %v2918
  %v2929 = vsel %vm131, %v2928, 0.0
  %v2930 = vrot.slane %v2929, 4
  %v2931 = vadd.f32 %v2929, %v2930
  %v2932 = vrot.slane %v2931, 2
  %v2933 = vadd.f32 %v2931, %v2932
  %v2934 = vrot.slane %v2933, 1
  %v2935 = vadd.f32 %v2933, %v2934
  %v2936 = vmul.f32 %v2927, 0.125
  %v2937 = vmul.f32 %v2935, 0.125
  %v2938 = vmul.f32 %v2936, %v2936
  %v2939 = vsub.f32 %v2937, %v2938
  %v2940 = vmax.f32 %v2939, 0.0
  %v2941 = vsub.f32 %v2918, %v2936
  %v2942 = vadd.f32 %v2940, 1e-05
  %v2943 = vrsqrt.pop %v2942
  %v2944 = vmul.f32 %v2941, %v2943
  %v2945 = vsub.f32 0.0, %v2944
  %v2946 = vmul.f32 %v2945, 1.442695
  %v2947 = vpow.pop %v2946
  %v2948 = vadd.f32 %v2947, 1.0
  %v2949 = vrcp.pop %v2948
  %2951 = vrot.lane.b32.xlu0 %v2949, 112
  %v2952 = vpop.permute.xlu0 %2951
  %v2954 = vmul.f32 %v2944, %v2952
  %v2956 = vsel %vm57, %v2954, 0
  %2958 = vmatprep.subr.mxu0 0.0
  %2959 = vmatpush1.msra.mxu0 %v33
  %2960 = vmatprep.subr.mxu0 0.0
  %2961 = vmatpush1.msra.mxu0 %v34
  %2962 = vmatprep.subr.mxu0 0.0
  %2963 = vmatpush1.msra.mxu0 0.0
  %2964 = vmatprep.subr.mxu0 0.0
  %2965 = vmatpush1.msra.mxu0 0.0
  %2966 = vmatprep.subr.mxu0 0.0
  %2967 = vmatpush1.msra.mxu0 0.0
  %2968 = vmatprep.subr.mxu0 0.0
  %2969 = vmatpush1.msra.mxu0 0.0
  %2970 = vmatprep.subr.mxu0 0.0
  %2971 = vmatpush1.msra.mxu0 0.0
  %2972 = vmatprep.subr.mxu0 0.0
  %2973 = vmatpush1.msra.mxu0 0.0
  %2974 = vmatprep.subr.mxu0 0.0
  %2975 = vmatpush1.msra.mxu0 0.0
  %2976 = vmatprep.subr.mxu0 0.0
  %2977 = vmatpush1.msra.mxu0 0.0
  %2978 = vmatprep.subr.mxu0 0.0
  %2979 = vmatpush1.msra.mxu0 0.0
  %2980 = vmatprep.subr.mxu0 0.0
  %2981 = vmatpush1.msra.mxu0 0.0
  %2982 = vmatprep.subr.mxu0 0.0
  %2983 = vmatpush1.msra.mxu0 0.0
  %2984 = vmatprep.subr.mxu0 0.0
  %2985 = vmatpush1.msra.mxu0 0.0
  %2986 = vmatprep.subr.mxu0 0.0
  %2987 = vmatpush1.msra.mxu0 0.0
  %2988 = vmatprep.subr.mxu0 0.0
  %2989 = vmatpush1.msra.mxu0 0.0
  %2990 = vmatprep.subr.mxu0 0.0
  %2991 = vmatpush1.msra.mxu0 0.0
  %2992 = vmatprep.subr.mxu0 0.0
  %2993 = vmatpush1.msra.mxu0 0.0
  %2994 = vmatprep.subr.mxu0 0.0
  %2995 = vmatpush1.msra.mxu0 0.0
  %2996 = vmatprep.subr.mxu0 0.0
  %2997 = vmatpush1.msra.mxu0 0.0
  %2998 = vmatprep.subr.mxu0 0.0
  %2999 = vmatpush1.msra.mxu0 0.0
  %3000 = vmatprep.subr.mxu0 0.0
  %3001 = vmatpush1.msra.mxu0 0.0
  %3002 = vmatprep.subr.mxu0 0.0
  %3003 = vmatpush1.msra.mxu0 0.0
  %3004 = vmatprep.subr.mxu0 0.0
  %3005 = vmatpush1.msra.mxu0 0.0
  %3006 = vmatprep.subr.mxu0 0.0
  %3007 = vmatpush1.msra.mxu0 0.0
  %3008 = vmatprep.subr.mxu0 0.0
  %3009 = vmatpush1.msra.mxu0 0.0
  %3010 = vmatprep.subr.mxu0 0.0
  %3011 = vmatpush1.msra.mxu0 0.0
  %3012 = vmatprep.subr.mxu0 0.0
  %3013 = vmatpush1.msra.mxu0 0.0
  %3014 = vmatprep.subr.mxu0 0.0
  %3015 = vmatpush1.msra.mxu0 0.0
  %3016 = vmatprep.subr.mxu0 0.0
  %3017 = vmatpush1.msra.mxu0 0.0
  %3018 = vmatprep.subr.mxu0 0.0
  %3019 = vmatpush1.msra.mxu0 0.0
  %3020 = vmatprep.subr.mxu0 0.0
  %3021 = vmatpush1.msra.mxu0 0.0
  %3022 = vmatprep.mubr.f32.mxu0 0.0
  %3023 = vmatmul.mubr.f32.gmra.mrb[0].mxu0 %v2956
  %v3024 = vpop.f32.mrb[0].mxu0
  %v3025 = vadd.f32 0.0, %v3024
  %v3026 = vpop.f32.mrb[0].mxu0
  %3027 = vdwg.mxu0
  %v3028 = vsel %vm131, %v3025, 0.0
  %v3029 = vrot.slane %v3028, 4
  %v3030 = vadd.f32 %v3028, %v3029
  %v3031 = vrot.slane %v3030, 2
  %v3032 = vadd.f32 %v3030, %v3031
  %v3033 = vrot.slane %v3032, 1
  %v3034 = vadd.f32 %v3032, %v3033
  %v3035 = vmul.f32 %v3025, %v3025
  %v3036 = vsel %vm131, %v3035, 0.0
  %v3037 = vrot.slane %v3036, 4
  %v3038 = vadd.f32 %v3036, %v3037
  %v3039 = vrot.slane %v3038, 2
  %v3040 = vadd.f32 %v3038, %v3039
  %v3041 = vrot.slane %v3040, 1
  %v3042 = vadd.f32 %v3040, %v3041
  %v3043 = vmul.f32 %v3034, 0.125
  %v3044 = vmul.f32 %v3042, 0.125
  %v3045 = vmul.f32 %v3043, %v3043
  %v3046 = vsub.f32 %v3044, %v3045
  %v3047 = vmax.f32 %v3046, 0.0
  %v3048 = vsub.f32 %v3025, %v3043
  %v3049 = vadd.f32 %v3047, 1e-05
  %v3050 = vrsqrt.pop %v3049
  %v3051 = vmul.f32 %v3048, %v3050
  %v3052 = vsub.f32 0.0, %v3051
  %v3053 = vmul.f32 %v3052, 1.442695
  %v3054 = vpow.pop %v3053
  %v3055 = vadd.f32 %v3054, 1.0
  %v3056 = vrcp.pop %v3055
  %3058 = vrot.lane.b32.xlu0 %v3056, 112
  %v3059 = vpop.permute.xlu0 %3058
  %v3061 = vmul.f32 %v3051, %v3059
  %v3062 = vadd.f32 %v2954, %v3061
  %v3063 = vmul.f32 %v3062, 0.70710677
  %v3065 = vsel %vm57, %v3063, 0
  %3067 = vmatprep.subr.mxu0 0.0
  %3068 = vmatpush1.msra.mxu0 %v2842
  %3069 = vmatprep.subr.mxu0 0.0
  %3070 = vmatpush1.msra.mxu0 %v2843
  %3071 = vmatprep.subr.mxu0 0.0
  %3072 = vmatpush1.msra.mxu0 0.0
  %3073 = vmatprep.subr.mxu0 0.0
  %3074 = vmatpush1.msra.mxu0 0.0
  %3075 = vmatprep.subr.mxu0 0.0
  %3076 = vmatpush1.msra.mxu0 0.0
  %3077 = vmatprep.subr.mxu0 0.0
  %3078 = vmatpush1.msra.mxu0 0.0
  %3079 = vmatprep.subr.mxu0 0.0
  %3080 = vmatpush1.msra.mxu0 0.0
  %3081 = vmatprep.subr.mxu0 0.0
  %3082 = vmatpush1.msra.mxu0 0.0
  %3083 = vmatprep.subr.mxu0 0.0
  %3084 = vmatpush1.msra.mxu0 0.0
  %3085 = vmatprep.subr.mxu0 0.0
  %3086 = vmatpush1.msra.mxu0 0.0
  %3087 = vmatprep.subr.mxu0 0.0
  %3088 = vmatpush1.msra.mxu0 0.0
  %3089 = vmatprep.subr.mxu0 0.0
  %3090 = vmatpush1.msra.mxu0 0.0
  %3091 = vmatprep.subr.mxu0 0.0
  %3092 = vmatpush1.msra.mxu0 0.0
  %3093 = vmatprep.subr.mxu0 0.0
  %3094 = vmatpush1.msra.mxu0 0.0
  %3095 = vmatprep.subr.mxu0 0.0
  %3096 = vmatpush1.msra.mxu0 0.0
  %3097 = vmatprep.subr.mxu0 0.0
  %3098 = vmatpush1.msra.mxu0 0.0
  %3099 = vmatprep.subr.mxu0 0.0
  %3100 = vmatpush1.msra.mxu0 0.0
  %3101 = vmatprep.subr.mxu0 0.0
  %3102 = vmatpush1.msra.mxu0 0.0
  %3103 = vmatprep.subr.mxu0 0.0
  %3104 = vmatpush1.msra.mxu0 0.0
  %3105 = vmatprep.subr.mxu0 0.0
  %3106 = vmatpush1.msra.mxu0 0.0
  %3107 = vmatprep.subr.mxu0 0.0
  %3108 = vmatpush1.msra.mxu0 0.0
  %3109 = vmatprep.subr.mxu0 0.0
  %3110 = vmatpush1.msra.mxu0 0.0
  %3111 = vmatprep.subr.mxu0 0.0
  %3112 = vmatpush1.msra.mxu0 0.0
  %3113 = vmatprep.subr.mxu0 0.0
  %3114 = vmatpush1.msra.mxu0 0.0
  %3115 = vmatprep.subr.mxu0 0.0
  %3116 = vmatpush1.msra.mxu0 0.0
  %3117 = vmatprep.subr.mxu0 0.0
  %3118 = vmatpush1.msra.mxu0 0.0
  %3119 = vmatprep.subr.mxu0 0.0
  %3120 = vmatpush1.msra.mxu0 0.0
  %3121 = vmatprep.subr.mxu0 0.0
  %3122 = vmatpush1.msra.mxu0 0.0
  %3123 = vmatprep.subr.mxu0 0.0
  %3124 = vmatpush1.msra.mxu0 0.0
  %3125 = vmatprep.subr.mxu0 0.0
  %3126 = vmatpush1.msra.mxu0 0.0
  %3127 = vmatprep.subr.mxu0 0.0
  %3128 = vmatpush1.msra.mxu0 0.0
  %3129 = vmatprep.subr.mxu0 0.0
  %3130 = vmatpush1.msra.mxu0 0.0
  %3131 = vmatprep.mubr.f32.mxu0 0.0
  %3132 = vmatmul.mubr.f32.gmra.mrb[0].mxu0 %v3065
  %v3133 = vpop.f32.mrb[0].mxu0
  %v3134 = vadd.f32 0.0, %v3133
  %v3135 = vpop.f32.mrb[0].mxu0
  %3136 = vdwg.mxu0
  %v3137 = vsel %vm131, %v3134, 0.0
  %v3138 = vrot.slane %v3137, 4
  %v3139 = vadd.f32 %v3137, %v3138
  %v3140 = vrot.slane %v3139, 2
  %v3141 = vadd.f32 %v3139, %v3140
  %v3142 = vrot.slane %v3141, 1
  %v3143 = vadd.f32 %v3141, %v3142
  %v3144 = vmul.f32 %v3134, %v3134
  %v3145 = vsel %vm131, %v3144, 0.0
  %v3146 = vrot.slane %v3145, 4
  %v3147 = vadd.f32 %v3145, %v3146
  %v3148 = vrot.slane %v3147, 2
  %v3149 = vadd.f32 %v3147, %v3148
  %v3150 = vrot.slane %v3149, 1
  %v3151 = vadd.f32 %v3149, %v3150
  %v3152 = vmul.f32 %v3143, 0.125
  %v3153 = vmul.f32 %v3151, 0.125
  %v3154 = vmul.f32 %v3152, %v3152
  %v3155 = vsub.f32 %v3153, %v3154
  %v3156 = vmax.f32 %v3155, 0.0
  %v3157 = vsub.f32 %v3134, %v3152
  %v3158 = vadd.f32 %v3156, 1e-05
  %v3159 = vrsqrt.pop %v3158
  %v3160 = vmul.f32 %v3157, %v3159
  %v3161 = vsub.f32 0.0, %v3160
  %v3162 = vmul.f32 %v3161, 1.442695
  %v3163 = vpow.pop %v3162
  %v3164 = vadd.f32 %v3163, 1.0
  %v3165 = vrcp.pop %v3164
  %3167 = vrot.lane.b32.xlu0 %v3165, 112
  %v3168 = vpop.permute.xlu0 %3167
  %v3170 = vmul.f32 %v3160, %v3168
  %v3171 = vadd.f32 %v3063, %v3170
  %v3172 = vmul.f32 %v3171, 0.70710677
  %v3174 = vsel %vm57, %v3172, 0
  %3176 = vmatprep.subr.mxu0 0.0
  %3177 = vmatpush1.msra.mxu0 %v2845
  %3178 = vmatprep.subr.mxu0 0.0
  %3179 = vmatpush1.msra.mxu0 %v2846
  %3180 = vmatprep.subr.mxu0 0.0
  %3181 = vmatpush1.msra.mxu0 0.0
  %3182 = vmatprep.subr.mxu0 0.0
  %3183 = vmatpush1.msra.mxu0 0.0
  %3184 = vmatprep.subr.mxu0 0.0
  %3185 = vmatpush1.msra.mxu0 0.0
  %3186 = vmatprep.subr.mxu0 0.0
  %3187 = vmatpush1.msra.mxu0 0.0
  %3188 = vmatprep.subr.mxu0 0.0
  %3189 = vmatpush1.msra.mxu0 0.0
  %3190 = vmatprep.subr.mxu0 0.0
  %3191 = vmatpush1.msra.mxu0 0.0
  %3192 = vmatprep.subr.mxu0 0.0
  %3193 = vmatpush1.msra.mxu0 0.0
  %3194 = vmatprep.subr.mxu0 0.0
  %3195 = vmatpush1.msra.mxu0 0.0
  %3196 = vmatprep.subr.mxu0 0.0
  %3197 = vmatpush1.msra.mxu0 0.0
  %3198 = vmatprep.subr.mxu0 0.0
  %3199 = vmatpush1.msra.mxu0 0.0
  %3200 = vmatprep.subr.mxu0 0.0
  %3201 = vmatpush1.msra.mxu0 0.0
  %3202 = vmatprep.subr.mxu0 0.0
  %3203 = vmatpush1.msra.mxu0 0.0
  %3204 = vmatprep.subr.mxu0 0.0
  %3205 = vmatpush1.msra.mxu0 0.0
  %3206 = vmatprep.subr.mxu0 0.0
  %3207 = vmatpush1.msra.mxu0 0.0
  %3208 = vmatprep.subr.mxu0 0.0
  %3209 = vmatpush1.msra.mxu0 0.0
  %3210 = vmatprep.subr.mxu0 0.0
  %3211 = vmatpush1.msra.mxu0 0.0
  %3212 = vmatprep.subr.mxu0 0.0
  %3213 = vmatpush1.msra.mxu0 0.0
  %3214 = vmatprep.subr.mxu0 0.0
  %3215 = vmatpush1.msra.mxu0 0.0
  %3216 = vmatprep.subr.mxu0 0.0
  %3217 = vmatpush1.msra.mxu0 0.0
  %3218 = vmatprep.subr.mxu0 0.0
  %3219 = vmatpush1.msra.mxu0 0.0
  %3220 = vmatprep.subr.mxu0 0.0
  %3221 = vmatpush1.msra.mxu0 0.0
  %3222 = vmatprep.subr.mxu0 0.0
  %3223 = vmatpush1.msra.mxu0 0.0
  %3224 = vmatprep.subr.mxu0 0.0
  %3225 = vmatpush1.msra.mxu0 0.0
  %3226 = vmatprep.subr.mxu0 0.0
  %3227 = vmatpush1.msra.mxu0 0.0
  %3228 = vmatprep.subr.mxu0 0.0
  %3229 = vmatpush1.msra.mxu0 0.0
  %3230 = vmatprep.subr.mxu0 0.0
  %3231 = vmatpush1.msra.mxu0 0.0
  %3232 = vmatprep.subr.mxu0 0.0
  %3233 = vmatpush1.msra.mxu0 0.0
  %3234 = vmatprep.subr.mxu0 0.0
  %3235 = vmatpush1.msra.mxu0 0.0
  %3236 = vmatprep.subr.mxu0 0.0
  %3237 = vmatpush1.msra.mxu0 0.0
  %3238 = vmatprep.subr.mxu0 0.0
  %3239 = vmatpush1.msra.mxu0 0.0
  %3240 = vmatprep.mubr.f32.mxu0 0.0
  %3241 = vmatmul.mubr.f32.gmra.mrb[0].mxu0 %v3174
  %v3242 = vpop.f32.mrb[0].mxu0
  %v3243 = vadd.f32 0.0, %v3242
  %v3244 = vpop.f32.mrb[0].mxu0
  %3245 = vdwg.mxu0
  %v3246 = vsel %vm131, %v3243, 0.0
  %v3247 = vrot.slane %v3246, 4
  %v3248 = vadd.f32 %v3246, %v3247
  %v3249 = vrot.slane %v3248, 2
  %v3250 = vadd.f32 %v3248, %v3249
  %v3251 = vrot.slane %v3250, 1
  %v3252 = vadd.f32 %v3250, %v3251
  %v3253 = vmul.f32 %v3243, %v3243
  %v3254 = vsel %vm131, %v3253, 0.0
  %v3255 = vrot.slane %v3254, 4
  %v3256 = vadd.f32 %v3254, %v3255
  %v3257 = vrot.slane %v3256, 2
  %v3258 = vadd.f32 %v3256, %v3257
  %v3259 = vrot.slane %v3258, 1
  %v3260 = vadd.f32 %v3258, %v3259
  %v3261 = vmul.f32 %v3252, 0.125
  %v3262 = vmul.f32 %v3260, 0.125
  %v3263 = vmul.f32 %v3261, %v3261
  %v3264 = vsub.f32 %v3262, %v3263
  %v3265 = vmax.f32 %v3264, 0.0
  %v3266 = vsub.f32 %v3243, %v3261
  %v3267 = vadd.f32 %v3265, 1e-05
  %v3268 = vrsqrt.pop %v3267
  %v3269 = vmul.f32 %v3266, %v3268
  %v3270 = vsub.f32 0.0, %v3269
  %v3271 = vmul.f32 %v3270, 1.442695
  %v3272 = vpow.pop %v3271
  %v3273 = vadd.f32 %v3272, 1.0
  %v3274 = vrcp.pop %v3273
  %3276 = vrot.lane.b32.xlu0 %v3274, 112
  %v3277 = vpop.permute.xlu0 %3276
  %v3279 = vmul.f32 %v3269, %v3277
  %v3280 = vadd.f32 %v3172, %v3279
  %v3281 = vmul.f32 %v3280, 0.70710677
  %v3282 = vmax.f32 %v3281, 0.0
  %s3283 = scalar_lea.vmem %s7, 16
  %v3284 = vld [vmem:[%s3283] sm:$0xff]
  %3286 = vrot.lane.b32.xlu0 %v3281, 120
  %v3287 = vpop.permute.xlu0 %3286
  %v3288 = vsel %vm497, %v3287, 0
  %3290 = vmatprep.subr.mxu0 0.0
  %3291 = vmatpush1.msra.mxu0 %v3284
  %3292 = vmatprep.subr.mxu0 0.0
  %3293 = vmatpush1.msra.mxu0 0.0
  %3294 = vmatprep.subr.mxu0 0.0
  %3295 = vmatpush1.msra.mxu0 0.0
  %3296 = vmatprep.subr.mxu0 0.0
  %3297 = vmatpush1.msra.mxu0 0.0
  %3298 = vmatprep.subr.mxu0 0.0
  %3299 = vmatpush1.msra.mxu0 0.0
  %3300 = vmatprep.subr.mxu0 0.0
  %3301 = vmatpush1.msra.mxu0 0.0
  %3302 = vmatprep.subr.mxu0 0.0
  %3303 = vmatpush1.msra.mxu0 0.0
  %3304 = vmatprep.subr.mxu0 0.0
  %3305 = vmatpush1.msra.mxu0 0.0
  %3306 = vmatprep.subr.mxu0 0.0
  %3307 = vmatpush1.msra.mxu0 0.0
  %3308 = vmatprep.subr.mxu0 0.0
  %3309 = vmatpush1.msra.mxu0 0.0
  %3310 = vmatprep.subr.mxu0 0.0
  %3311 = vmatpush1.msra.mxu0 0.0
  %3312 = vmatprep.subr.mxu0 0.0
  %3313 = vmatpush1.msra.mxu0 0.0
  %3314 = vmatprep.subr.mxu0 0.0
  %3315 = vmatpush1.msra.mxu0 0.0
  %3316 = vmatprep.subr.mxu0 0.0
  %3317 = vmatpush1.msra.mxu0 0.0
  %3318 = vmatprep.subr.mxu0 0.0
  %3319 = vmatpush1.msra.mxu0 0.0
  %3320 = vmatprep.subr.mxu0 0.0
  %3321 = vmatpush1.msra.mxu0 0.0
  %3322 = vmatprep.subr.mxu0 0.0
  %3323 = vmatpush1.msra.mxu0 0.0
  %3324 = vmatprep.subr.mxu0 0.0
  %3325 = vmatpush1.msra.mxu0 0.0
  %3326 = vmatprep.subr.mxu0 0.0
  %3327 = vmatpush1.msra.mxu0 0.0
  %3328 = vmatprep.subr.mxu0 0.0
  %3329 = vmatpush1.msra.mxu0 0.0
  %3330 = vmatprep.subr.mxu0 0.0
  %3331 = vmatpush1.msra.mxu0 0.0
  %3332 = vmatprep.subr.mxu0 0.0
  %3333 = vmatpush1.msra.mxu0 0.0
  %3334 = vmatprep.subr.mxu0 0.0
  %3335 = vmatpush1.msra.mxu0 0.0
  %3336 = vmatprep.subr.mxu0 0.0
  %3337 = vmatpush1.msra.mxu0 0.0
  %3338 = vmatprep.subr.mxu0 0.0
  %3339 = vmatpush1.msra.mxu0 0.0
  %3340 = vmatprep.subr.mxu0 0.0
  %3341 = vmatpush1.msra.mxu0 0.0
  %3342 = vmatprep.subr.mxu0 0.0
  %3343 = vmatpush1.msra.mxu0 0.0
  %3344 = vmatprep.subr.mxu0 0.0
  %3345 = vmatpush1.msra.mxu0 0.0
  %3346 = vmatprep.subr.mxu0 0.0
  %3347 = vmatpush1.msra.mxu0 0.0
  %3348 = vmatprep.subr.mxu0 0.0
  %3349 = vmatpush1.msra.mxu0 0.0
  %3350 = vmatprep.subr.mxu0 0.0
  %3351 = vmatpush1.msra.mxu0 0.0
  %3352 = vmatprep.subr.mxu0 0.0
  %3353 = vmatpush1.msra.mxu0 0.0
  %3354 = vmatprep.mubr.f32.mxu0 0.0
  %3355 = vmatmul.mubr.f32.gmra.mrb[0].mxu0 %v3288
  %v3356 = vpop.f32.mrb[0].mxu0
  %v3357 = vadd.f32 0.0, %v3356
  %v3358 = vpop.f32.mrb[0].mxu0
  %3359 = vdwg.mxu0
  %v3360 = vsel %vm57, %v3357, 0.0
  %v3361 = vrot.slane %v3360, 4
  %v3362 = vadd.f32 %v3360, %v3361
  %v3363 = vrot.slane %v3362, 2
  %v3364 = vadd.f32 %v3362, %v3363
  %v3365 = vrot.slane %v3364, 1
  %v3366 = vadd.f32 %v3364, %v3365
  %v3367 = vmul.f32 %v3357, %v3357
  %v3368 = vsel %vm57, %v3367, 0.0
  %v3369 = vrot.slane %v3368, 4
  %v3370 = vadd.f32 %v3368, %v3369
  %v3371 = vrot.slane %v3370, 2
  %v3372 = vadd.f32 %v3370, %v3371
  %v3373 = vrot.slane %v3372, 1
  %v3374 = vadd.f32 %v3372, %v3373
  %v3375 = vmul.f32 %v3366, 0.125
  %v3376 = vmul.f32 %v3374, 0.125
  %v3377 = vmul.f32 %v3375, %v3375
  %v3378 = vsub.f32 %v3376, %v3377
  %v3379 = vmax.f32 %v3378, 0.0
  %v3380 = vsub.f32 %v3357, %v3375
  %v3381 = vadd.f32 %v3379, 1e-05
  %v3382 = vrsqrt.pop %v3381
  %v3383 = vmul.f32 %v3380, %v3382
  %v3384 = vmul.f32 %v3383, %v2832
  %v3385 = vlaneseq
  %v3386 = vshrl.u32 %v3385, 7
  %v3387 = vsub.s32 0, %v3386
  %v3388 = vrot.slane %v3384, %v3387
  %3390 = vbcast.lane.b32.xlu0 %v3388, 256
  %v3391 = vpop.permute.xlu0 %3390
  %s3393 = sor.u32 256, 8
  %3394 = vbcast.lane.b32.xlu0 %v3388, %s3393
  %v3395 = vpop.permute.xlu0 %3394
  %v3396 = vlaneseq
  %v3397 = vshrl.u32 %v3396, 7
  %v3398 = vsub.s32 1, %v3397
  %v3399 = vrot.slane %v3384, %v3398
  %3401 = vbcast.lane.b32.xlu0 %v3399, 256
  %v3402 = vpop.permute.xlu0 %3401
  %s3404 = sor.u32 256, 8
  %3405 = vbcast.lane.b32.xlu0 %v3399, %s3404
  %v3406 = vpop.permute.xlu0 %3405
  %v3407 = vlaneseq
  %v3408 = vshrl.u32 %v3407, 7
  %v3409 = vsub.s32 2, %v3408
  %v3410 = vrot.slane %v3384, %v3409
  %3412 = vbcast.lane.b32.xlu0 %v3410, 256
  %v3413 = vpop.permute.xlu0 %3412
  %s3415 = sor.u32 256, 8
  %3416 = vbcast.lane.b32.xlu0 %v3410, %s3415
  %v3417 = vpop.permute.xlu0 %3416
  %v3418 = vlaneseq
  %v3419 = vshrl.u32 %v3418, 7
  %v3420 = vsub.s32 3, %v3419
  %v3421 = vrot.slane %v3384, %v3420
  %3423 = vbcast.lane.b32.xlu0 %v3421, 256
  %v3424 = vpop.permute.xlu0 %3423
  %s3426 = sor.u32 256, 8
  %3427 = vbcast.lane.b32.xlu0 %v3421, %s3426
  %v3428 = vpop.permute.xlu0 %3427
  %v3429 = vlaneseq
  %v3430 = vshrl.u32 %v3429, 7
  %v3431 = vsub.s32 4, %v3430
  %v3432 = vrot.slane %v3384, %v3431
  %3434 = vbcast.lane.b32.xlu0 %v3432, 256
  %v3435 = vpop.permute.xlu0 %3434
  %s3437 = sor.u32 256, 8
  %3438 = vbcast.lane.b32.xlu0 %v3432, %s3437
  %v3439 = vpop.permute.xlu0 %3438
  %v3440 = vlaneseq
  %v3441 = vshrl.u32 %v3440, 7
  %v3442 = vsub.s32 5, %v3441
  %v3443 = vrot.slane %v3384, %v3442
  %3445 = vbcast.lane.b32.xlu0 %v3443, 256
  %v3446 = vpop.permute.xlu0 %3445
  %s3448 = sor.u32 256, 8
  %3449 = vbcast.lane.b32.xlu0 %v3443, %s3448
  %v3450 = vpop.permute.xlu0 %3449
  %v3451 = vlaneseq
  %v3452 = vshrl.u32 %v3451, 7
  %v3453 = vsub.s32 6, %v3452
  %v3454 = vrot.slane %v3384, %v3453
  %3456 = vbcast.lane.b32.xlu0 %v3454, 256
  %v3457 = vpop.permute.xlu0 %3456
  %s3459 = sor.u32 256, 8
  %3460 = vbcast.lane.b32.xlu0 %v3454, %s3459
  %v3461 = vpop.permute.xlu0 %3460
  %v3462 = vlaneseq
  %v3463 = vshrl.u32 %v3462, 7
  %v3464 = vsub.s32 7, %v3463
  %v3465 = vrot.slane %v3384, %v3464
  %3467 = vbcast.lane.b32.xlu0 %v3465, 256
  %v3468 = vpop.permute.xlu0 %3467
  %s3470 = sor.u32 256, 8
  %3471 = vbcast.lane.b32.xlu0 %v3465, %s3470
  %v3472 = vpop.permute.xlu0 %3471
  %v3474 = vcombine.high %v3384, %v3384
  %v3476 = vunpack.c.l.s4 1966171168
  %v3477 = vunpack.c.0.s8 %v3476
  %v3478 = vlaneseq
  %v3479 = vshrl.u32 %v3478, 7
  %v3480 = vsub.s32 %v3477, %v3479
  %v3481 = vrot.slane %v3384, %v3480
  %v3483 = vunpack.c.l.s4 1966171168
  %v3484 = vunpack.c.0.s8 %v3483
  %v3485 = vlaneseq
  %v3486 = vshrl.u32 %v3485, 7
  %v3487 = vsub.s32 %v3484, %v3486
  %v3488 = vrot.slane %v3474, %v3487
  %v3489 = vcombine.high %v3481, %v3481
  %v3490 = vcombine.high %v3488, %v3488
  %v3492 = vunpack.c.l.s4 1966171168
  %v3493 = vunpack.c.0.s8 %v3492
  %v3494 = vlaneseq
  %v3495 = vshrl.u32 %v3494, 7
  %v3496 = vsub.s32 %v3493, %v3495
  %v3497 = vrot.slane %v3481, %v3496
  %v3499 = vunpack.c.l.s4 1966171168
  %v3500 = vunpack.c.0.s8 %v3499
  %v3501 = vlaneseq
  %v3502 = vshrl.u32 %v3501, 7
  %v3503 = vsub.s32 %v3500, %v3502
  %v3504 = vrot.slane %v3488, %v3503
  %v3506 = vunpack.c.l.s4 1966171168
  %v3507 = vunpack.c.0.s8 %v3506
  %v3508 = vlaneseq
  %v3509 = vshrl.u32 %v3508, 7
  %v3510 = vsub.s32 %v3507, %v3509
  %v3511 = vrot.slane %v3489, %v3510
  %v3513 = vunpack.c.l.s4 1966171168
  %v3514 = vunpack.c.0.s8 %v3513
  %v3515 = vlaneseq
  %v3516 = vshrl.u32 %v3515, 7
  %v3517 = vsub.s32 %v3514, %v3516
  %v3518 = vrot.slane %v3490, %v3517
  %v3519 = vcombine.high %v3497, %v3497
  %v3520 = vcombine.high %v3504, %v3504
  %v3521 = vcombine.high %v3511, %v3511
  %v3522 = vcombine.high %v3518, %v3518
  %v3523 = vlaneseq
  %v3524 = vshrl.u32 %v3523, 7
  %v3525 = vsub.s32 0, %v3524
  %v3526 = vrot.slane %v3497, %v3525
  %v3527 = vlaneseq
  %v3528 = vshrl.u32 %v3527, 7
  %v3529 = vsub.s32 0, %v3528
  %v3530 = vrot.slane %v3511, %v3529
  %v3531 = vlaneseq
  %v3532 = vshrl.u32 %v3531, 7
  %v3533 = vsub.s32 0, %v3532
  %v3534 = vrot.slane %v3519, %v3533
  %v3535 = vlaneseq
  %v3536 = vshrl.u32 %v3535, 7
  %v3537 = vsub.s32 0, %v3536
  %v3538 = vrot.slane %v3521, %v3537
  %v3539 = vlaneseq
  %v3540 = vshrl.u32 %v3539, 7
  %v3541 = vsub.s32 0, %v3540
  %v3542 = vrot.slane %v3504, %v3541
  %v3543 = vlaneseq
  %v3544 = vshrl.u32 %v3543, 7
  %v3545 = vsub.s32 0, %v3544
  %v3546 = vrot.slane %v3518, %v3545
  %v3547 = vlaneseq
  %v3548 = vshrl.u32 %v3547, 7
  %v3549 = vsub.s32 0, %v3548
  %v3550 = vrot.slane %v3520, %v3549
  %v3551 = vlaneseq
  %v3552 = vshrl.u32 %v3551, 7
  %v3553 = vsub.s32 0, %v3552
  %v3554 = vrot.slane %v3522, %v3553
  %vm3563 = vcmp.ge.f32.partialorder %v3526, %v3391
  %vm3564 = vcmp.ge.f32.partialorder %v3526, %v3395
  %vm3565 = vcmp.ge.f32.partialorder %v3530, %v3402
  %vm3566 = vcmp.ge.f32.partialorder %v3530, %v3406
  %vm3567 = vcmp.ge.f32.partialorder %v3534, %v3413
  %vm3568 = vcmp.ge.f32.partialorder %v3534, %v3417
  %vm3569 = vcmp.ge.f32.partialorder %v3538, %v3424
  %vm3570 = vcmp.ge.f32.partialorder %v3538, %v3428
  %vm3571 = vcmp.ge.f32.partialorder %v3542, %v3435
  %vm3572 = vcmp.ge.f32.partialorder %v3542, %v3439
  %vm3573 = vcmp.ge.f32.partialorder %v3546, %v3446
  %vm3574 = vcmp.ge.f32.partialorder %v3546, %v3450
  %vm3575 = vcmp.ge.f32.partialorder %v3550, %v3457
  %vm3576 = vcmp.ge.f32.partialorder %v3550, %v3461
  %vm3577 = vcmp.ge.f32.partialorder %v3554, %v3468
  %vm3578 = vcmp.ge.f32.partialorder %v3554, %v3472
  %v3579 = vsel %vm3563, 1, 0
  %v3580 = vsel %vm3564, 1, 0
  %v3581 = vsel %vm3565, 1, 0
  %v3582 = vsel %vm3566, 1, 0
  %v3583 = vsel %vm3567, 1, 0
  %v3584 = vsel %vm3568, 1, 0
  %v3585 = vsel %vm3569, 1, 0
  %v3586 = vsel %vm3570, 1, 0
  %v3587 = vsel %vm3571, 1, 0
  %v3588 = vsel %vm3572, 1, 0
  %v3589 = vsel %vm3573, 1, 0
  %v3590 = vsel %vm3574, 1, 0
  %v3591 = vsel %vm3575, 1, 0
  %v3592 = vsel %vm3576, 1, 0
  %v3593 = vsel %vm3577, 1, 0
  %v3594 = vsel %vm3578, 1, 0
  %v3595 = vcvt.s32.f32 %v3579
  %v3596 = vcvt.s32.f32 %v3580
  %v3597 = vcvt.s32.f32 %v3581
  %v3598 = vcvt.s32.f32 %v3582
  %v3599 = vcvt.s32.f32 %v3583
  %v3600 = vcvt.s32.f32 %v3584
  %v3601 = vcvt.s32.f32 %v3585
  %v3602 = vcvt.s32.f32 %v3586
  %v3603 = vcvt.s32.f32 %v3587
  %v3604 = vcvt.s32.f32 %v3588
  %v3605 = vcvt.s32.f32 %v3589
  %v3606 = vcvt.s32.f32 %v3590
  %v3607 = vcvt.s32.f32 %v3591
  %v3608 = vcvt.s32.f32 %v3592
  %v3609 = vcvt.s32.f32 %v3593
  %v3610 = vcvt.s32.f32 %v3594
  %v3611 = vsel %vm57, %v3595, 0.0
  %3612 = vadd.xlane.f32.xlu0 %v3611
  %v3613 = vpop.xlane.xlu0 %3612
  %v3614 = vsel %vm57, %v3596, 0.0
  %3615 = vadd.xlane.f32.xlu0 %v3614
  %v3616 = vpop.xlane.xlu0 %3615
  %v3617 = vsel %vm57, %v3597, 0.0
  %3618 = vadd.xlane.f32.xlu0 %v3617
  %v3619 = vpop.xlane.xlu0 %3618
  %v3620 = vsel %vm57, %v3598, 0.0
  %3621 = vadd.xlane.f32.xlu0 %v3620
  %v3622 = vpop.xlane.xlu0 %3621
  %v3623 = vsel %vm57, %v3599, 0.0
  %3624 = vadd.xlane.f32.xlu0 %v3623
  %v3625 = vpop.xlane.xlu0 %3624
  %v3626 = vsel %vm57, %v3600, 0.0
  %3627 = vadd.xlane.f32.xlu0 %v3626
  %v3628 = vpop.xlane.xlu0 %3627
  %v3629 = vsel %vm57, %v3601, 0.0
  %3630 = vadd.xlane.f32.xlu0 %v3629
  %v3631 = vpop.xlane.xlu0 %3630
  %v3632 = vsel %vm57, %v3602, 0.0
  %3633 = vadd.xlane.f32.xlu0 %v3632
  %v3634 = vpop.xlane.xlu0 %3633
  %v3635 = vsel %vm57, %v3603, 0.0
  %3636 = vadd.xlane.f32.xlu0 %v3635
  %v3637 = vpop.xlane.xlu0 %3636
  %v3638 = vsel %vm57, %v3604, 0.0
  %3639 = vadd.xlane.f32.xlu0 %v3638
  %v3640 = vpop.xlane.xlu0 %3639
  %v3641 = vsel %vm57, %v3605, 0.0
  %3642 = vadd.xlane.f32.xlu0 %v3641
  %v3643 = vpop.xlane.xlu0 %3642
  %v3644 = vsel %vm57, %v3606, 0.0
  %3645 = vadd.xlane.f32.xlu0 %v3644
  %v3646 = vpop.xlane.xlu0 %3645
  %v3647 = vsel %vm57, %v3607, 0.0
  %3648 = vadd.xlane.f32.xlu0 %v3647
  %v3649 = vpop.xlane.xlu0 %3648
  %v3650 = vsel %vm57, %v3608, 0.0
  %3651 = vadd.xlane.f32.xlu0 %v3650
  %v3652 = vpop.xlane.xlu0 %3651
  %v3653 = vsel %vm57, %v3609, 0.0
  %3654 = vadd.xlane.f32.xlu0 %v3653
  %v3655 = vpop.xlane.xlu0 %3654
  %v3656 = vsel %vm57, %v3610, 0.0
  %3657 = vadd.xlane.f32.xlu0 %v3656
  %v3658 = vpop.xlane.xlu0 %3657
  %v3659 = vsel %vm3563, %v3526, 0.0
  %v3660 = vsel %vm3564, %v3526, 0.0
  %v3661 = vsel %vm3565, %v3530, 0.0
  %v3662 = vsel %vm3566, %v3530, 0.0
  %v3663 = vsel %vm3567, %v3534, 0.0
  %v3664 = vsel %vm3568, %v3534, 0.0
  %v3665 = vsel %vm3569, %v3538, 0.0
  %v3666 = vsel %vm3570, %v3538, 0.0
  %v3667 = vsel %vm3571, %v3542, 0.0
  %v3668 = vsel %vm3572, %v3542, 0.0
  %v3669 = vsel %vm3573, %v3546, 0.0
  %v3670 = vsel %vm3574, %v3546, 0.0
  %v3671 = vsel %vm3575, %v3550, 0.0
  %v3672 = vsel %vm3576, %v3550, 0.0
  %v3673 = vsel %vm3577, %v3554, 0.0
  %v3674 = vsel %vm3578, %v3554, 0.0
  %v3675 = vsel %vm57, %v3659, 0.0
  %3676 = vadd.xlane.f32.xlu0 %v3675
  %v3677 = vpop.xlane.xlu0 %3676
  %v3678 = vsel %vm57, %v3660, 0.0
  %3679 = vadd.xlane.f32.xlu0 %v3678
  %v3680 = vpop.xlane.xlu0 %3679
  %v3681 = vsel %vm57, %v3661, 0.0
  %3682 = vadd.xlane.f32.xlu0 %v3681
  %v3683 = vpop.xlane.xlu0 %3682
  %v3684 = vsel %vm57, %v3662, 0.0
  %3685 = vadd.xlane.f32.xlu0 %v3684
  %v3686 = vpop.xlane.xlu0 %3685
  %v3687 = vsel %vm57, %v3663, 0.0
  %3688 = vadd.xlane.f32.xlu0 %v3687
  %v3689 = vpop.xlane.xlu0 %3688
  %v3690 = vsel %vm57, %v3664, 0.0
  %3691 = vadd.xlane.f32.xlu0 %v3690
  %v3692 = vpop.xlane.xlu0 %3691
  %v3693 = vsel %vm57, %v3665, 0.0
  %3694 = vadd.xlane.f32.xlu0 %v3693
  %v3695 = vpop.xlane.xlu0 %3694
  %v3696 = vsel %vm57, %v3666, 0.0
  %3697 = vadd.xlane.f32.xlu0 %v3696
  %v3698 = vpop.xlane.xlu0 %3697
  %v3699 = vsel %vm57, %v3667, 0.0
  %3700 = vadd.xlane.f32.xlu0 %v3699
  %v3701 = vpop.xlane.xlu0 %3700
  %v3702 = vsel %vm57, %v3668, 0.0
  %3703 = vadd.xlane.f32.xlu0 %v3702
  %v3704 = vpop.xlane.xlu0 %3703
  %v3705 = vsel %vm57, %v3669, 0.0
  %3706 = vadd.xlane.f32.xlu0 %v3705
  %v3707 = vpop.xlane.xlu0 %3706
  %v3708 = vsel %vm57, %v3670, 0.0
  %3709 = vadd.xlane.f32.xlu0 %v3708
  %v3710 = vpop.xlane.xlu0 %3709
  %v3711 = vsel %vm57, %v3671, 0.0
  %3712 = vadd.xlane.f32.xlu0 %v3711
  %v3713 = vpop.xlane.xlu0 %3712
  %v3714 = vsel %vm57, %v3672, 0.0
  %3715 = vadd.xlane.f32.xlu0 %v3714
  %v3716 = vpop.xlane.xlu0 %3715
  %v3717 = vsel %vm57, %v3673, 0.0
  %3718 = vadd.xlane.f32.xlu0 %v3717
  %v3719 = vpop.xlane.xlu0 %3718
  %v3720 = vsel %vm57, %v3674, 0.0
  %3721 = vadd.xlane.f32.xlu0 %v3720
  %v3722 = vpop.xlane.xlu0 %3721
  %v3723 = vlaneseq
  %v3724 = vshrl.u32 %v3723, 7
  %v3725 = vsub.s32 0, %v3724
  %v3726 = vrot.slane %v3384, %v3725
  %3728 = vbcast.lane.b32.xlu0 %v3726, 256
  %v3729 = vpop.permute.xlu0 %3728
  %s3731 = sor.u32 256, 8
  %3732 = vbcast.lane.b32.xlu0 %v3726, %s3731
  %v3733 = vpop.permute.xlu0 %3732
  %v3734 = vlaneseq
  %v3735 = vshrl.u32 %v3734, 7
  %v3736 = vsub.s32 1, %v3735
  %v3737 = vrot.slane %v3384, %v3736
  %3739 = vbcast.lane.b32.xlu0 %v3737, 256
  %v3740 = vpop.permute.xlu0 %3739
  %s3742 = sor.u32 256, 8
  %3743 = vbcast.lane.b32.xlu0 %v3737, %s3742
  %v3744 = vpop.permute.xlu0 %3743
  %v3745 = vlaneseq
  %v3746 = vshrl.u32 %v3745, 7
  %v3747 = vsub.s32 2, %v3746
  %v3748 = vrot.slane %v3384, %v3747
  %3750 = vbcast.lane.b32.xlu0 %v3748, 256
  %v3751 = vpop.permute.xlu0 %3750
  %s3753 = sor.u32 256, 8
  %3754 = vbcast.lane.b32.xlu0 %v3748, %s3753
  %v3755 = vpop.permute.xlu0 %3754
  %v3756 = vlaneseq
  %v3757 = vshrl.u32 %v3756, 7
  %v3758 = vsub.s32 3, %v3757
  %v3759 = vrot.slane %v3384, %v3758
  %3761 = vbcast.lane.b32.xlu0 %v3759, 256
  %v3762 = vpop.permute.xlu0 %3761
  %s3764 = sor.u32 256, 8
  %3765 = vbcast.lane.b32.xlu0 %v3759, %s3764
  %v3766 = vpop.permute.xlu0 %3765
  %v3767 = vlaneseq
  %v3768 = vshrl.u32 %v3767, 7
  %v3769 = vsub.s32 4, %v3768
  %v3770 = vrot.slane %v3384, %v3769
  %3772 = vbcast.lane.b32.xlu0 %v3770, 256
  %v3773 = vpop.permute.xlu0 %3772
  %s3775 = sor.u32 256, 8
  %3776 = vbcast.lane.b32.xlu0 %v3770, %s3775
  %v3777 = vpop.permute.xlu0 %3776
  %v3778 = vlaneseq
  %v3779 = vshrl.u32 %v3778, 7
  %v3780 = vsub.s32 5, %v3779
  %v3781 = vrot.slane %v3384, %v3780
  %3783 = vbcast.lane.b32.xlu0 %v3781, 256
  %v3784 = vpop.permute.xlu0 %3783
  %s3786 = sor.u32 256, 8
  %3787 = vbcast.lane.b32.xlu0 %v3781, %s3786
  %v3788 = vpop.permute.xlu0 %3787
  %v3789 = vlaneseq
  %v3790 = vshrl.u32 %v3789, 7
  %v3791 = vsub.s32 6, %v3790
  %v3792 = vrot.slane %v3384, %v3791
  %3794 = vbcast.lane.b32.xlu0 %v3792, 256
  %v3795 = vpop.permute.xlu0 %3794
  %s3797 = sor.u32 256, 8
  %3798 = vbcast.lane.b32.xlu0 %v3792, %s3797
  %v3799 = vpop.permute.xlu0 %3798
  %v3800 = vlaneseq
  %v3801 = vshrl.u32 %v3800, 7
  %v3802 = vsub.s32 7, %v3801
  %v3803 = vrot.slane %v3384, %v3802
  %3805 = vbcast.lane.b32.xlu0 %v3803, 256
  %v3806 = vpop.permute.xlu0 %3805
  %s3808 = sor.u32 256, 8
  %3809 = vbcast.lane.b32.xlu0 %v3803, %s3808
  %v3810 = vpop.permute.xlu0 %3809
  %v3827 = vmul.f32 %v3613, %v3729
  %v3828 = vmul.f32 %v3616, %v3733
  %v3829 = vmul.f32 %v3619, %v3740
  %v3830 = vmul.f32 %v3622, %v3744
  %v3831 = vmul.f32 %v3625, %v3751
  %v3832 = vmul.f32 %v3628, %v3755
  %v3833 = vmul.f32 %v3631, %v3762
  %v3834 = vmul.f32 %v3634, %v3766
  %v3835 = vmul.f32 %v3637, %v3773
  %v3836 = vmul.f32 %v3640, %v3777
  %v3837 = vmul.f32 %v3643, %v3784
  %v3838 = vmul.f32 %v3646, %v3788
  %v3839 = vmul.f32 %v3649, %v3795
  %v3840 = vmul.f32 %v3652, %v3799
  %v3841 = vmul.f32 %v3655, %v3806
  %v3842 = vmul.f32 %v3658, %v3810
  %v3843 = vadd.f32 %v3827, 1.0
  %v3844 = vadd.f32 %v3828, 1.0
  %v3845 = vadd.f32 %v3829, 1.0
  %v3846 = vadd.f32 %v3830, 1.0
  %v3847 = vadd.f32 %v3831, 1.0
  %v3848 = vadd.f32 %v3832, 1.0
  %v3849 = vadd.f32 %v3833, 1.0
  %v3850 = vadd.f32 %v3834, 1.0
  %v3851 = vadd.f32 %v3835, 1.0
  %v3852 = vadd.f32 %v3836, 1.0
  %v3853 = vadd.f32 %v3837, 1.0
  %v3854 = vadd.f32 %v3838, 1.0
  %v3855 = vadd.f32 %v3839, 1.0
  %v3856 = vadd.f32 %v3840, 1.0
  %v3857 = vadd.f32 %v3841, 1.0
  %v3858 = vadd.f32 %v3842, 1.0
  %vm3859 = vcmp.gt.f32.partialorder %v3843, %v3677
  %vm3860 = vcmp.gt.f32.partialorder %v3844, %v3680
  %vm3861 = vcmp.gt.f32.partialorder %v3845, %v3683
  %vm3862 = vcmp.gt.f32.partialorder %v3846, %v3686
  %vm3863 = vcmp.gt.f32.partialorder %v3847, %v3689
  %vm3864 = vcmp.gt.f32.partialorder %v3848, %v3692
  %vm3865 = vcmp.gt.f32.partialorder %v3849, %v3695
  %vm3866 = vcmp.gt.f32.partialorder %v3850, %v3698
  %vm3867 = vcmp.gt.f32.partialorder %v3851, %v3701
  %vm3868 = vcmp.gt.f32.partialorder %v3852, %v3704
  %vm3869 = vcmp.gt.f32.partialorder %v3853, %v3707
  %vm3870 = vcmp.gt.f32.partialorder %v3854, %v3710
  %vm3871 = vcmp.gt.f32.partialorder %v3855, %v3713
  %vm3872 = vcmp.gt.f32.partialorder %v3856, %v3716
  %vm3873 = vcmp.gt.f32.partialorder %v3857, %v3719
  %vm3874 = vcmp.gt.f32.partialorder %v3858, %v3722
  %v3875 = vsel %vm3859, 1, 0
  %v3876 = vsel %vm3860, 1, 0
  %v3877 = vsel %vm3861, 1, 0
  %v3878 = vsel %vm3862, 1, 0
  %v3879 = vsel %vm3863, 1, 0
  %v3880 = vsel %vm3864, 1, 0
  %v3881 = vsel %vm3865, 1, 0
  %v3882 = vsel %vm3866, 1, 0
  %v3883 = vsel %vm3867, 1, 0
  %v3884 = vsel %vm3868, 1, 0
  %v3885 = vsel %vm3869, 1, 0
  %v3886 = vsel %vm3870, 1, 0
  %v3887 = vsel %vm3871, 1, 0
  %v3888 = vsel %vm3872, 1, 0
  %v3889 = vsel %vm3873, 1, 0
  %v3890 = vsel %vm3874, 1, 0
  %v3891 = vcvt.s32.f32 %v3875
  %v3892 = vcvt.s32.f32 %v3876
  %v3893 = vcvt.s32.f32 %v3877
  %v3894 = vcvt.s32.f32 %v3878
  %v3895 = vcvt.s32.f32 %v3879
  %v3896 = vcvt.s32.f32 %v3880
  %v3897 = vcvt.s32.f32 %v3881
  %v3898 = vcvt.s32.f32 %v3882
  %v3899 = vcvt.s32.f32 %v3883
  %v3900 = vcvt.s32.f32 %v3884
  %v3901 = vcvt.s32.f32 %v3885
  %v3902 = vcvt.s32.f32 %v3886
  %v3903 = vcvt.s32.f32 %v3887
  %v3904 = vcvt.s32.f32 %v3888
  %v3905 = vcvt.s32.f32 %v3889
  %v3906 = vcvt.s32.f32 %v3890
  %3923 = vset.pattern.permute.xlu0 0
  %3924 = vperm.xlu0 %3923, %v3891
  %v3925 = vpop.permute.xlu0 %3924
  %3926 = vset.pattern.permute.xlu0 0
  %3927 = vperm.xlu0 %3926, %v3892
  %v3928 = vpop.permute.xlu0 %3927
  %3929 = vset.pattern.permute.xlu0 0
  %3930 = vperm.xlu0 %3929, %v3893
  %v3931 = vpop.permute.xlu0 %3930
  %3932 = vset.pattern.permute.xlu0 0
  %3933 = vperm.xlu0 %3932, %v3894
  %v3934 = vpop.permute.xlu0 %3933
  %3935 = vset.pattern.permute.xlu0 0
  %3936 = vperm.xlu0 %3935, %v3895
  %v3937 = vpop.permute.xlu0 %3936
  %3938 = vset.pattern.permute.xlu0 0
  %3939 = vperm.xlu0 %3938, %v3896
  %v3940 = vpop.permute.xlu0 %3939
  %3941 = vset.pattern.permute.xlu0 0
  %3942 = vperm.xlu0 %3941, %v3897
  %v3943 = vpop.permute.xlu0 %3942
  %3944 = vset.pattern.permute.xlu0 0
  %3945 = vperm.xlu0 %3944, %v3898
  %v3946 = vpop.permute.xlu0 %3945
  %3947 = vset.pattern.permute.xlu0 0
  %3948 = vperm.xlu0 %3947, %v3899
  %v3949 = vpop.permute.xlu0 %3948
  %3950 = vset.pattern.permute.xlu0 0
  %3951 = vperm.xlu0 %3950, %v3900
  %v3952 = vpop.permute.xlu0 %3951
  %3953 = vset.pattern.permute.xlu0 0
  %3954 = vperm.xlu0 %3953, %v3901
  %v3955 = vpop.permute.xlu0 %3954
  %3956 = vset.pattern.permute.xlu0 0
  %3957 = vperm.xlu0 %3956, %v3902
  %v3958 = vpop.permute.xlu0 %3957
  %3959 = vset.pattern.permute.xlu0 0
  %3960 = vperm.xlu0 %3959, %v3903
  %v3961 = vpop.permute.xlu0 %3960
  %3962 = vset.pattern.permute.xlu0 0
  %3963 = vperm.xlu0 %3962, %v3904
  %v3964 = vpop.permute.xlu0 %3963
  %3965 = vset.pattern.permute.xlu0 0
  %3966 = vperm.xlu0 %3965, %v3905
  %v3967 = vpop.permute.xlu0 %3966
  %3968 = vset.pattern.permute.xlu0 0
  %3969 = vperm.xlu0 %3968, %v3906
  %v3970 = vpop.permute.xlu0 %3969
  %v3971 = vlaneseq
  %v3972 = vshrl.u32 %v3971, 7
  %v3973 = vsub.s32 %v1181, %v3972
  %v3974 = vrot.slane %v3925, %v3973
  %v3975 = vlaneseq
  %v3976 = vshrl.u32 %v3975, 7
  %v3977 = vsub.s32 %v1186, %v3976
  %v3978 = vrot.slane %v3928, %v3977
  %v3979 = vsel %vm1191, %v3978, %v3974
  %v3980 = vlaneseq
  %v3981 = vshrl.u32 %v3980, 7
  %v3982 = vsub.s32 %v1181, %v3981
  %v3983 = vrot.slane %v3931, %v3982
  %v3984 = vlaneseq
  %v3985 = vshrl.u32 %v3984, 7
  %v3986 = vsub.s32 %v1186, %v3985
  %v3987 = vrot.slane %v3934, %v3986
  %v3988 = vsel %vm1191, %v3987, %v3983
  %v3989 = vlaneseq
  %v3990 = vshrl.u32 %v3989, 7
  %v3991 = vsub.s32 %v1181, %v3990
  %v3992 = vrot.slane %v3937, %v3991
  %v3993 = vlaneseq
  %v3994 = vshrl.u32 %v3993, 7
  %v3995 = vsub.s32 %v1186, %v3994
  %v3996 = vrot.slane %v3940, %v3995
  %v3997 = vsel %vm1191, %v3996, %v3992
  %v3998 = vlaneseq
  %v3999 = vshrl.u32 %v3998, 7
  %v4000 = vsub.s32 %v1181, %v3999
  %v4001 = vrot.slane %v3943, %v4000
  %v4002 = vlaneseq
  %v4003 = vshrl.u32 %v4002, 7
  %v4004 = vsub.s32 %v1186, %v4003
  %v4005 = vrot.slane %v3946, %v4004
  %v4006 = vsel %vm1191, %v4005, %v4001
  %v4007 = vlaneseq
  %v4008 = vshrl.u32 %v4007, 7
  %v4009 = vsub.s32 %v1181, %v4008
  %v4010 = vrot.slane %v3949, %v4009
  %v4011 = vlaneseq
  %v4012 = vshrl.u32 %v4011, 7
  %v4013 = vsub.s32 %v1186, %v4012
  %v4014 = vrot.slane %v3952, %v4013
  %v4015 = vsel %vm1191, %v4014, %v4010
  %v4016 = vlaneseq
  %v4017 = vshrl.u32 %v4016, 7
  %v4018 = vsub.s32 %v1181, %v4017
  %v4019 = vrot.slane %v3955, %v4018
  %v4020 = vlaneseq
  %v4021 = vshrl.u32 %v4020, 7
  %v4022 = vsub.s32 %v1186, %v4021
  %v4023 = vrot.slane %v3958, %v4022
  %v4024 = vsel %vm1191, %v4023, %v4019
  %v4025 = vlaneseq
  %v4026 = vshrl.u32 %v4025, 7
  %v4027 = vsub.s32 %v1181, %v4026
  %v4028 = vrot.slane %v3961, %v4027
  %v4029 = vlaneseq
  %v4030 = vshrl.u32 %v4029, 7
  %v4031 = vsub.s32 %v1186, %v4030
  %v4032 = vrot.slane %v3964, %v4031
  %v4033 = vsel %vm1191, %v4032, %v4028
  %v4034 = vlaneseq
  %v4035 = vshrl.u32 %v4034, 7
  %v4036 = vsub.s32 %v1181, %v4035
  %v4037 = vrot.slane %v3967, %v4036
  %v4038 = vlaneseq
  %v4039 = vshrl.u32 %v4038, 7
  %v4040 = vsub.s32 %v1186, %v4039
  %v4041 = vrot.slane %v3970, %v4040
  %v4042 = vsel %vm1191, %v4041, %v4037
  %v4043 = vsel %vm1256, %v3988, %v3979
  %v4044 = vsel %vm1258, %v3997, %v4043
  %v4045 = vsel %vm1260, %v4006, %v4044
  %v4046 = vsel %vm1262, %v4015, %v4045
  %v4047 = vsel %vm1264, %v4024, %v4046
  %v4048 = vsel %vm1266, %v4033, %v4047
  %v4049 = vsel %vm1268, %v4042, %v4048
  %v4051 = vsel %vm57, %v4049, 0.0
  %4052 = vadd.xlane.f32.xlu0 %v4051
  %v4053 = vpop.xlane.xlu0 %4052
  %v4054 = vsel %vm3859, %v3729, 0.0
  %v4055 = vsel %vm3860, %v3733, 0.0
  %v4056 = vsel %vm3861, %v3740, 0.0
  %v4057 = vsel %vm3862, %v3744, 0.0
  %v4058 = vsel %vm3863, %v3751, 0.0
  %v4059 = vsel %vm3864, %v3755, 0.0
  %v4060 = vsel %vm3865, %v3762, 0.0
  %v4061 = vsel %vm3866, %v3766, 0.0
  %v4062 = vsel %vm3867, %v3773, 0.0
  %v4063 = vsel %vm3868, %v3777, 0.0
  %v4064 = vsel %vm3869, %v3784, 0.0
  %v4065 = vsel %vm3870, %v3788, 0.0
  %v4066 = vsel %vm3871, %v3795, 0.0
  %v4067 = vsel %vm3872, %v3799, 0.0
  %v4068 = vsel %vm3873, %v3806, 0.0
  %v4069 = vsel %vm3874, %v3810, 0.0
  %4086 = vset.pattern.permute.xlu0 0
  %4087 = vperm.xlu0 %4086, %v4054
  %v4088 = vpop.permute.xlu0 %4087
  %4089 = vset.pattern.permute.xlu0 0
  %4090 = vperm.xlu0 %4089, %v4055
  %v4091 = vpop.permute.xlu0 %4090
  %4092 = vset.pattern.permute.xlu0 0
  %4093 = vperm.xlu0 %4092, %v4056
  %v4094 = vpop.permute.xlu0 %4093
  %4095 = vset.pattern.permute.xlu0 0
  %4096 = vperm.xlu0 %4095, %v4057
  %v4097 = vpop.permute.xlu0 %4096
  %4098 = vset.pattern.permute.xlu0 0
  %4099 = vperm.xlu0 %4098, %v4058
  %v4100 = vpop.permute.xlu0 %4099
  %4101 = vset.pattern.permute.xlu0 0
  %4102 = vperm.xlu0 %4101, %v4059
  %v4103 = vpop.permute.xlu0 %4102
  %4104 = vset.pattern.permute.xlu0 0
  %4105 = vperm.xlu0 %4104, %v4060
  %v4106 = vpop.permute.xlu0 %4105
  %4107 = vset.pattern.permute.xlu0 0
  %4108 = vperm.xlu0 %4107, %v4061
  %v4109 = vpop.permute.xlu0 %4108
  %4110 = vset.pattern.permute.xlu0 0
  %4111 = vperm.xlu0 %4110, %v4062
  %v4112 = vpop.permute.xlu0 %4111
  %4113 = vset.pattern.permute.xlu0 0
  %4114 = vperm.xlu0 %4113, %v4063
  %v4115 = vpop.permute.xlu0 %4114
  %4116 = vset.pattern.permute.xlu0 0
  %4117 = vperm.xlu0 %4116, %v4064
  %v4118 = vpop.permute.xlu0 %4117
  %4119 = vset.pattern.permute.xlu0 0
  %4120 = vperm.xlu0 %4119, %v4065
  %v4121 = vpop.permute.xlu0 %4120
  %4122 = vset.pattern.permute.xlu0 0
  %4123 = vperm.xlu0 %4122, %v4066
  %v4124 = vpop.permute.xlu0 %4123
  %4125 = vset.pattern.permute.xlu0 0
  %4126 = vperm.xlu0 %4125, %v4067
  %v4127 = vpop.permute.xlu0 %4126
  %4128 = vset.pattern.permute.xlu0 0
  %4129 = vperm.xlu0 %4128, %v4068
  %v4130 = vpop.permute.xlu0 %4129
  %4131 = vset.pattern.permute.xlu0 0
  %4132 = vperm.xlu0 %4131, %v4069
  %v4133 = vpop.permute.xlu0 %4132
  %v4134 = vlaneseq
  %v4135 = vshrl.u32 %v4134, 7
  %v4136 = vsub.s32 %v1181, %v4135
  %v4137 = vrot.slane %v4088, %v4136
  %v4138 = vlaneseq
  %v4139 = vshrl.u32 %v4138, 7
  %v4140 = vsub.s32 %v1186, %v4139
  %v4141 = vrot.slane %v4091, %v4140
  %v4142 = vsel %vm1191, %v4141, %v4137
  %v4143 = vlaneseq
  %v4144 = vshrl.u32 %v4143, 7
  %v4145 = vsub.s32 %v1181, %v4144
  %v4146 = vrot.slane %v4094, %v4145
  %v4147 = vlaneseq
  %v4148 = vshrl.u32 %v4147, 7
  %v4149 = vsub.s32 %v1186, %v4148
  %v4150 = vrot.slane %v4097, %v4149
  %v4151 = vsel %vm1191, %v4150, %v4146
  %v4152 = vlaneseq
  %v4153 = vshrl.u32 %v4152, 7
  %v4154 = vsub.s32 %v1181, %v4153
  %v4155 = vrot.slane %v4100, %v4154
  %v4156 = vlaneseq
  %v4157 = vshrl.u32 %v4156, 7
  %v4158 = vsub.s32 %v1186, %v4157
  %v4159 = vrot.slane %v4103, %v4158
  %v4160 = vsel %vm1191, %v4159, %v4155
  %v4161 = vlaneseq
  %v4162 = vshrl.u32 %v4161, 7
  %v4163 = vsub.s32 %v1181, %v4162
  %v4164 = vrot.slane %v4106, %v4163
  %v4165 = vlaneseq
  %v4166 = vshrl.u32 %v4165, 7
  %v4167 = vsub.s32 %v1186, %v4166
  %v4168 = vrot.slane %v4109, %v4167
  %v4169 = vsel %vm1191, %v4168, %v4164
  %v4170 = vlaneseq
  %v4171 = vshrl.u32 %v4170, 7
  %v4172 = vsub.s32 %v1181, %v4171
  %v4173 = vrot.slane %v4112, %v4172
  %v4174 = vlaneseq
  %v4175 = vshrl.u32 %v4174, 7
  %v4176 = vsub.s32 %v1186, %v4175
  %v4177 = vrot.slane %v4115, %v4176
  %v4178 = vsel %vm1191, %v4177, %v4173
  %v4179 = vlaneseq
  %v4180 = vshrl.u32 %v4179, 7
  %v4181 = vsub.s32 %v1181, %v4180
  %v4182 = vrot.slane %v4118, %v4181
  %v4183 = vlaneseq
  %v4184 = vshrl.u32 %v4183, 7
  %v4185 = vsub.s32 %v1186, %v4184
  %v4186 = vrot.slane %v4121, %v4185
  %v4187 = vsel %vm1191, %v4186, %v4182
  %v4188 = vlaneseq
  %v4189 = vshrl.u32 %v4188, 7
  %v4190 = vsub.s32 %v1181, %v4189
  %v4191 = vrot.slane %v4124, %v4190
  %v4192 = vlaneseq
  %v4193 = vshrl.u32 %v4192, 7
  %v4194 = vsub.s32 %v1186, %v4193
  %v4195 = vrot.slane %v4127, %v4194
  %v4196 = vsel %vm1191, %v4195, %v4191
  %v4197 = vlaneseq
  %v4198 = vshrl.u32 %v4197, 7
  %v4199 = vsub.s32 %v1181, %v4198
  %v4200 = vrot.slane %v4130, %v4199
  %v4201 = vlaneseq
  %v4202 = vshrl.u32 %v4201, 7
  %v4203 = vsub.s32 %v1186, %v4202
  %v4204 = vrot.slane %v4133, %v4203
  %v4205 = vsel %vm1191, %v4204, %v4200
  %v4206 = vsel %vm1256, %v4151, %v4142
  %v4207 = vsel %vm1258, %v4160, %v4206
  %v4208 = vsel %vm1260, %v4169, %v4207
  %v4209 = vsel %vm1262, %v4178, %v4208
  %v4210 = vsel %vm1264, %v4187, %v4209
  %v4211 = vsel %vm1266, %v4196, %v4210
  %v4212 = vsel %vm1268, %v4205, %v4211
  %v4214 = vsel %vm57, %v4212, 0.0
  %4215 = vadd.xlane.f32.xlu0 %v4214
  %v4216 = vpop.xlane.xlu0 %4215
  %v4217 = vsub.f32 %v4216, 1.0
  %v4218 = vrcp.pop %v4053
  %v4219 = vmul.f32 %v4217, %v4218
  %v4220 = vsub.f32 %v3384, %v4219
  %v4221 = vmax.f32 %v4220, 0.0
  %v4222 = vadd.f32 %v4221, 1e-15
  %v4223 = vlog2.pop %v4222
  %v4224 = vmul.f32 %v4223, 0.6931472
  %v4225 = vmul.f32 %v4221, %v4224
  %v4226 = vsel %vm57, %v4225, 0.0
  %4227 = vadd.xlane.f32.xlu0 %v4226
  %v4228 = vpop.xlane.xlu0 %4227
  %v4229 = vadd.f32 %v2840, %v4228
  %s4230 = scalar_lea.vmem %s6, 64
  %v4231 = vld [vmem:[%s4230] sm:$0xff]
  %v4232 = vld [vmem:[%s4230 + $0x8] sm:$0xff]
  %s4233 = scalar_lea.vmem %s6, 80
  %v4234 = vld [vmem:[%s4233] sm:$0xff]
  %v4235 = vld [vmem:[%s4233 + $0x8] sm:$0xff]
  %v4236 = vmul.f32 %v4221, %v51
  %v4238 = vsel %vm57, %v4236, 0
  %4240 = vmatprep.subr.mxu0 0.0
  %4241 = vmatpush1.msra.mxu0 %v31
  %4242 = vmatprep.subr.mxu0 0.0
  %4243 = vmatpush1.msra.mxu0 %v32
  %4244 = vmatprep.subr.mxu0 0.0
  %4245 = vmatpush1.msra.mxu0 0.0
  %4246 = vmatprep.subr.mxu0 0.0
  %4247 = vmatpush1.msra.mxu0 0.0
  %4248 = vmatprep.subr.mxu0 0.0
  %4249 = vmatpush1.msra.mxu0 0.0
  %4250 = vmatprep.subr.mxu0 0.0
  %4251 = vmatpush1.msra.mxu0 0.0
  %4252 = vmatprep.subr.mxu0 0.0
  %4253 = vmatpush1.msra.mxu0 0.0
  %4254 = vmatprep.subr.mxu0 0.0
  %4255 = vmatpush1.msra.mxu0 0.0
  %4256 = vmatprep.subr.mxu0 0.0
  %4257 = vmatpush1.msra.mxu0 0.0
  %4258 = vmatprep.subr.mxu0 0.0
  %4259 = vmatpush1.msra.mxu0 0.0
  %4260 = vmatprep.subr.mxu0 0.0
  %4261 = vmatpush1.msra.mxu0 0.0
  %4262 = vmatprep.subr.mxu0 0.0
  %4263 = vmatpush1.msra.mxu0 0.0
  %4264 = vmatprep.subr.mxu0 0.0
  %4265 = vmatpush1.msra.mxu0 0.0
  %4266 = vmatprep.subr.mxu0 0.0
  %4267 = vmatpush1.msra.mxu0 0.0
  %4268 = vmatprep.subr.mxu0 0.0
  %4269 = vmatpush1.msra.mxu0 0.0
  %4270 = vmatprep.subr.mxu0 0.0
  %4271 = vmatpush1.msra.mxu0 0.0
  %4272 = vmatprep.subr.mxu0 0.0
  %4273 = vmatpush1.msra.mxu0 0.0
  %4274 = vmatprep.subr.mxu0 0.0
  %4275 = vmatpush1.msra.mxu0 0.0
  %4276 = vmatprep.subr.mxu0 0.0
  %4277 = vmatpush1.msra.mxu0 0.0
  %4278 = vmatprep.subr.mxu0 0.0
  %4279 = vmatpush1.msra.mxu0 0.0
  %4280 = vmatprep.subr.mxu0 0.0
  %4281 = vmatpush1.msra.mxu0 0.0
  %4282 = vmatprep.subr.mxu0 0.0
  %4283 = vmatpush1.msra.mxu0 0.0
  %4284 = vmatprep.subr.mxu0 0.0
  %4285 = vmatpush1.msra.mxu0 0.0
  %4286 = vmatprep.subr.mxu0 0.0
  %4287 = vmatpush1.msra.mxu0 0.0
  %4288 = vmatprep.subr.mxu0 0.0
  %4289 = vmatpush1.msra.mxu0 0.0
  %4290 = vmatprep.subr.mxu0 0.0
  %4291 = vmatpush1.msra.mxu0 0.0
  %4292 = vmatprep.subr.mxu0 0.0
  %4293 = vmatpush1.msra.mxu0 0.0
  %4294 = vmatprep.subr.mxu0 0.0
  %4295 = vmatpush1.msra.mxu0 0.0
  %4296 = vmatprep.subr.mxu0 0.0
  %4297 = vmatpush1.msra.mxu0 0.0
  %4298 = vmatprep.subr.mxu0 0.0
  %4299 = vmatpush1.msra.mxu0 0.0
  %4300 = vmatprep.subr.mxu0 0.0
  %4301 = vmatpush1.msra.mxu0 0.0
  %4302 = vmatprep.subr.mxu0 0.0
  %4303 = vmatpush1.msra.mxu0 0.0
  %4304 = vmatprep.mubr.f32.mxu0 0.0
  %4305 = vmatmul.mubr.f32.gmra.mrb[0].mxu0 %v4238
  %v4306 = vpop.f32.mrb[0].mxu0
  %v4307 = vadd.f32 0.0, %v4306
  %v4308 = vpop.f32.mrb[0].mxu0
  %4309 = vdwg.mxu0
  %v4310 = vsel %vm131, %v4307, 0.0
  %v4311 = vrot.slane %v4310, 4
  %v4312 = vadd.f32 %v4310, %v4311
  %v4313 = vrot.slane %v4312, 2
  %v4314 = vadd.f32 %v4312, %v4313
  %v4315 = vrot.slane %v4314, 1
  %v4316 = vadd.f32 %v4314, %v4315
  %v4317 = vmul.f32 %v4307, %v4307
  %v4318 = vsel %vm131, %v4317, 0.0
  %v4319 = vrot.slane %v4318, 4
  %v4320 = vadd.f32 %v4318, %v4319
  %v4321 = vrot.slane %v4320, 2
  %v4322 = vadd.f32 %v4320, %v4321
  %v4323 = vrot.slane %v4322, 1
  %v4324 = vadd.f32 %v4322, %v4323
  %v4325 = vmul.f32 %v4316, 0.125
  %v4326 = vmul.f32 %v4324, 0.125
  %v4327 = vmul.f32 %v4325, %v4325
  %v4328 = vsub.f32 %v4326, %v4327
  %v4329 = vmax.f32 %v4328, 0.0
  %v4330 = vsub.f32 %v4307, %v4325
  %v4331 = vadd.f32 %v4329, 1e-05
  %v4332 = vrsqrt.pop %v4331
  %v4333 = vmul.f32 %v4330, %v4332
  %v4334 = vsub.f32 0.0, %v4333
  %v4335 = vmul.f32 %v4334, 1.442695
  %v4336 = vpow.pop %v4335
  %v4337 = vadd.f32 %v4336, 1.0
  %v4338 = vrcp.pop %v4337
  %4340 = vrot.lane.b32.xlu0 %v4338, 112
  %v4341 = vpop.permute.xlu0 %4340
  %v4343 = vmul.f32 %v4333, %v4341
  %v4345 = vsel %vm57, %v4343, 0
  %4347 = vmatprep.subr.mxu0 0.0
  %4348 = vmatpush1.msra.mxu0 %v33
  %4349 = vmatprep.subr.mxu0 0.0
  %4350 = vmatpush1.msra.mxu0 %v34
  %4351 = vmatprep.subr.mxu0 0.0
  %4352 = vmatpush1.msra.mxu0 0.0
  %4353 = vmatprep.subr.mxu0 0.0
  %4354 = vmatpush1.msra.mxu0 0.0
  %4355 = vmatprep.subr.mxu0 0.0
  %4356 = vmatpush1.msra.mxu0 0.0
  %4357 = vmatprep.subr.mxu0 0.0
  %4358 = vmatpush1.msra.mxu0 0.0
  %4359 = vmatprep.subr.mxu0 0.0
  %4360 = vmatpush1.msra.mxu0 0.0
  %4361 = vmatprep.subr.mxu0 0.0
  %4362 = vmatpush1.msra.mxu0 0.0
  %4363 = vmatprep.subr.mxu0 0.0
  %4364 = vmatpush1.msra.mxu0 0.0
  %4365 = vmatprep.subr.mxu0 0.0
  %4366 = vmatpush1.msra.mxu0 0.0
  %4367 = vmatprep.subr.mxu0 0.0
  %4368 = vmatpush1.msra.mxu0 0.0
  %4369 = vmatprep.subr.mxu0 0.0
  %4370 = vmatpush1.msra.mxu0 0.0
  %4371 = vmatprep.subr.mxu0 0.0
  %4372 = vmatpush1.msra.mxu0 0.0
  %4373 = vmatprep.subr.mxu0 0.0
  %4374 = vmatpush1.msra.mxu0 0.0
  %4375 = vmatprep.subr.mxu0 0.0
  %4376 = vmatpush1.msra.mxu0 0.0
  %4377 = vmatprep.subr.mxu0 0.0
  %4378 = vmatpush1.msra.mxu0 0.0
  %4379 = vmatprep.subr.mxu0 0.0
  %4380 = vmatpush1.msra.mxu0 0.0
  %4381 = vmatprep.subr.mxu0 0.0
  %4382 = vmatpush1.msra.mxu0 0.0
  %4383 = vmatprep.subr.mxu0 0.0
  %4384 = vmatpush1.msra.mxu0 0.0
  %4385 = vmatprep.subr.mxu0 0.0
  %4386 = vmatpush1.msra.mxu0 0.0
  %4387 = vmatprep.subr.mxu0 0.0
  %4388 = vmatpush1.msra.mxu0 0.0
  %4389 = vmatprep.subr.mxu0 0.0
  %4390 = vmatpush1.msra.mxu0 0.0
  %4391 = vmatprep.subr.mxu0 0.0
  %4392 = vmatpush1.msra.mxu0 0.0
  %4393 = vmatprep.subr.mxu0 0.0
  %4394 = vmatpush1.msra.mxu0 0.0
  %4395 = vmatprep.subr.mxu0 0.0
  %4396 = vmatpush1.msra.mxu0 0.0
  %4397 = vmatprep.subr.mxu0 0.0
  %4398 = vmatpush1.msra.mxu0 0.0
  %4399 = vmatprep.subr.mxu0 0.0
  %4400 = vmatpush1.msra.mxu0 0.0
  %4401 = vmatprep.subr.mxu0 0.0
  %4402 = vmatpush1.msra.mxu0 0.0
  %4403 = vmatprep.subr.mxu0 0.0
  %4404 = vmatpush1.msra.mxu0 0.0
  %4405 = vmatprep.subr.mxu0 0.0
  %4406 = vmatpush1.msra.mxu0 0.0
  %4407 = vmatprep.subr.mxu0 0.0
  %4408 = vmatpush1.msra.mxu0 0.0
  %4409 = vmatprep.subr.mxu0 0.0
  %4410 = vmatpush1.msra.mxu0 0.0
  %4411 = vmatprep.mubr.f32.mxu0 0.0
  %4412 = vmatmul.mubr.f32.gmra.mrb[0].mxu0 %v4345
  %v4413 = vpop.f32.mrb[0].mxu0
  %v4414 = vadd.f32 0.0, %v4413
  %v4415 = vpop.f32.mrb[0].mxu0
  %4416 = vdwg.mxu0
  %v4417 = vsel %vm131, %v4414, 0.0
  %v4418 = vrot.slane %v4417, 4
  %v4419 = vadd.f32 %v4417, %v4418
  %v4420 = vrot.slane %v4419, 2
  %v4421 = vadd.f32 %v4419, %v4420
  %v4422 = vrot.slane %v4421, 1
  %v4423 = vadd.f32 %v4421, %v4422
  %v4424 = vmul.f32 %v4414, %v4414
  %v4425 = vsel %vm131, %v4424, 0.0
  %v4426 = vrot.slane %v4425, 4
  %v4427 = vadd.f32 %v4425, %v4426
  %v4428 = vrot.slane %v4427, 2
  %v4429 = vadd.f32 %v4427, %v4428
  %v4430 = vrot.slane %v4429, 1
  %v4431 = vadd.f32 %v4429, %v4430
  %v4432 = vmul.f32 %v4423, 0.125
  %v4433 = vmul.f32 %v4431, 0.125
  %v4434 = vmul.f32 %v4432, %v4432
  %v4435 = vsub.f32 %v4433, %v4434
  %v4436 = vmax.f32 %v4435, 0.0
  %v4437 = vsub.f32 %v4414, %v4432
  %v4438 = vadd.f32 %v4436, 1e-05
  %v4439 = vrsqrt.pop %v4438
  %v4440 = vmul.f32 %v4437, %v4439
  %v4441 = vsub.f32 0.0, %v4440
  %v4442 = vmul.f32 %v4441, 1.442695
  %v4443 = vpow.pop %v4442
  %v4444 = vadd.f32 %v4443, 1.0
  %v4445 = vrcp.pop %v4444
  %4447 = vrot.lane.b32.xlu0 %v4445, 112
  %v4448 = vpop.permute.xlu0 %4447
  %v4450 = vmul.f32 %v4440, %v4448
  %v4451 = vadd.f32 %v4343, %v4450
  %v4452 = vmul.f32 %v4451, 0.70710677
  %v4454 = vsel %vm57, %v4452, 0
  %4456 = vmatprep.subr.mxu0 0.0
  %4457 = vmatpush1.msra.mxu0 %v4231
  %4458 = vmatprep.subr.mxu0 0.0
  %4459 = vmatpush1.msra.mxu0 %v4232
  %4460 = vmatprep.subr.mxu0 0.0
  %4461 = vmatpush1.msra.mxu0 0.0
  %4462 = vmatprep.subr.mxu0 0.0
  %4463 = vmatpush1.msra.mxu0 0.0
  %4464 = vmatprep.subr.mxu0 0.0
  %4465 = vmatpush1.msra.mxu0 0.0
  %4466 = vmatprep.subr.mxu0 0.0
  %4467 = vmatpush1.msra.mxu0 0.0
  %4468 = vmatprep.subr.mxu0 0.0
  %4469 = vmatpush1.msra.mxu0 0.0
  %4470 = vmatprep.subr.mxu0 0.0
  %4471 = vmatpush1.msra.mxu0 0.0
  %4472 = vmatprep.subr.mxu0 0.0
  %4473 = vmatpush1.msra.mxu0 0.0
  %4474 = vmatprep.subr.mxu0 0.0
  %4475 = vmatpush1.msra.mxu0 0.0
  %4476 = vmatprep.subr.mxu0 0.0
  %4477 = vmatpush1.msra.mxu0 0.0
  %4478 = vmatprep.subr.mxu0 0.0
  %4479 = vmatpush1.msra.mxu0 0.0
  %4480 = vmatprep.subr.mxu0 0.0
  %4481 = vmatpush1.msra.mxu0 0.0
  %4482 = vmatprep.subr.mxu0 0.0
  %4483 = vmatpush1.msra.mxu0 0.0
  %4484 = vmatprep.subr.mxu0 0.0
  %4485 = vmatpush1.msra.mxu0 0.0
  %4486 = vmatprep.subr.mxu0 0.0
  %4487 = vmatpush1.msra.mxu0 0.0
  %4488 = vmatprep.subr.mxu0 0.0
  %4489 = vmatpush1.msra.mxu0 0.0
  %4490 = vmatprep.subr.mxu0 0.0
  %4491 = vmatpush1.msra.mxu0 0.0
  %4492 = vmatprep.subr.mxu0 0.0
  %4493 = vmatpush1.msra.mxu0 0.0
  %4494 = vmatprep.subr.mxu0 0.0
  %4495 = vmatpush1.msra.mxu0 0.0
  %4496 = vmatprep.subr.mxu0 0.0
  %4497 = vmatpush1.msra.mxu0 0.0
  %4498 = vmatprep.subr.mxu0 0.0
  %4499 = vmatpush1.msra.mxu0 0.0
  %4500 = vmatprep.subr.mxu0 0.0
  %4501 = vmatpush1.msra.mxu0 0.0
  %4502 = vmatprep.subr.mxu0 0.0
  %4503 = vmatpush1.msra.mxu0 0.0
  %4504 = vmatprep.subr.mxu0 0.0
  %4505 = vmatpush1.msra.mxu0 0.0
  %4506 = vmatprep.subr.mxu0 0.0
  %4507 = vmatpush1.msra.mxu0 0.0
  %4508 = vmatprep.subr.mxu0 0.0
  %4509 = vmatpush1.msra.mxu0 0.0
  %4510 = vmatprep.subr.mxu0 0.0
  %4511 = vmatpush1.msra.mxu0 0.0
  %4512 = vmatprep.subr.mxu0 0.0
  %4513 = vmatpush1.msra.mxu0 0.0
  %4514 = vmatprep.subr.mxu0 0.0
  %4515 = vmatpush1.msra.mxu0 0.0
  %4516 = vmatprep.subr.mxu0 0.0
  %4517 = vmatpush1.msra.mxu0 0.0
  %4518 = vmatprep.subr.mxu0 0.0
  %4519 = vmatpush1.msra.mxu0 0.0
  %4520 = vmatprep.mubr.f32.mxu0 0.0
  %4521 = vmatmul.mubr.f32.gmra.mrb[0].mxu0 %v4454
  %v4522 = vpop.f32.mrb[0].mxu0
  %v4523 = vadd.f32 0.0, %v4522
  %v4524 = vpop.f32.mrb[0].mxu0
  %4525 = vdwg.mxu0
  %v4526 = vsel %vm131, %v4523, 0.0
  %v4527 = vrot.slane %v4526, 4
  %v4528 = vadd.f32 %v4526, %v4527
  %v4529 = vrot.slane %v4528, 2
  %v4530 = vadd.f32 %v4528, %v4529
  %v4531 = vrot.slane %v4530, 1
  %v4532 = vadd.f32 %v4530, %v4531
  %v4533 = vmul.f32 %v4523, %v4523
  %v4534 = vsel %vm131, %v4533, 0.0
  %v4535 = vrot.slane %v4534, 4
  %v4536 = vadd.f32 %v4534, %v4535
  %v4537 = vrot.slane %v4536, 2
  %v4538 = vadd.f32 %v4536, %v4537
  %v4539 = vrot.slane %v4538, 1
  %v4540 = vadd.f32 %v4538, %v4539
  %v4541 = vmul.f32 %v4532, 0.125
  %v4542 = vmul.f32 %v4540, 0.125
  %v4543 = vmul.f32 %v4541, %v4541
  %v4544 = vsub.f32 %v4542, %v4543
  %v4545 = vmax.f32 %v4544, 0.0
  %v4546 = vsub.f32 %v4523, %v4541
  %v4547 = vadd.f32 %v4545, 1e-05
  %v4548 = vrsqrt.pop %v4547
  %v4549 = vmul.f32 %v4546, %v4548
  %v4550 = vsub.f32 0.0, %v4549
  %v4551 = vmul.f32 %v4550, 1.442695
  %v4552 = vpow.pop %v4551
  %v4553 = vadd.f32 %v4552, 1.0
  %v4554 = vrcp.pop %v4553
  %4556 = vrot.lane.b32.xlu0 %v4554, 112
  %v4557 = vpop.permute.xlu0 %4556
  %v4559 = vmul.f32 %v4549, %v4557
  %v4560 = vadd.f32 %v4452, %v4559
  %v4561 = vmul.f32 %v4560, 0.70710677
  %v4563 = vsel %vm57, %v4561, 0
  %4565 = vmatprep.subr.mxu0 0.0
  %4566 = vmatpush1.msra.mxu0 %v4234
  %4567 = vmatprep.subr.mxu0 0.0
  %4568 = vmatpush1.msra.mxu0 %v4235
  %4569 = vmatprep.subr.mxu0 0.0
  %4570 = vmatpush1.msra.mxu0 0.0
  %4571 = vmatprep.subr.mxu0 0.0
  %4572 = vmatpush1.msra.mxu0 0.0
  %4573 = vmatprep.subr.mxu0 0.0
  %4574 = vmatpush1.msra.mxu0 0.0
  %4575 = vmatprep.subr.mxu0 0.0
  %4576 = vmatpush1.msra.mxu0 0.0
  %4577 = vmatprep.subr.mxu0 0.0
  %4578 = vmatpush1.msra.mxu0 0.0
  %4579 = vmatprep.subr.mxu0 0.0
  %4580 = vmatpush1.msra.mxu0 0.0
  %4581 = vmatprep.subr.mxu0 0.0
  %4582 = vmatpush1.msra.mxu0 0.0
  %4583 = vmatprep.subr.mxu0 0.0
  %4584 = vmatpush1.msra.mxu0 0.0
  %4585 = vmatprep.subr.mxu0 0.0
  %4586 = vmatpush1.msra.mxu0 0.0
  %4587 = vmatprep.subr.mxu0 0.0
  %4588 = vmatpush1.msra.mxu0 0.0
  %4589 = vmatprep.subr.mxu0 0.0
  %4590 = vmatpush1.msra.mxu0 0.0
  %4591 = vmatprep.subr.mxu0 0.0
  %4592 = vmatpush1.msra.mxu0 0.0
  %4593 = vmatprep.subr.mxu0 0.0
  %4594 = vmatpush1.msra.mxu0 0.0
  %4595 = vmatprep.subr.mxu0 0.0
  %4596 = vmatpush1.msra.mxu0 0.0
  %4597 = vmatprep.subr.mxu0 0.0
  %4598 = vmatpush1.msra.mxu0 0.0
  %4599 = vmatprep.subr.mxu0 0.0
  %4600 = vmatpush1.msra.mxu0 0.0
  %4601 = vmatprep.subr.mxu0 0.0
  %4602 = vmatpush1.msra.mxu0 0.0
  %4603 = vmatprep.subr.mxu0 0.0
  %4604 = vmatpush1.msra.mxu0 0.0
  %4605 = vmatprep.subr.mxu0 0.0
  %4606 = vmatpush1.msra.mxu0 0.0
  %4607 = vmatprep.subr.mxu0 0.0
  %4608 = vmatpush1.msra.mxu0 0.0
  %4609 = vmatprep.subr.mxu0 0.0
  %4610 = vmatpush1.msra.mxu0 0.0
  %4611 = vmatprep.subr.mxu0 0.0
  %4612 = vmatpush1.msra.mxu0 0.0
  %4613 = vmatprep.subr.mxu0 0.0
  %4614 = vmatpush1.msra.mxu0 0.0
  %4615 = vmatprep.subr.mxu0 0.0
  %4616 = vmatpush1.msra.mxu0 0.0
  %4617 = vmatprep.subr.mxu0 0.0
  %4618 = vmatpush1.msra.mxu0 0.0
  %4619 = vmatprep.subr.mxu0 0.0
  %4620 = vmatpush1.msra.mxu0 0.0
  %4621 = vmatprep.subr.mxu0 0.0
  %4622 = vmatpush1.msra.mxu0 0.0
  %4623 = vmatprep.subr.mxu0 0.0
  %4624 = vmatpush1.msra.mxu0 0.0
  %4625 = vmatprep.subr.mxu0 0.0
  %4626 = vmatpush1.msra.mxu0 0.0
  %4627 = vmatprep.subr.mxu0 0.0
  %4628 = vmatpush1.msra.mxu0 0.0
  %4629 = vmatprep.mubr.f32.mxu0 0.0
  %4630 = vmatmul.mubr.f32.gmra.mrb[0].mxu0 %v4563
  %v4631 = vpop.f32.mrb[0].mxu0
  %v4632 = vadd.f32 0.0, %v4631
  %v4633 = vpop.f32.mrb[0].mxu0
  %4634 = vdwg.mxu0
  %v4635 = vsel %vm131, %v4632, 0.0
  %v4636 = vrot.slane %v4635, 4
  %v4637 = vadd.f32 %v4635, %v4636
  %v4638 = vrot.slane %v4637, 2
  %v4639 = vadd.f32 %v4637, %v4638
  %v4640 = vrot.slane %v4639, 1
  %v4641 = vadd.f32 %v4639, %v4640
  %v4642 = vmul.f32 %v4632, %v4632
  %v4643 = vsel %vm131, %v4642, 0.0
  %v4644 = vrot.slane %v4643, 4
  %v4645 = vadd.f32 %v4643, %v4644
  %v4646 = vrot.slane %v4645, 2
  %v4647 = vadd.f32 %v4645, %v4646
  %v4648 = vrot.slane %v4647, 1
  %v4649 = vadd.f32 %v4647, %v4648
  %v4650 = vmul.f32 %v4641, 0.125
  %v4651 = vmul.f32 %v4649, 0.125
  %v4652 = vmul.f32 %v4650, %v4650
  %v4653 = vsub.f32 %v4651, %v4652
  %v4654 = vmax.f32 %v4653, 0.0
  %v4655 = vsub.f32 %v4632, %v4650
  %v4656 = vadd.f32 %v4654, 1e-05
  %v4657 = vrsqrt.pop %v4656
  %v4658 = vmul.f32 %v4655, %v4657
  %v4659 = vsub.f32 0.0, %v4658
  %v4660 = vmul.f32 %v4659, 1.442695
  %v4661 = vpow.pop %v4660
  %v4662 = vadd.f32 %v4661, 1.0
  %v4663 = vrcp.pop %v4662
  %4665 = vrot.lane.b32.xlu0 %v4663, 112
  %v4666 = vpop.permute.xlu0 %4665
  %v4668 = vmul.f32 %v4658, %v4666
  %v4669 = vadd.f32 %v4561, %v4668
  %v4670 = vmul.f32 %v4669, 0.70710677
  %v4671 = vmax.f32 %v4670, 0.0
  %4673 = vrot.lane.b32.xlu0 %v3282, 8
  %v4674 = vpop.permute.xlu0 %4673
  %4677 = vrot.lane.b32.xlu0 %v4671, 16
  %v4678 = vpop.permute.xlu0 %4677
  %v4680 = vsel %vm497, %v1891, %v4674
  %v4681 = vsel %vm57, %v4680, %v4678
  %vm4682 = vcmask 195584
  %v4683 = vsel %vm4682, %v4681, 0.0
  %4684 = vst [vmem:[%s8] sm:$0xff] %v4683
  %vm4685 = vcmask 7168
  %4686 = vst.msk [vmem:[%s9] sm:$0xff] %vm4685, %v4229
  // Predicated region
  $region34: #{tabnet_encoder_forward.1} parent=0 // pred_check
    _
  $region35: #{tabnet_encoder_forward.1} parent=0 // pred_check_branch
    %4688 = sbr.rel (0) target = $region37
  $region36: #{tabnet_encoder_forward.1} parent=0 // pred_region
    _
  $region37: #{tabnet_encoder_forward.1} parent=0 // pred_fallthru
    _
  // Predicated region
  $region38: #{tabnet_encoder_forward.1} parent=0 // pred_check
    _
  $region39: #{tabnet_encoder_forward.1} parent=0 // pred_check_branch
    %4690 = sbr.rel (0) target = $region41
  $region40: #{tabnet_encoder_forward.1} parent=0 // pred_region
    _
  $region41: #{tabnet_encoder_forward.1} parent=0 // pred_fallthru
    _
  // Predicated region
  $region42: #{tabnet_encoder_forward.1} parent=0 // pred_check
    _
  $region43: #{tabnet_encoder_forward.1} parent=0 // pred_check_branch
    %4692 = sbr.rel (0) target = $region45
  $region44: #{tabnet_encoder_forward.1} parent=0 // pred_region
    _
  $region45: #{tabnet_encoder_forward.1} parent=0 // pred_fallthru
    _
  // Predicated region
  $region46: #{tabnet_encoder_forward.1} parent=0 // pred_check
    _
  $region47: #{tabnet_encoder_forward.1} parent=0 // pred_check_branch
    %4694 = sbr.rel (0) target = $region49
  $region48: #{tabnet_encoder_forward.1} parent=0 // pred_region
    _
  $region49: #{tabnet_encoder_forward.1} parent=0 // pred_fallthru
    _

</llo_original>
